<compile_context>
chip_gen: v7x
topology: tpu7x:2x2x1
jax: 0.10.0
libtpu: 0.0.40
codegen_flags: <defaults>
</compile_context>

<pallas_src>
import functools

import jax
import jax.numpy as jnp
from jax import lax
from jax.experimental import pallas as pl
from jax.experimental.pallas import tpu as pltpu

LANE = 128


def _round_up(x, m):
    return (x + m - 1) // m * m


def _pick_time_block(T, max_blk=16):
    """Largest divisor of T that is <= max_blk (timesteps per grid step)."""
    for cand in range(min(T, max_blk), 0, -1):
        if T % cand == 0:
            return cand
    return 1


# ---------------------------------------------------------------------------
# Kernels
# ---------------------------------------------------------------------------
def _input_proj_kernel(x_ref, w_ref, b_ref, g_ref):
    """One row-block of gates_x = x @ W_ih + bias.

    x_ref: (R, D)   activation rows (f32 or bf16)
    w_ref: (D, 4Hp) bf16
    b_ref: (1, 4Hp) f32   (b_ih + b_hh combined, zero in padded lanes)
    g_ref: (R, 4Hp) f32
    """
    x = x_ref[...].astype(w_ref.dtype)
    g_ref[...] = (
        jnp.dot(x, w_ref[...], preferred_element_type=jnp.float32) + b_ref[...]
    )


def _lstm_cell(gates, c, hidden):
    """PyTorch gate order: i, f, g, o.  `hidden` is the padded hidden size."""
    i_g = jax.nn.sigmoid(gates[:, 0 * hidden:1 * hidden])
    f_g = jax.nn.sigmoid(gates[:, 1 * hidden:2 * hidden])
    g_g = jnp.tanh(gates[:, 2 * hidden:3 * hidden])
    o_g = jax.nn.sigmoid(gates[:, 3 * hidden:4 * hidden])
    c_new = f_g * c + i_g * g_g
    h_new = o_g * jnp.tanh(c_new)
    return h_new, c_new


def _lstm_recurrent_kernel(g_ref, whh_ref, y_ref, h_sc, c_sc, *, t_blk, hidden):
    """Recurrence for a non-final layer: T_BLK steps per grid iteration.

    g_ref: (T_BLK, B, 4Hp) f32 precomputed input gates (time-major)
    whh_ref: (Hp, 4Hp) bf16 (resident across the whole grid)
    y_ref: (T_BLK, B, Hp) bf16 hidden-state outputs
    h_sc/c_sc: (B, Hp) f32 VMEM carries across grid steps
    """
    tb = pl.program_id(0)

    @pl.when(tb == 0)
    def _():
        h_sc[...] = jnp.zeros_like(h_sc)
        c_sc[...] = jnp.zeros_like(c_sc)

    def step(s, carry):
        h, c = carry
        gates = g_ref[s] + jnp.dot(
            h.astype(whh_ref.dtype), whh_ref[...],
            preferred_element_type=jnp.float32)
        h_new, c_new = _lstm_cell(gates, c, hidden)
        y_ref[s] = h_new.astype(y_ref.dtype)
        return h_new, c_new

    h, c = lax.fori_loop(0, t_blk, step, (h_sc[...], c_sc[...]), unroll=True)
    h_sc[...] = h
    c_sc[...] = c


def _lstm_recurrent_last_kernel(g_ref, whh_ref, wlin_ref, blin_ref, o_ref,
                                h_sc, c_sc, *, t_blk, hidden):
    """Last layer: recurrence fused with the final Linear on h_{T-1}.

    Only the (B, output_size) result is written (no (T, B, H) HBM output).
    """
    tb = pl.program_id(0)

    @pl.when(tb == 0)
    def _():
        h_sc[...] = jnp.zeros_like(h_sc)
        c_sc[...] = jnp.zeros_like(c_sc)

    def step(s, carry):
        h, c = carry
        gates = g_ref[s] + jnp.dot(
            h.astype(whh_ref.dtype), whh_ref[...],
            preferred_element_type=jnp.float32)
        return _lstm_cell(gates, c, hidden)

    h, c = lax.fori_loop(0, t_blk, step, (h_sc[...], c_sc[...]), unroll=True)
    h_sc[...] = h
    c_sc[...] = c

    @pl.when(tb == pl.num_programs(0) - 1)
    def _():
        o_ref[...] = (
            jnp.dot(h_sc[...].astype(wlin_ref.dtype), wlin_ref[...],
                    preferred_element_type=jnp.float32)
            + blin_ref[...]
        ).astype(o_ref.dtype)


# ---------------------------------------------------------------------------
# Wrappers
# ---------------------------------------------------------------------------
def input_projection(x_tm, w_ih_t, bias, *, t_blk):
    """x_tm: (T, B, D) time-major -> gates_x: (T, B, 4Hp) f32 (one big GEMM)."""
    T, B, D = x_tm.shape
    G = w_ih_t.shape[1]
    rows = T * B
    r_blk = t_blk * B
    x2 = x_tm.reshape(rows, D)          # free row-major collapse, outside kernel
    g2 = pl.pallas_call(
        _input_proj_kernel,
        out_shape=jax.ShapeDtypeStruct((rows, G), jnp.float32),
        grid_spec=pltpu.PrefetchScalarGridSpec(
            num_scalar_prefetch=0,
            grid=(rows // r_blk,),
            in_specs=[
                pl.BlockSpec((r_blk, D), lambda t: (t, 0)),
                pl.BlockSpec((D, G), lambda t: (0, 0)),
                pl.BlockSpec((1, G), lambda t: (0, 0)),
            ],
            out_specs=pl.BlockSpec((r_blk, G), lambda t: (t, 0)),
        ),
        compiler_params=pltpu.CompilerParams(
            dimension_semantics=("parallel",),
        ),
    )(x2, w_ih_t, bias)
    return g2.reshape(T, B, G)


def lstm_recurrence(gates, w_hh_t, *, t_blk):
    """gates: (T, B, 4Hp) f32 -> hidden sequence (T, B, Hp) bf16."""
    T, B, G = gates.shape
    Hp = G // 4
    kernel = functools.partial(_lstm_recurrent_kernel, t_blk=t_blk, hidden=Hp)
    return pl.pallas_call(
        kernel,
        out_shape=jax.ShapeDtypeStruct((T, B, Hp), jnp.bfloat16),
        grid_spec=pltpu.PrefetchScalarGridSpec(
            num_scalar_prefetch=0,
            grid=(T // t_blk,),
            in_specs=[
                pl.BlockSpec((t_blk, B, G), lambda t: (t, 0, 0)),
                pl.BlockSpec((Hp, G), lambda t: (0, 0)),
            ],
            out_specs=pl.BlockSpec((t_blk, B, Hp), lambda t: (t, 0, 0)),
            scratch_shapes=[
                pltpu.VMEM((B, Hp), jnp.float32),   # h carry
                pltpu.VMEM((B, Hp), jnp.float32),   # c carry
            ],
        ),
        compiler_params=pltpu.CompilerParams(
            dimension_semantics=("arbitrary",),     # time recurrence is sequential
        ),
    )(gates, w_hh_t)


def lstm_recurrence_last(gates, w_hh_t, w_lin_t, b_lin, *, t_blk):
    """Last layer recurrence + fused Linear -> (B, output_size) f32."""
    T, B, G = gates.shape
    Hp = G // 4
    O = w_lin_t.shape[1]
    kernel = functools.partial(_lstm_recurrent_last_kernel, t_blk=t_blk, hidden=Hp)
    return pl.pallas_call(
        kernel,
        out_shape=jax.ShapeDtypeStruct((B, O), jnp.float32),
        grid_spec=pltpu.PrefetchScalarGridSpec(
            num_scalar_prefetch=0,
            grid=(T // t_blk,),
            in_specs=[
                pl.BlockSpec((t_blk, B, G), lambda t: (t, 0, 0)),
                pl.BlockSpec((Hp, G), lambda t: (0, 0)),
                pl.BlockSpec((Hp, O), lambda t: (0, 0)),
                pl.BlockSpec((1, O), lambda t: (0, 0)),
            ],
            out_specs=pl.BlockSpec((B, O), lambda t: (0, 0)),
            scratch_shapes=[
                pltpu.VMEM((B, Hp), jnp.float32),
                pltpu.VMEM((B, Hp), jnp.float32),
            ],
        ),
        compiler_params=pltpu.CompilerParams(
            dimension_semantics=("arbitrary",),
        ),
    )(gates, w_hh_t, w_lin_t, b_lin)


@functools.partial(jax.jit, static_argnames=("num_layers",))
def lstm_forward(x, params, num_layers):
    """x: (batch, seq, input_size) batch_first -> (batch, output_size)."""
    B, T, _ = x.shape
    t_blk = _pick_time_block(T)
    # One small layout change of the raw input; every later activation stays
    # time-major so no further transposes are needed.
    h_seq = jnp.transpose(x, (1, 0, 2))                 # (T, B, I)
    out = None
    for layer in range(num_layers):
        w_ih_t, w_hh_t, bias = params["lstm"][layer]
        gates = input_projection(h_seq, w_ih_t, bias, t_blk=t_blk)
        if layer == num_layers - 1:
            w_lin_t, b_lin = params["linear"]
            out = lstm_recurrence_last(gates, w_hh_t, w_lin_t, b_lin, t_blk=t_blk)
        else:
            h_seq = lstm_recurrence(gates, w_hh_t, t_blk=t_blk)
    return out


# ---------------------------------------------------------------------------
# Parameter init (mirrors PyTorch uniform(-1/sqrt(H), 1/sqrt(H))), then pads
# the hidden dimension to a multiple of 128 (exact, zero padding) and casts
# weight matrices to bf16 (f32 accumulation inside the kernels).
# ---------------------------------------------------------------------------
def init_params(key, input_size, hidden_size, num_layers, output_size):
    Hp = _round_up(hidden_size, LANE)
    bound = 1.0 / float(hidden_size) ** 0.5

    def pad_gate_cols(w):            # (in, 4H) -> (in, 4Hp), per-gate chunk padding
        in_dim = w.shape[0]
        w = w.reshape(in_dim, 4, hidden_size)
        w = jnp.pad(w, ((0, 0), (0, 0), (0, Hp - hidden_size)))
        return w.reshape(in_dim, 4 * Hp)

    def pad_rows(w):                 # (H, n) -> (Hp, n)
        return jnp.pad(w, ((0, Hp - hidden_size), (0, 0)))

    lstm_params = []
    for layer in range(num_layers):
        in_dim = input_size if layer == 0 else hidden_size
        key, k1, k2, k3, k4 = jax.random.split(key, 5)
        # PyTorch stores weight_ih (4H, in), weight_hh (4H, H); pre-transposed here.
        w_ih_t = jax.random.uniform(k1, (in_dim, 4 * hidden_size),
                                    jnp.float32, -bound, bound)
        w_hh_t = jax.random.uniform(k2, (hidden_size, 4 * hidden_size),
                                    jnp.float32, -bound, bound)
        b_ih = jax.random.uniform(k3, (4 * hidden_size,), jnp.float32, -bound, bound)
        b_hh = jax.random.uniform(k4, (4 * hidden_size,), jnp.float32, -bound, bound)

        w_ih_t = pad_gate_cols(w_ih_t)
        if layer > 0:
            w_ih_t = pad_rows(w_ih_t)
        w_hh_t = pad_rows(pad_gate_cols(w_hh_t))
        bias = pad_gate_cols((b_ih + b_hh).reshape(1, 4 * hidden_size))

        lstm_params.append((w_ih_t.astype(jnp.bfloat16),
                            w_hh_t.astype(jnp.bfloat16),
                            bias.astype(jnp.float32)))

    key, k5, k6 = jax.random.split(key, 3)
    w_lin_t = jax.random.uniform(k5, (hidden_size, output_size),
                                 jnp.float32, -bound, bound)
    b_lin = jax.random.uniform(k6, (output_size,), jnp.float32, -bound, bound)
    w_lin_t = pad_rows(w_lin_t).astype(jnp.bfloat16)
    b_lin = b_lin.reshape(1, output_size)
    return {"lstm": lstm_params, "linear": (w_lin_t, b_lin)}


if __name__ == "__main__":
    batch, seq = 2, 8
    input_size, hidden_size, num_layers, output_size = 4, 32, 2, 12

    key = jax.random.PRNGKey(0)
    key, xk = jax.random.split(key)
    x = jax.random.normal(xk, (batch, seq, input_size), jnp.float32)

    params = init_params(key, input_size, hidden_size, num_layers, output_size)

    y = lstm_forward(x, params, num_layers)
    jax.block_until_ready(y)
    assert y.shape == (batch, output_size), y.shape
    print("KERNEL_OK")
</pallas_src>

<mosaic_0001>
module attributes {stable_mosaic.version = 11 : i64} {
  func.func @_input_proj_kernel(%arg0: i32, %arg1: memref<16x4xf32, #tpu.memory_space<vmem>>, %arg2: memref<4x512xbf16, #tpu.memory_space<vmem>>, %arg3: memref<1x512xf32, #tpu.memory_space<vmem>>, %arg4: memref<16x512xf32, #tpu.memory_space<vmem>>) attributes {dimension_semantics = [#tpu.dimension_semantics<parallel>], iteration_bounds = array<i64: 1>, scalar_prefetch = 0 : i64, scratch_operands = 0 : i64, tpu.core_type = #tpu.core_type<tc>, window_params = [{transform_indices = @transform_0, window_bounds = array<i64: 16, 4>}, {pipeline_mode = #tpu.pipeline_mode<synchronous>, transform_indices = @transform_1, window_bounds = array<i64: 4, 512>}, {pipeline_mode = #tpu.pipeline_mode<synchronous>, transform_indices = @transform_2, window_bounds = array<i64: 1, 512>}, {transform_indices = @transform_3, window_bounds = array<i64: 16, 512>}]} {
    %c0 = arith.constant 0 : index
    %c0_0 = arith.constant 0 : index
    %0 = vector.load %arg1[%c0, %c0_0] : memref<16x4xf32, #tpu.memory_space<vmem>>, vector<16x4xf32>
    %1 = arith.truncf %0 : vector<16x4xf32> to vector<16x4xbf16>
    %c0_1 = arith.constant 0 : index
    %c0_2 = arith.constant 0 : index
    %2 = vector.load %arg2[%c0_1, %c0_2] : memref<4x512xbf16, #tpu.memory_space<vmem>>, vector<4x512xbf16>
    %cst = arith.constant dense<0.000000e+00> : vector<16x512xf32>
    %3 = tpu.matmul %1, %2, %cst {dimension_numbers = #tpu.dot_dimension_numbers<[1], [0], [0], [1], [0, 0, 1, 1], [], []>} : vector<16x4xbf16>, vector<4x512xbf16>, vector<16x512xf32> -> vector<16x512xf32>
    %c0_3 = arith.constant 0 : index
    %c0_4 = arith.constant 0 : index
    %4 = vector.load %arg3[%c0_3, %c0_4] : memref<1x512xf32, #tpu.memory_space<vmem>>, vector<1x512xf32>
    %5 = vector.broadcast %4 : vector<1x512xf32> to vector<16x512xf32>
    %6 = arith.addf %3, %5 : vector<16x512xf32>
    %c0_5 = arith.constant 0 : index
    %c0_6 = arith.constant 0 : index
    %7 = vector.load %arg4[%c0_5, %c0_6] : memref<16x512xf32, #tpu.memory_space<vmem>>, vector<16x512xf32>
    tpu.vector_store %arg4[%c0_5, %c0_6], %6 {strides = array<i32>} : memref<16x512xf32, #tpu.memory_space<vmem>>, vector<16x512xf32>,
    return
  }
  func.func @transform_0(%arg0: i32) -> (i32, i32) {
    %c0_i32 = arith.constant 0 : i32
    %c0_i32_0 = arith.constant 0 : i32
    return %arg0, %c0_i32 : i32, i32
  }
  func.func @transform_1(%arg0: i32) -> (i32, i32) {
    %c0_i32 = arith.constant 0 : i32
    %c0_i32_0 = arith.constant 0 : i32
    %c0_i32_1 = arith.constant 0 : i32
    return %c0_i32, %c0_i32_0 : i32, i32
  }
  func.func @transform_2(%arg0: i32) -> (i32, i32) {
    %c0_i32 = arith.constant 0 : i32
    %c0_i32_0 = arith.constant 0 : i32
    %c0_i32_1 = arith.constant 0 : i32
    return %c0_i32, %c0_i32_0 : i32, i32
  }
  func.func @transform_3(%arg0: i32) -> (i32, i32) {
    %c0_i32 = arith.constant 0 : i32
    %c0_i32_0 = arith.constant 0 : i32
    return %arg0, %c0_i32 : i32, i32
  }
}

module attributes {stable_mosaic.version = 11 : i64} {
  func.func @_lstm_recurrent_kernel(%arg0: i32, %arg1: memref<8x2x512xf32, #tpu.memory_space<vmem>>, %arg2: memref<128x512xbf16, #tpu.memory_space<vmem>>, %arg3: memref<8x2x128xbf16, #tpu.memory_space<vmem>>, %arg4: memref<2x128xf32, #tpu.memory_space<vmem>>, %arg5: memref<2x128xf32, #tpu.memory_space<vmem>>) attributes {dimension_semantics = [#tpu.dimension_semantics<arbitrary>], iteration_bounds = array<i64: 1>, scalar_prefetch = 0 : i64, scratch_operands = 2 : i64, tpu.core_type = #tpu.core_type<tc>, window_params = [{transform_indices = @transform_0, window_bounds = array<i64: 8, 2, 512>}, {pipeline_mode = #tpu.pipeline_mode<synchronous>, transform_indices = @transform_1, window_bounds = array<i64: 128, 512>}, {transform_indices = @transform_2, window_bounds = array<i64: 8, 2, 128>}]} {
    %c0_i32 = arith.constant 0 : i32
    %0 = arith.cmpi eq, %arg0, %c0_i32 : i32
    %1 = arith.extui %0 : i1 to i32
    %c0_i32_0 = arith.constant 0 : i32
    %2 = arith.cmpi ne, %1, %c0_i32_0 : i32
    scf.if %2 {
      %cst_88 = arith.constant 0.000000e+00 : f32
      %303 = vector.broadcast %cst_88 : f32 to vector<2x128xf32>
      %c0_89 = arith.constant 0 : index
      %c0_90 = arith.constant 0 : index
      %304 = vector.load %arg4[%c0_89, %c0_90] : memref<2x128xf32, #tpu.memory_space<vmem>>, vector<2x128xf32>
      tpu.vector_store %arg4[%c0_89, %c0_90], %303 {strides = array<i32>} : memref<2x128xf32, #tpu.memory_space<vmem>>, vector<2x128xf32>,
      %cst_91 = arith.constant 0.000000e+00 : f32
      %305 = vector.broadcast %cst_91 : f32 to vector<2x128xf32>
      %c0_92 = arith.constant 0 : index
      %c0_93 = arith.constant 0 : index
      %306 = vector.load %arg5[%c0_92, %c0_93] : memref<2x128xf32, #tpu.memory_space<vmem>>, vector<2x128xf32>
      tpu.vector_store %arg5[%c0_92, %c0_93], %305 {strides = array<i32>} : memref<2x128xf32, #tpu.memory_space<vmem>>, vector<2x128xf32>,
    } else {
    }
    %c0 = arith.constant 0 : index
    %c0_1 = arith.constant 0 : index
    %3 = vector.load %arg4[%c0, %c0_1] : memref<2x128xf32, #tpu.memory_space<vmem>>, vector<2x128xf32>
    %c0_2 = arith.constant 0 : index
    %c0_3 = arith.constant 0 : index
    %4 = vector.load %arg5[%c0_2, %c0_3] : memref<2x128xf32, #tpu.memory_space<vmem>>, vector<2x128xf32>
    %c0_i32_4 = arith.constant 0 : i32
    %5 = arith.index_cast %c0_i32_4 : i32 to index
    %c0_5 = arith.constant 0 : index
    %c0_6 = arith.constant 0 : index
    %6 = vector.load %arg1[%5, %c0_5, %c0_6] : memref<8x2x512xf32, #tpu.memory_space<vmem>>, vector<1x2x512xf32>
    %7 = vector.shape_cast %6 : vector<1x2x512xf32> to vector<2x512xf32>
    %8 = arith.truncf %3 : vector<2x128xf32> to vector<2x128xbf16>
    %c0_7 = arith.constant 0 : index
    %c0_8 = arith.constant 0 : index
    %9 = vector.load %arg2[%c0_7, %c0_8] : memref<128x512xbf16, #tpu.memory_space<vmem>>, vector<128x512xbf16>
    %cst = arith.constant dense<0.000000e+00> : vector<2x512xf32>
    %10 = tpu.matmul %8, %9, %cst {dimension_numbers = #tpu.dot_dimension_numbers<[1], [0], [0], [1], [0, 0, 1, 1], [], []>} : vector<2x128xbf16>, vector<128x512xbf16>, vector<2x512xf32> -> vector<2x512xf32>
    %11 = arith.addf %7, %10 : vector<2x512xf32>
    %12 = vector.extract_strided_slice %11 {offsets = [0, 0], sizes = [2, 128], strides = [1, 1]} : vector<2x512xf32> to vector<2x128xf32>
    %13 = arith.negf %12 : vector<2x128xf32>
    %14 = math.exp %13 : vector<2x128xf32>
    %cst_9 = arith.constant 1.000000e+00 : f32
    %15 = vector.broadcast %cst_9 : f32 to vector<2x128xf32>
    %16 = arith.addf %15, %14 : vector<2x128xf32>
    %17 = arith.divf %15, %16 : vector<2x128xf32>
    %18 = vector.extract_strided_slice %11 {offsets = [0, 128], sizes = [2, 128], strides = [1, 1]} : vector<2x512xf32> to vector<2x128xf32>
    %19 = arith.negf %18 : vector<2x128xf32>
    %20 = math.exp %19 : vector<2x128xf32>
    %cst_10 = arith.constant 1.000000e+00 : f32
    %21 = vector.broadcast %cst_10 : f32 to vector<2x128xf32>
    %22 = arith.addf %21, %20 : vector<2x128xf32>
    %23 = arith.divf %21, %22 : vector<2x128xf32>
    %24 = vector.extract_strided_slice %11 {offsets = [0, 256], sizes = [2, 128], strides = [1, 1]} : vector<2x512xf32> to vector<2x128xf32>
    %25 = math.tanh %24 : vector<2x128xf32>
    %26 = vector.extract_strided_slice %11 {offsets = [0, 384], sizes = [2, 128], strides = [1, 1]} : vector<2x512xf32> to vector<2x128xf32>
    %27 = arith.negf %26 : vector<2x128xf32>
    %28 = math.exp %27 : vector<2x128xf32>
    %cst_11 = arith.constant 1.000000e+00 : f32
    %29 = vector.broadcast %cst_11 : f32 to vector<2x128xf32>
    %30 = arith.addf %29, %28 : vector<2x128xf32>
    %31 = arith.divf %29, %30 : vector<2x128xf32>
    %32 = arith.mulf %23, %4 : vector<2x128xf32>
    %33 = arith.mulf %17, %25 : vector<2x128xf32>
    %34 = arith.addf %32, %33 : vector<2x128xf32>
    %35 = math.tanh %34 : vector<2x128xf32>
    %36 = arith.mulf %31, %35 : vector<2x128xf32>
    %37 = arith.truncf %36 : vector<2x128xf32> to vector<2x128xbf16>
    %38 = arith.index_cast %c0_i32_4 : i32 to index
    %c0_12 = arith.constant 0 : index
    %c0_13 = arith.constant 0 : index
    %39 = vector.load %arg3[%38, %c0_12, %c0_13] : memref<8x2x128xbf16, #tpu.memory_space<vmem>>, vector<1x2x128xbf16>
    %40 = vector.shape_cast %39 : vector<1x2x128xbf16> to vector<2x128xbf16>
    %41 = vector.shape_cast %37 : vector<2x128xbf16> to vector<1x2x128xbf16>
    tpu.vector_store %arg3[%38, %c0_12, %c0_13], %41 {strides = array<i32>} : memref<8x2x128xbf16, #tpu.memory_space<vmem>>, vector<1x2x128xbf16>,
    %c1_i32 = arith.constant 1 : i32
    %42 = arith.index_cast %c1_i32 : i32 to index
    %c0_14 = arith.constant 0 : index
    %c0_15 = arith.constant 0 : index
    %43 = vector.load %arg1[%42, %c0_14, %c0_15] : memref<8x2x512xf32, #tpu.memory_space<vmem>>, vector<1x2x512xf32>
    %44 = vector.shape_cast %43 : vector<1x2x512xf32> to vector<2x512xf32>
    %45 = arith.truncf %36 : vector<2x128xf32> to vector<2x128xbf16>
    %c0_16 = arith.constant 0 : index
    %c0_17 = arith.constant 0 : index
    %46 = vector.load %arg2[%c0_16, %c0_17] : memref<128x512xbf16, #tpu.memory_space<vmem>>, vector<128x512xbf16>
    %cst_18 = arith.constant dense<0.000000e+00> : vector<2x512xf32>
    %47 = tpu.matmul %45, %46, %cst_18 {dimension_numbers = #tpu.dot_dimension_numbers<[1], [0], [0], [1], [0, 0, 1, 1], [], []>} : vector<2x128xbf16>, vector<128x512xbf16>, vector<2x512xf32> -> vector<2x512xf32>
    %48 = arith.addf %44, %47 : vector<2x512xf32>
    %49 = vector.extract_strided_slice %48 {offsets = [0, 0], sizes = [2, 128], strides = [1, 1]} : vector<2x512xf32> to vector<2x128xf32>
    %50 = arith.negf %49 : vector<2x128xf32>
    %51 = math.exp %50 : vector<2x128xf32>
    %cst_19 = arith.constant 1.000000e+00 : f32
    %52 = vector.broadcast %cst_19 : f32 to vector<2x128xf32>
    %53 = arith.addf %52, %51 : vector<2x128xf32>
    %54 = arith.divf %52, %53 : vector<2x128xf32>
    %55 = vector.extract_strided_slice %48 {offsets = [0, 128], sizes = [2, 128], strides = [1, 1]} : vector<2x512xf32> to vector<2x128xf32>
    %56 = arith.negf %55 : vector<2x128xf32>
    %57 = math.exp %56 : vector<2x128xf32>
    %cst_20 = arith.constant 1.000000e+00 : f32
    %58 = vector.broadcast %cst_20 : f32 to vector<2x128xf32>
    %59 = arith.addf %58, %57 : vector<2x128xf32>
    %60 = arith.divf %58, %59 : vector<2x128xf32>
    %61 = vector.extract_strided_slice %48 {offsets = [0, 256], sizes = [2, 128], strides = [1, 1]} : vector<2x512xf32> to vector<2x128xf32>
    %62 = math.tanh %61 : vector<2x128xf32>
    %63 = vector.extract_strided_slice %48 {offsets = [0, 384], sizes = [2, 128], strides = [1, 1]} : vector<2x512xf32> to vector<2x128xf32>
    %64 = arith.negf %63 : vector<2x128xf32>
    %65 = math.exp %64 : vector<2x128xf32>
    %cst_21 = arith.constant 1.000000e+00 : f32
    %66 = vector.broadcast %cst_21 : f32 to vector<2x128xf32>
    %67 = arith.addf %66, %65 : vector<2x128xf32>
    %68 = arith.divf %66, %67 : vector<2x128xf32>
    %69 = arith.mulf %60, %34 : vector<2x128xf32>
    %70 = arith.mulf %54, %62 : vector<2x128xf32>
    %71 = arith.addf %69, %70 : vector<2x128xf32>
    %72 = math.tanh %71 : vector<2x128xf32>
    %73 = arith.mulf %68, %72 : vector<2x128xf32>
    %74 = arith.truncf %73 : vector<2x128xf32> to vector<2x128xbf16>
    %75 = arith.index_cast %c1_i32 : i32 to index
    %c0_22 = arith.constant 0 : index
    %c0_23 = arith.constant 0 : index
    %76 = vector.load %arg3[%75, %c0_22, %c0_23] : memref<8x2x128xbf16, #tpu.memory_space<vmem>>, vector<1x2x128xbf16>
    %77 = vector.shape_cast %76 : vector<1x2x128xbf16> to vector<2x128xbf16>
    %78 = vector.shape_cast %74 : vector<2x128xbf16> to vector<1x2x128xbf16>
    tpu.vector_store %arg3[%75, %c0_22, %c0_23], %78 {strides = array<i32>} : memref<8x2x128xbf16, #tpu.memory_space<vmem>>, vector<1x2x128xbf16>,
    %c2_i32 = arith.constant 2 : i32
    %79 = arith.index_cast %c2_i32 : i32 to index
    %c0_24 = arith.constant 0 : index
    %c0_25 = arith.constant 0 : index
    %80 = vector.load %arg1[%79, %c0_24, %c0_25] : memref<8x2x512xf32, #tpu.memory_space<vmem>>, vector<1x2x512xf32>
    %81 = vector.shape_cast %80 : vector<1x2x512xf32> to vector<2x512xf32>
    %82 = arith.truncf %73 : vector<2x128xf32> to vector<2x128xbf16>
    %c0_26 = arith.constant 0 : index
    %c0_27 = arith.constant 0 : index
    %83 = vector.load %arg2[%c0_26, %c0_27] : memref<128x512xbf16, #tpu.memory_space<vmem>>, vector<128x512xbf16>
    %cst_28 = arith.constant dense<0.000000e+00> : vector<2x512xf32>
    %84 = tpu.matmul %82, %83, %cst_28 {dimension_numbers = #tpu.dot_dimension_numbers<[1], [0], [0], [1], [0, 0, 1, 1], [], []>} : vector<2x128xbf16>, vector<128x512xbf16>, vector<2x512xf32> -> vector<2x512xf32>
    %85 = arith.addf %81, %84 : vector<2x512xf32>
    %86 = vector.extract_strided_slice %85 {offsets = [0, 0], sizes = [2, 128], strides = [1, 1]} : vector<2x512xf32> to vector<2x128xf32>
    %87 = arith.negf %86 : vector<2x128xf32>
    %88 = math.exp %87 : vector<2x128xf32>
    %cst_29 = arith.constant 1.000000e+00 : f32
    %89 = vector.broadcast %cst_29 : f32 to vector<2x128xf32>
    %90 = arith.addf %89, %88 : vector<2x128xf32>
    %91 = arith.divf %89, %90 : vector<2x128xf32>
    %92 = vector.extract_strided_slice %85 {offsets = [0, 128], sizes = [2, 128], strides = [1, 1]} : vector<2x512xf32> to vector<2x128xf32>
    %93 = arith.negf %92 : vector<2x128xf32>
    %94 = math.exp %93 : vector<2x128xf32>
    %cst_30 = arith.constant 1.000000e+00 : f32
    %95 = vector.broadcast %cst_30 : f32 to vector<2x128xf32>
    %96 = arith.addf %95, %94 : vector<2x128xf32>
    %97 = arith.divf %95, %96 : vector<2x128xf32>
    %98 = vector.extract_strided_slice %85 {offsets = [0, 256], sizes = [2, 128], strides = [1, 1]} : vector<2x512xf32> to vector<2x128xf32>
    %99 = math.tanh %98 : vector<2x128xf32>
    %100 = vector.extract_strided_slice %85 {offsets = [0, 384], sizes = [2, 128], strides = [1, 1]} : vector<2x512xf32> to vector<2x128xf32>
    %101 = arith.negf %100 : vector<2x128xf32>
    %102 = math.exp %101 : vector<2x128xf32>
    %cst_31 = arith.constant 1.000000e+00 : f32
    %103 = vector.broadcast %cst_31 : f32 to vector<2x128xf32>
    %104 = arith.addf %103, %102 : vector<2x128xf32>
    %105 = arith.divf %103, %104 : vector<2x128xf32>
    %106 = arith.mulf %97, %71 : vector<2x128xf32>
    %107 = arith.mulf %91, %99 : vector<2x128xf32>
    %108 = arith.addf %106, %107 : vector<2x128xf32>
    %109 = math.tanh %108 : vector<2x128xf32>
    %110 = arith.mulf %105, %109 : vector<2x128xf32>
    %111 = arith.truncf %110 : vector<2x128xf32> to vector<2x128xbf16>
    %112 = arith.index_cast %c2_i32 : i32 to index
    %c0_32 = arith.constant 0 : index
    %c0_33 = arith.constant 0 : index
    %113 = vector.load %arg3[%112, %c0_32, %c0_33] : memref<8x2x128xbf16, #tpu.memory_space<vmem>>, vector<1x2x128xbf16>
    %114 = vector.shape_cast %113 : vector<1x2x128xbf16> to vector<2x128xbf16>
    %115 = vector.shape_cast %111 : vector<2x128xbf16> to vector<1x2x128xbf16>
    tpu.vector_store %arg3[%112, %c0_32, %c0_33], %115 {strides = array<i32>} : memref<8x2x128xbf16, #tpu.memory_space<vmem>>, vector<1x2x128xbf16>,
    %c3_i32 = arith.constant 3 : i32
    %116 = arith.index_cast %c3_i32 : i32 to index
    %c0_34 = arith.constant 0 : index
    %c0_35 = arith.constant 0 : index
    %117 = vector.load %arg1[%116, %c0_34, %c0_35] : memref<8x2x512xf32, #tpu.memory_space<vmem>>, vector<1x2x512xf32>
    %118 = vector.shape_cast %117 : vector<1x2x512xf32> to vector<2x512xf32>
    %119 = arith.truncf %110 : vector<2x128xf32> to vector<2x128xbf16>
    %c0_36 = arith.constant 0 : index
    %c0_37 = arith.constant 0 : index
    %120 = vector.load %arg2[%c0_36, %c0_37] : memref<128x512xbf16, #tpu.memory_space<vmem>>, vector<128x512xbf16>
    %cst_38 = arith.constant dense<0.000000e+00> : vector<2x512xf32>
    %121 = tpu.matmul %119, %120, %cst_38 {dimension_numbers = #tpu.dot_dimension_numbers<[1], [0], [0], [1], [0, 0, 1, 1], [], []>} : vector<2x128xbf16>, vector<128x512xbf16>, vector<2x512xf32> -> vector<2x512xf32>
    %122 = arith.addf %118, %121 : vector<2x512xf32>
    %123 = vector.extract_strided_slice %122 {offsets = [0, 0], sizes = [2, 128], strides = [1, 1]} : vector<2x512xf32> to vector<2x128xf32>
    %124 = arith.negf %123 : vector<2x128xf32>
    %125 = math.exp %124 : vector<2x128xf32>
    %cst_39 = arith.constant 1.000000e+00 : f32
    %126 = vector.broadcast %cst_39 : f32 to vector<2x128xf32>
    %127 = arith.addf %126, %125 : vector<2x128xf32>
    %128 = arith.divf %126, %127 : vector<2x128xf32>
    %129 = vector.extract_strided_slice %122 {offsets = [0, 128], sizes = [2, 128], strides = [1, 1]} : vector<2x512xf32> to vector<2x128xf32>
    %130 = arith.negf %129 : vector<2x128xf32>
    %131 = math.exp %130 : vector<2x128xf32>
    %cst_40 = arith.constant 1.000000e+00 : f32
    %132 = vector.broadcast %cst_40 : f32 to vector<2x128xf32>
    %133 = arith.addf %132, %131 : vector<2x128xf32>
    %134 = arith.divf %132, %133 : vector<2x128xf32>
    %135 = vector.extract_strided_slice %122 {offsets = [0, 256], sizes = [2, 128], strides = [1, 1]} : vector<2x512xf32> to vector<2x128xf32>
    %136 = math.tanh %135 : vector<2x128xf32>
    %137 = vector.extract_strided_slice %122 {offsets = [0, 384], sizes = [2, 128], strides = [1, 1]} : vector<2x512xf32> to vector<2x128xf32>
    %138 = arith.negf %137 : vector<2x128xf32>
    %139 = math.exp %138 : vector<2x128xf32>
    %cst_41 = arith.constant 1.000000e+00 : f32
    %140 = vector.broadcast %cst_41 : f32 to vector<2x128xf32>
    %141 = arith.addf %140, %139 : vector<2x128xf32>
    %142 = arith.divf %140, %141 : vector<2x128xf32>
    %143 = arith.mulf %134, %108 : vector<2x128xf32>
    %144 = arith.mulf %128, %136 : vector<2x128xf32>
    %145 = arith.addf %143, %144 : vector<2x128xf32>
    %146 = math.tanh %145 : vector<2x128xf32>
    %147 = arith.mulf %142, %146 : vector<2x128xf32>
    %148 = arith.truncf %147 : vector<2x128xf32> to vector<2x128xbf16>
    %149 = arith.index_cast %c3_i32 : i32 to index
    %c0_42 = arith.constant 0 : index
    %c0_43 = arith.constant 0 : index
    %150 = vector.load %arg3[%149, %c0_42, %c0_43] : memref<8x2x128xbf16, #tpu.memory_space<vmem>>, vector<1x2x128xbf16>
    %151 = vector.shape_cast %150 : vector<1x2x128xbf16> to vector<2x128xbf16>
    %152 = vector.shape_cast %148 : vector<2x128xbf16> to vector<1x2x128xbf16>
    tpu.vector_store %arg3[%149, %c0_42, %c0_43], %152 {strides = array<i32>} : memref<8x2x128xbf16, #tpu.memory_space<vmem>>, vector<1x2x128xbf16>,
    %c4_i32 = arith.constant 4 : i32
    %153 = arith.index_cast %c4_i32 : i32 to index
    %c0_44 = arith.constant 0 : index
    %c0_45 = arith.constant 0 : index
    %154 = vector.load %arg1[%153, %c0_44, %c0_45] : memref<8x2x512xf32, #tpu.memory_space<vmem>>, vector<1x2x512xf32>
    %155 = vector.shape_cast %154 : vector<1x2x512xf32> to vector<2x512xf32>
    %156 = arith.truncf %147 : vector<2x128xf32> to vector<2x128xbf16>
    %c0_46 = arith.constant 0 : index
    %c0_47 = arith.constant 0 : index
    %157 = vector.load %arg2[%c0_46, %c0_47] : memref<128x512xbf16, #tpu.memory_space<vmem>>, vector<128x512xbf16>
    %cst_48 = arith.constant dense<0.000000e+00> : vector<2x512xf32>
    %158 = tpu.matmul %156, %157, %cst_48 {dimension_numbers = #tpu.dot_dimension_numbers<[1], [0], [0], [1], [0, 0, 1, 1], [], []>} : vector<2x128xbf16>, vector<128x512xbf16>, vector<2x512xf32> -> vector<2x512xf32>
    %159 = arith.addf %155, %158 : vector<2x512xf32>
    %160 = vector.extract_strided_slice %159 {offsets = [0, 0], sizes = [2, 128], strides = [1, 1]} : vector<2x512xf32> to vector<2x128xf32>
    %161 = arith.negf %160 : vector<2x128xf32>
    %162 = math.exp %161 : vector<2x128xf32>
    %cst_49 = arith.constant 1.000000e+00 : f32
    %163 = vector.broadcast %cst_49 : f32 to vector<2x128xf32>
    %164 = arith.addf %163, %162 : vector<2x128xf32>
    %165 = arith.divf %163, %164 : vector<2x128xf32>
    %166 = vector.extract_strided_slice %159 {offsets = [0, 128], sizes = [2, 128], strides = [1, 1]} : vector<2x512xf32> to vector<2x128xf32>
    %167 = arith.negf %166 : vector<2x128xf32>
    %168 = math.exp %167 : vector<2x128xf32>
    %cst_50 = arith.constant 1.000000e+00 : f32
    %169 = vector.broadcast %cst_50 : f32 to vector<2x128xf32>
    %170 = arith.addf %169, %168 : vector<2x128xf32>
    %171 = arith.divf %169, %170 : vector<2x128xf32>
    %172 = vector.extract_strided_slice %159 {offsets = [0, 256], sizes = [2, 128], strides = [1, 1]} : vector<2x512xf32> to vector<2x128xf32>
    %173 = math.tanh %172 : vector<2x128xf32>
    %174 = vector.extract_strided_slice %159 {offsets = [0, 384], sizes = [2, 128], strides = [1, 1]} : vector<2x512xf32> to vector<2x128xf32>
    %175 = arith.negf %174 : vector<2x128xf32>
    %176 = math.exp %175 : vector<2x128xf32>
    %cst_51 = arith.constant 1.000000e+00 : f32
    %177 = vector.broadcast %cst_51 : f32 to vector<2x128xf32>
    %178 = arith.addf %177, %176 : vector<2x128xf32>
    %179 = arith.divf %177, %178 : vector<2x128xf32>
    %180 = arith.mulf %171, %145 : vector<2x128xf32>
    %181 = arith.mulf %165, %173 : vector<2x128xf32>
    %182 = arith.addf %180, %181 : vector<2x128xf32>
    %183 = math.tanh %182 : vector<2x128xf32>
    %184 = arith.mulf %179, %183 : vector<2x128xf32>
    %185 = arith.truncf %184 : vector<2x128xf32> to vector<2x128xbf16>
    %186 = arith.index_cast %c4_i32 : i32 to index
    %c0_52 = arith.constant 0 : index
    %c0_53 = arith.constant 0 : index
    %187 = vector.load %arg3[%186, %c0_52, %c0_53] : memref<8x2x128xbf16, #tpu.memory_space<vmem>>, vector<1x2x128xbf16>
    %188 = vector.shape_cast %187 : vector<1x2x128xbf16> to vector<2x128xbf16>
    %189 = vector.shape_cast %185 : vector<2x128xbf16> to vector<1x2x128xbf16>
    tpu.vector_store %arg3[%186, %c0_52, %c0_53], %189 {strides = array<i32>} : memref<8x2x128xbf16, #tpu.memory_space<vmem>>, vector<1x2x128xbf16>,
    %c5_i32 = arith.constant 5 : i32
    %190 = arith.index_cast %c5_i32 : i32 to index
    %c0_54 = arith.constant 0 : index
    %c0_55 = arith.constant 0 : index
    %191 = vector.load %arg1[%190, %c0_54, %c0_55] : memref<8x2x512xf32, #tpu.memory_space<vmem>>, vector<1x2x512xf32>
    %192 = vector.shape_cast %191 : vector<1x2x512xf32> to vector<2x512xf32>
    %193 = arith.truncf %184 : vector<2x128xf32> to vector<2x128xbf16>
    %c0_56 = arith.constant 0 : index
    %c0_57 = arith.constant 0 : index
    %194 = vector.load %arg2[%c0_56, %c0_57] : memref<128x512xbf16, #tpu.memory_space<vmem>>, vector<128x512xbf16>
    %cst_58 = arith.constant dense<0.000000e+00> : vector<2x512xf32>
    %195 = tpu.matmul %193, %194, %cst_58 {dimension_numbers = #tpu.dot_dimension_numbers<[1], [0], [0], [1], [0, 0, 1, 1], [], []>} : vector<2x128xbf16>, vector<128x512xbf16>, vector<2x512xf32> -> vector<2x512xf32>
    %196 = arith.addf %192, %195 : vector<2x512xf32>
    %197 = vector.extract_strided_slice %196 {offsets = [0, 0], sizes = [2, 128], strides = [1, 1]} : vector<2x512xf32> to vector<2x128xf32>
    %198 = arith.negf %197 : vector<2x128xf32>
    %199 = math.exp %198 : vector<2x128xf32>
    %cst_59 = arith.constant 1.000000e+00 : f32
    %200 = vector.broadcast %cst_59 : f32 to vector<2x128xf32>
    %201 = arith.addf %200, %199 : vector<2x128xf32>
    %202 = arith.divf %200, %201 : vector<2x128xf32>
    %203 = vector.extract_strided_slice %196 {offsets = [0, 128], sizes = [2, 128], strides = [1, 1]} : vector<2x512xf32> to vector<2x128xf32>
    %204 = arith.negf %203 : vector<2x128xf32>
    %205 = math.exp %204 : vector<2x128xf32>
    %cst_60 = arith.constant 1.000000e+00 : f32
    %206 = vector.broadcast %cst_60 : f32 to vector<2x128xf32>
    %207 = arith.addf %206, %205 : vector<2x128xf32>
    %208 = arith.divf %206, %207 : vector<2x128xf32>
    %209 = vector.extract_strided_slice %196 {offsets = [0, 256], sizes = [2, 128], strides = [1, 1]} : vector<2x512xf32> to vector<2x128xf32>
    %210 = math.tanh %209 : vector<2x128xf32>
    %211 = vector.extract_strided_slice %196 {offsets = [0, 384], sizes = [2, 128], strides = [1, 1]} : vector<2x512xf32> to vector<2x128xf32>
    %212 = arith.negf %211 : vector<2x128xf32>
    %213 = math.exp %212 : vector<2x128xf32>
    %cst_61 = arith.constant 1.000000e+00 : f32
    %214 = vector.broadcast %cst_61 : f32 to vector<2x128xf32>
    %215 = arith.addf %214, %213 : vector<2x128xf32>
    %216 = arith.divf %214, %215 : vector<2x128xf32>
    %217 = arith.mulf %208, %182 : vector<2x128xf32>
    %218 = arith.mulf %202, %210 : vector<2x128xf32>
    %219 = arith.addf %217, %218 : vector<2x128xf32>
    %220 = math.tanh %219 : vector<2x128xf32>
    %221 = arith.mulf %216, %220 : vector<2x128xf32>
    %222 = arith.truncf %221 : vector<2x128xf32> to vector<2x128xbf16>
    %223 = arith.index_cast %c5_i32 : i32 to index
    %c0_62 = arith.constant 0 : index
    %c0_63 = arith.constant 0 : index
    %224 = vector.load %arg3[%223, %c0_62, %c0_63] : memref<8x2x128xbf16, #tpu.memory_space<vmem>>, vector<1x2x128xbf16>
    %225 = vector.shape_cast %224 : vector<1x2x128xbf16> to vector<2x128xbf16>
    %226 = vector.shape_cast %222 : vector<2x128xbf16> to vector<1x2x128xbf16>
    tpu.vector_store %arg3[%223, %c0_62, %c0_63], %226 {strides = array<i32>} : memref<8x2x128xbf16, #tpu.memory_space<vmem>>, vector<1x2x128xbf16>,
    %c6_i32 = arith.constant 6 : i32
    %227 = arith.index_cast %c6_i32 : i32 to index
    %c0_64 = arith.constant 0 : index
    %c0_65 = arith.constant 0 : index
    %228 = vector.load %arg1[%227, %c0_64, %c0_65] : memref<8x2x512xf32, #tpu.memory_space<vmem>>, vector<1x2x512xf32>
    %229 = vector.shape_cast %228 : vector<1x2x512xf32> to vector<2x512xf32>
    %230 = arith.truncf %221 : vector<2x128xf32> to vector<2x128xbf16>
    %c0_66 = arith.constant 0 : index
    %c0_67 = arith.constant 0 : index
    %231 = vector.load %arg2[%c0_66, %c0_67] : memref<128x512xbf16, #tpu.memory_space<vmem>>, vector<128x512xbf16>
    %cst_68 = arith.constant dense<0.000000e+00> : vector<2x512xf32>
    %232 = tpu.matmul %230, %231, %cst_68 {dimension_numbers = #tpu.dot_dimension_numbers<[1], [0], [0], [1], [0, 0, 1, 1], [], []>} : vector<2x128xbf16>, vector<128x512xbf16>, vector<2x512xf32> -> vector<2x512xf32>
    %233 = arith.addf %229, %232 : vector<2x512xf32>
    %234 = vector.extract_strided_slice %233 {offsets = [0, 0], sizes = [2, 128], strides = [1, 1]} : vector<2x512xf32> to vector<2x128xf32>
    %235 = arith.negf %234 : vector<2x128xf32>
    %236 = math.exp %235 : vector<2x128xf32>
    %cst_69 = arith.constant 1.000000e+00 : f32
    %237 = vector.broadcast %cst_69 : f32 to vector<2x128xf32>
    %238 = arith.addf %237, %236 : vector<2x128xf32>
    %239 = arith.divf %237, %238 : vector<2x128xf32>
    %240 = vector.extract_strided_slice %233 {offsets = [0, 128], sizes = [2, 128], strides = [1, 1]} : vector<2x512xf32> to vector<2x128xf32>
    %241 = arith.negf %240 : vector<2x128xf32>
    %242 = math.exp %241 : vector<2x128xf32>
    %cst_70 = arith.constant 1.000000e+00 : f32
    %243 = vector.broadcast %cst_70 : f32 to vector<2x128xf32>
    %244 = arith.addf %243, %242 : vector<2x128xf32>
    %245 = arith.divf %243, %244 : vector<2x128xf32>
    %246 = vector.extract_strided_slice %233 {offsets = [0, 256], sizes = [2, 128], strides = [1, 1]} : vector<2x512xf32> to vector<2x128xf32>
    %247 = math.tanh %246 : vector<2x128xf32>
    %248 = vector.extract_strided_slice %233 {offsets = [0, 384], sizes = [2, 128], strides = [1, 1]} : vector<2x512xf32> to vector<2x128xf32>
    %249 = arith.negf %248 : vector<2x128xf32>
    %250 = math.exp %249 : vector<2x128xf32>
    %cst_71 = arith.constant 1.000000e+00 : f32
    %251 = vector.broadcast %cst_71 : f32 to vector<2x128xf32>
    %252 = arith.addf %251, %250 : vector<2x128xf32>
    %253 = arith.divf %251, %252 : vector<2x128xf32>
    %254 = arith.mulf %245, %219 : vector<2x128xf32>
    %255 = arith.mulf %239, %247 : vector<2x128xf32>
    %256 = arith.addf %254, %255 : vector<2x128xf32>
    %257 = math.tanh %256 : vector<2x128xf32>
    %258 = arith.mulf %253, %257 : vector<2x128xf32>
    %259 = arith.truncf %258 : vector<2x128xf32> to vector<2x128xbf16>
    %260 = arith.index_cast %c6_i32 : i32 to index
    %c0_72 = arith.constant 0 : index
    %c0_73 = arith.constant 0 : index
    %261 = vector.load %arg3[%260, %c0_72, %c0_73] : memref<8x2x128xbf16, #tpu.memory_space<vmem>>, vector<1x2x128xbf16>
    %262 = vector.shape_cast %261 : vector<1x2x128xbf16> to vector<2x128xbf16>
    %263 = vector.shape_cast %259 : vector<2x128xbf16> to vector<1x2x128xbf16>
    tpu.vector_store %arg3[%260, %c0_72, %c0_73], %263 {strides = array<i32>} : memref<8x2x128xbf16, #tpu.memory_space<vmem>>, vector<1x2x128xbf16>,
    %c7_i32 = arith.constant 7 : i32
    %264 = arith.index_cast %c7_i32 : i32 to index
    %c0_74 = arith.constant 0 : index
    %c0_75 = arith.constant 0 : index
    %265 = vector.load %arg1[%264, %c0_74, %c0_75] : memref<8x2x512xf32, #tpu.memory_space<vmem>>, vector<1x2x512xf32>
    %266 = vector.shape_cast %265 : vector<1x2x512xf32> to vector<2x512xf32>
    %267 = arith.truncf %258 : vector<2x128xf32> to vector<2x128xbf16>
    %c0_76 = arith.constant 0 : index
    %c0_77 = arith.constant 0 : index
    %268 = vector.load %arg2[%c0_76, %c0_77] : memref<128x512xbf16, #tpu.memory_space<vmem>>, vector<128x512xbf16>
    %cst_78 = arith.constant dense<0.000000e+00> : vector<2x512xf32>
    %269 = tpu.matmul %267, %268, %cst_78 {dimension_numbers = #tpu.dot_dimension_numbers<[1], [0], [0], [1], [0, 0, 1, 1], [], []>} : vector<2x128xbf16>, vector<128x512xbf16>, vector<2x512xf32> -> vector<2x512xf32>
    %270 = arith.addf %266, %269 : vector<2x512xf32>
    %271 = vector.extract_strided_slice %270 {offsets = [0, 0], sizes = [2, 128], strides = [1, 1]} : vector<2x512xf32> to vector<2x128xf32>
    %272 = arith.negf %271 : vector<2x128xf32>
    %273 = math.exp %272 : vector<2x128xf32>
    %cst_79 = arith.constant 1.000000e+00 : f32
    %274 = vector.broadcast %cst_79 : f32 to vector<2x128xf32>
    %275 = arith.addf %274, %273 : vector<2x128xf32>
    %276 = arith.divf %274, %275 : vector<2x128xf32>
    %277 = vector.extract_strided_slice %270 {offsets = [0, 128], sizes = [2, 128], strides = [1, 1]} : vector<2x512xf32> to vector<2x128xf32>
    %278 = arith.negf %277 : vector<2x128xf32>
    %279 = math.exp %278 : vector<2x128xf32>
    %cst_80 = arith.constant 1.000000e+00 : f32
    %280 = vector.broadcast %cst_80 : f32 to vector<2x128xf32>
    %281 = arith.addf %280, %279 : vector<2x128xf32>
    %282 = arith.divf %280, %281 : vector<2x128xf32>
    %283 = vector.extract_strided_slice %270 {offsets = [0, 256], sizes = [2, 128], strides = [1, 1]} : vector<2x512xf32> to vector<2x128xf32>
    %284 = math.tanh %283 : vector<2x128xf32>
    %285 = vector.extract_strided_slice %270 {offsets = [0, 384], sizes = [2, 128], strides = [1, 1]} : vector<2x512xf32> to vector<2x128xf32>
    %286 = arith.negf %285 : vector<2x128xf32>
    %287 = math.exp %286 : vector<2x128xf32>
    %cst_81 = arith.constant 1.000000e+00 : f32
    %288 = vector.broadcast %cst_81 : f32 to vector<2x128xf32>
    %289 = arith.addf %288, %287 : vector<2x128xf32>
    %290 = arith.divf %288, %289 : vector<2x128xf32>
    %291 = arith.mulf %282, %256 : vector<2x128xf32>
    %292 = arith.mulf %276, %284 : vector<2x128xf32>
    %293 = arith.addf %291, %292 : vector<2x128xf32>
    %294 = math.tanh %293 : vector<2x128xf32>
    %295 = arith.mulf %290, %294 : vector<2x128xf32>
    %296 = arith.truncf %295 : vector<2x128xf32> to vector<2x128xbf16>
    %297 = arith.index_cast %c7_i32 : i32 to index
    %c0_82 = arith.constant 0 : index
    %c0_83 = arith.constant 0 : index
    %298 = vector.load %arg3[%297, %c0_82, %c0_83] : memref<8x2x128xbf16, #tpu.memory_space<vmem>>, vector<1x2x128xbf16>
    %299 = vector.shape_cast %298 : vector<1x2x128xbf16> to vector<2x128xbf16>
    %300 = vector.shape_cast %296 : vector<2x128xbf16> to vector<1x2x128xbf16>
    tpu.vector_store %arg3[%297, %c0_82, %c0_83], %300 {strides = array<i32>} : memref<8x2x128xbf16, #tpu.memory_space<vmem>>, vector<1x2x128xbf16>,
    %c8_i32 = arith.constant 8 : i32
    %c0_84 = arith.constant 0 : index
    %c0_85 = arith.constant 0 : index
    %301 = vector.load %arg4[%c0_84, %c0_85] : memref<2x128xf32, #tpu.memory_space<vmem>>, vector<2x128xf32>
    tpu.vector_store %arg4[%c0_84, %c0_85], %295 {strides = array<i32>} : memref<2x128xf32, #tpu.memory_space<vmem>>, vector<2x128xf32>,
    %c0_86 = arith.constant 0 : index
    %c0_87 = arith.constant 0 : index
    %302 = vector.load %arg5[%c0_86, %c0_87] : memref<2x128xf32, #tpu.memory_space<vmem>>, vector<2x128xf32>
    tpu.vector_store %arg5[%c0_86, %c0_87], %293 {strides = array<i32>} : memref<2x128xf32, #tpu.memory_space<vmem>>, vector<2x128xf32>,
    return
  }
  func.func @transform_0(%arg0: i32) -> (i32, i32, i32) {
    %c0_i32 = arith.constant 0 : i32
    %c0_i32_0 = arith.constant 0 : i32
    %c0_i32_1 = arith.constant 0 : i32
    return %arg0, %c0_i32, %c0_i32_0 : i32, i32, i32
  }
  func.func @transform_1(%arg0: i32) -> (i32, i32) {
    %c0_i32 = arith.constant 0 : i32
    %c0_i32_0 = arith.constant 0 : i32
    %c0_i32_1 = arith.constant 0 : i32
    return %c0_i32, %c0_i32_0 : i32, i32
  }
  func.func @transform_2(%arg0: i32) -> (i32, i32, i32) {
    %c0_i32 = arith.constant 0 : i32
    %c0_i32_0 = arith.constant 0 : i32
    %c0_i32_1 = arith.constant 0 : i32
    return %arg0, %c0_i32, %c0_i32_0 : i32, i32, i32
  }
}

module attributes {stable_mosaic.version = 11 : i64} {
  func.func @_input_proj_kernel(%arg0: i32, %arg1: memref<16x128xbf16, #tpu.memory_space<vmem>>, %arg2: memref<128x512xbf16, #tpu.memory_space<vmem>>, %arg3: memref<1x512xf32, #tpu.memory_space<vmem>>, %arg4: memref<16x512xf32, #tpu.memory_space<vmem>>) attributes {dimension_semantics = [#tpu.dimension_semantics<parallel>], iteration_bounds = array<i64: 1>, scalar_prefetch = 0 : i64, scratch_operands = 0 : i64, tpu.core_type = #tpu.core_type<tc>, window_params = [{transform_indices = @transform_0, window_bounds = array<i64: 16, 128>}, {pipeline_mode = #tpu.pipeline_mode<synchronous>, transform_indices = @transform_1, window_bounds = array<i64: 128, 512>}, {pipeline_mode = #tpu.pipeline_mode<synchronous>, transform_indices = @transform_2, window_bounds = array<i64: 1, 512>}, {transform_indices = @transform_3, window_bounds = array<i64: 16, 512>}]} {
    %c0 = arith.constant 0 : index
    %c0_0 = arith.constant 0 : index
    %0 = vector.load %arg1[%c0, %c0_0] : memref<16x128xbf16, #tpu.memory_space<vmem>>, vector<16x128xbf16>
    %c0_1 = arith.constant 0 : index
    %c0_2 = arith.constant 0 : index
    %1 = vector.load %arg2[%c0_1, %c0_2] : memref<128x512xbf16, #tpu.memory_space<vmem>>, vector<128x512xbf16>
    %cst = arith.constant dense<0.000000e+00> : vector<16x512xf32>
    %2 = tpu.matmul %0, %1, %cst {dimension_numbers = #tpu.dot_dimension_numbers<[1], [0], [0], [1], [0, 0, 1, 1], [], []>} : vector<16x128xbf16>, vector<128x512xbf16>, vector<16x512xf32> -> vector<16x512xf32>
    %c0_3 = arith.constant 0 : index
    %c0_4 = arith.constant 0 : index
    %3 = vector.load %arg3[%c0_3, %c0_4] : memref<1x512xf32, #tpu.memory_space<vmem>>, vector<1x512xf32>
    %4 = vector.broadcast %3 : vector<1x512xf32> to vector<16x512xf32>
    %5 = arith.addf %2, %4 : vector<16x512xf32>
    %c0_5 = arith.constant 0 : index
    %c0_6 = arith.constant 0 : index
    %6 = vector.load %arg4[%c0_5, %c0_6] : memref<16x512xf32, #tpu.memory_space<vmem>>, vector<16x512xf32>
    tpu.vector_store %arg4[%c0_5, %c0_6], %5 {strides = array<i32>} : memref<16x512xf32, #tpu.memory_space<vmem>>, vector<16x512xf32>,
    return
  }
  func.func @transform_0(%arg0: i32) -> (i32, i32) {
    %c0_i32 = arith.constant 0 : i32
    %c0_i32_0 = arith.constant 0 : i32
    return %arg0, %c0_i32 : i32, i32
  }
  func.func @transform_1(%arg0: i32) -> (i32, i32) {
    %c0_i32 = arith.constant 0 : i32
    %c0_i32_0 = arith.constant 0 : i32
    %c0_i32_1 = arith.constant 0 : i32
    return %c0_i32, %c0_i32_0 : i32, i32
  }
  func.func @transform_2(%arg0: i32) -> (i32, i32) {
    %c0_i32 = arith.constant 0 : i32
    %c0_i32_0 = arith.constant 0 : i32
    %c0_i32_1 = arith.constant 0 : i32
    return %c0_i32, %c0_i32_0 : i32, i32
  }
  func.func @transform_3(%arg0: i32) -> (i32, i32) {
    %c0_i32 = arith.constant 0 : i32
    %c0_i32_0 = arith.constant 0 : i32
    return %arg0, %c0_i32 : i32, i32
  }
}

module attributes {stable_mosaic.version = 11 : i64} {
  func.func @_lstm_recurrent_last_kernel(%arg0: i32, %arg1: memref<8x2x512xf32, #tpu.memory_space<vmem>>, %arg2: memref<128x512xbf16, #tpu.memory_space<vmem>>, %arg3: memref<128x12xbf16, #tpu.memory_space<vmem>>, %arg4: memref<1x12xf32, #tpu.memory_space<vmem>>, %arg5: memref<2x12xf32, #tpu.memory_space<vmem>>, %arg6: memref<2x128xf32, #tpu.memory_space<vmem>>, %arg7: memref<2x128xf32, #tpu.memory_space<vmem>>) attributes {dimension_semantics = [#tpu.dimension_semantics<arbitrary>], iteration_bounds = array<i64: 1>, scalar_prefetch = 0 : i64, scratch_operands = 2 : i64, tpu.core_type = #tpu.core_type<tc>, window_params = [{transform_indices = @transform_0, window_bounds = array<i64: 8, 2, 512>}, {pipeline_mode = #tpu.pipeline_mode<synchronous>, transform_indices = @transform_1, window_bounds = array<i64: 128, 512>}, {pipeline_mode = #tpu.pipeline_mode<synchronous>, transform_indices = @transform_2, window_bounds = array<i64: 128, 12>}, {pipeline_mode = #tpu.pipeline_mode<synchronous>, transform_indices = @transform_3, window_bounds = array<i64: 1, 12>}, {pipeline_mode = #tpu.pipeline_mode<synchronous>, transform_indices = @transform_4, window_bounds = array<i64: 2, 12>}]} {
    %c0_i32 = arith.constant 0 : i32
    %0 = arith.cmpi eq, %arg0, %c0_i32 : i32
    %1 = arith.extui %0 : i1 to i32
    %c0_i32_0 = arith.constant 0 : i32
    %2 = arith.cmpi ne, %1, %c0_i32_0 : i32
    scf.if %2 {
      %cst_74 = arith.constant 0.000000e+00 : f32
      %266 = vector.broadcast %cst_74 : f32 to vector<2x128xf32>
      %c0_75 = arith.constant 0 : index
      %c0_76 = arith.constant 0 : index
      %267 = vector.load %arg6[%c0_75, %c0_76] : memref<2x128xf32, #tpu.memory_space<vmem>>, vector<2x128xf32>
      tpu.vector_store %arg6[%c0_75, %c0_76], %266 {strides = array<i32>} : memref<2x128xf32, #tpu.memory_space<vmem>>, vector<2x128xf32>,
      %cst_77 = arith.constant 0.000000e+00 : f32
      %268 = vector.broadcast %cst_77 : f32 to vector<2x128xf32>
      %c0_78 = arith.constant 0 : index
      %c0_79 = arith.constant 0 : index
      %269 = vector.load %arg7[%c0_78, %c0_79] : memref<2x128xf32, #tpu.memory_space<vmem>>, vector<2x128xf32>
      tpu.vector_store %arg7[%c0_78, %c0_79], %268 {strides = array<i32>} : memref<2x128xf32, #tpu.memory_space<vmem>>, vector<2x128xf32>,
    } else {
    }
    %c0 = arith.constant 0 : index
    %c0_1 = arith.constant 0 : index
    %3 = vector.load %arg6[%c0, %c0_1] : memref<2x128xf32, #tpu.memory_space<vmem>>, vector<2x128xf32>
    %c0_2 = arith.constant 0 : index
    %c0_3 = arith.constant 0 : index
    %4 = vector.load %arg7[%c0_2, %c0_3] : memref<2x128xf32, #tpu.memory_space<vmem>>, vector<2x128xf32>
    %c0_i32_4 = arith.constant 0 : i32
    %5 = arith.index_cast %c0_i32_4 : i32 to index
    %c0_5 = arith.constant 0 : index
    %c0_6 = arith.constant 0 : index
    %6 = vector.load %arg1[%5, %c0_5, %c0_6] : memref<8x2x512xf32, #tpu.memory_space<vmem>>, vector<1x2x512xf32>
    %7 = vector.shape_cast %6 : vector<1x2x512xf32> to vector<2x512xf32>
    %8 = arith.truncf %3 : vector<2x128xf32> to vector<2x128xbf16>
    %c0_7 = arith.constant 0 : index
    %c0_8 = arith.constant 0 : index
    %9 = vector.load %arg2[%c0_7, %c0_8] : memref<128x512xbf16, #tpu.memory_space<vmem>>, vector<128x512xbf16>
    %cst = arith.constant dense<0.000000e+00> : vector<2x512xf32>
    %10 = tpu.matmul %8, %9, %cst {dimension_numbers = #tpu.dot_dimension_numbers<[1], [0], [0], [1], [0, 0, 1, 1], [], []>} : vector<2x128xbf16>, vector<128x512xbf16>, vector<2x512xf32> -> vector<2x512xf32>
    %11 = arith.addf %7, %10 : vector<2x512xf32>
    %12 = vector.extract_strided_slice %11 {offsets = [0, 0], sizes = [2, 128], strides = [1, 1]} : vector<2x512xf32> to vector<2x128xf32>
    %13 = arith.negf %12 : vector<2x128xf32>
    %14 = math.exp %13 : vector<2x128xf32>
    %cst_9 = arith.constant 1.000000e+00 : f32
    %15 = vector.broadcast %cst_9 : f32 to vector<2x128xf32>
    %16 = arith.addf %15, %14 : vector<2x128xf32>
    %17 = arith.divf %15, %16 : vector<2x128xf32>
    %18 = vector.extract_strided_slice %11 {offsets = [0, 128], sizes = [2, 128], strides = [1, 1]} : vector<2x512xf32> to vector<2x128xf32>
    %19 = arith.negf %18 : vector<2x128xf32>
    %20 = math.exp %19 : vector<2x128xf32>
    %cst_10 = arith.constant 1.000000e+00 : f32
    %21 = vector.broadcast %cst_10 : f32 to vector<2x128xf32>
    %22 = arith.addf %21, %20 : vector<2x128xf32>
    %23 = arith.divf %21, %22 : vector<2x128xf32>
    %24 = vector.extract_strided_slice %11 {offsets = [0, 256], sizes = [2, 128], strides = [1, 1]} : vector<2x512xf32> to vector<2x128xf32>
    %25 = math.tanh %24 : vector<2x128xf32>
    %26 = vector.extract_strided_slice %11 {offsets = [0, 384], sizes = [2, 128], strides = [1, 1]} : vector<2x512xf32> to vector<2x128xf32>
    %27 = arith.negf %26 : vector<2x128xf32>
    %28 = math.exp %27 : vector<2x128xf32>
    %cst_11 = arith.constant 1.000000e+00 : f32
    %29 = vector.broadcast %cst_11 : f32 to vector<2x128xf32>
    %30 = arith.addf %29, %28 : vector<2x128xf32>
    %31 = arith.divf %29, %30 : vector<2x128xf32>
    %32 = arith.mulf %23, %4 : vector<2x128xf32>
    %33 = arith.mulf %17, %25 : vector<2x128xf32>
    %34 = arith.addf %32, %33 : vector<2x128xf32>
    %35 = math.tanh %34 : vector<2x128xf32>
    %36 = arith.mulf %31, %35 : vector<2x128xf32>
    %c1_i32 = arith.constant 1 : i32
    %37 = arith.index_cast %c1_i32 : i32 to index
    %c0_12 = arith.constant 0 : index
    %c0_13 = arith.constant 0 : index
    %38 = vector.load %arg1[%37, %c0_12, %c0_13] : memref<8x2x512xf32, #tpu.memory_space<vmem>>, vector<1x2x512xf32>
    %39 = vector.shape_cast %38 : vector<1x2x512xf32> to vector<2x512xf32>
    %40 = arith.truncf %36 : vector<2x128xf32> to vector<2x128xbf16>
    %c0_14 = arith.constant 0 : index
    %c0_15 = arith.constant 0 : index
    %41 = vector.load %arg2[%c0_14, %c0_15] : memref<128x512xbf16, #tpu.memory_space<vmem>>, vector<128x512xbf16>
    %cst_16 = arith.constant dense<0.000000e+00> : vector<2x512xf32>
    %42 = tpu.matmul %40, %41, %cst_16 {dimension_numbers = #tpu.dot_dimension_numbers<[1], [0], [0], [1], [0, 0, 1, 1], [], []>} : vector<2x128xbf16>, vector<128x512xbf16>, vector<2x512xf32> -> vector<2x512xf32>
    %43 = arith.addf %39, %42 : vector<2x512xf32>
    %44 = vector.extract_strided_slice %43 {offsets = [0, 0], sizes = [2, 128], strides = [1, 1]} : vector<2x512xf32> to vector<2x128xf32>
    %45 = arith.negf %44 : vector<2x128xf32>
    %46 = math.exp %45 : vector<2x128xf32>
    %cst_17 = arith.constant 1.000000e+00 : f32
    %47 = vector.broadcast %cst_17 : f32 to vector<2x128xf32>
    %48 = arith.addf %47, %46 : vector<2x128xf32>
    %49 = arith.divf %47, %48 : vector<2x128xf32>
    %50 = vector.extract_strided_slice %43 {offsets = [0, 128], sizes = [2, 128], strides = [1, 1]} : vector<2x512xf32> to vector<2x128xf32>
    %51 = arith.negf %50 : vector<2x128xf32>
    %52 = math.exp %51 : vector<2x128xf32>
    %cst_18 = arith.constant 1.000000e+00 : f32
    %53 = vector.broadcast %cst_18 : f32 to vector<2x128xf32>
    %54 = arith.addf %53, %52 : vector<2x128xf32>
    %55 = arith.divf %53, %54 : vector<2x128xf32>
    %56 = vector.extract_strided_slice %43 {offsets = [0, 256], sizes = [2, 128], strides = [1, 1]} : vector<2x512xf32> to vector<2x128xf32>
    %57 = math.tanh %56 : vector<2x128xf32>
    %58 = vector.extract_strided_slice %43 {offsets = [0, 384], sizes = [2, 128], strides = [1, 1]} : vector<2x512xf32> to vector<2x128xf32>
    %59 = arith.negf %58 : vector<2x128xf32>
    %60 = math.exp %59 : vector<2x128xf32>
    %cst_19 = arith.constant 1.000000e+00 : f32
    %61 = vector.broadcast %cst_19 : f32 to vector<2x128xf32>
    %62 = arith.addf %61, %60 : vector<2x128xf32>
    %63 = arith.divf %61, %62 : vector<2x128xf32>
    %64 = arith.mulf %55, %34 : vector<2x128xf32>
    %65 = arith.mulf %49, %57 : vector<2x128xf32>
    %66 = arith.addf %64, %65 : vector<2x128xf32>
    %67 = math.tanh %66 : vector<2x128xf32>
    %68 = arith.mulf %63, %67 : vector<2x128xf32>
    %c2_i32 = arith.constant 2 : i32
    %69 = arith.index_cast %c2_i32 : i32 to index
    %c0_20 = arith.constant 0 : index
    %c0_21 = arith.constant 0 : index
    %70 = vector.load %arg1[%69, %c0_20, %c0_21] : memref<8x2x512xf32, #tpu.memory_space<vmem>>, vector<1x2x512xf32>
    %71 = vector.shape_cast %70 : vector<1x2x512xf32> to vector<2x512xf32>
    %72 = arith.truncf %68 : vector<2x128xf32> to vector<2x128xbf16>
    %c0_22 = arith.constant 0 : index
    %c0_23 = arith.constant 0 : index
    %73 = vector.load %arg2[%c0_22, %c0_23] : memref<128x512xbf16, #tpu.memory_space<vmem>>, vector<128x512xbf16>
    %cst_24 = arith.constant dense<0.000000e+00> : vector<2x512xf32>
    %74 = tpu.matmul %72, %73, %cst_24 {dimension_numbers = #tpu.dot_dimension_numbers<[1], [0], [0], [1], [0, 0, 1, 1], [], []>} : vector<2x128xbf16>, vector<128x512xbf16>, vector<2x512xf32> -> vector<2x512xf32>
    %75 = arith.addf %71, %74 : vector<2x512xf32>
    %76 = vector.extract_strided_slice %75 {offsets = [0, 0], sizes = [2, 128], strides = [1, 1]} : vector<2x512xf32> to vector<2x128xf32>
    %77 = arith.negf %76 : vector<2x128xf32>
    %78 = math.exp %77 : vector<2x128xf32>
    %cst_25 = arith.constant 1.000000e+00 : f32
    %79 = vector.broadcast %cst_25 : f32 to vector<2x128xf32>
    %80 = arith.addf %79, %78 : vector<2x128xf32>
    %81 = arith.divf %79, %80 : vector<2x128xf32>
    %82 = vector.extract_strided_slice %75 {offsets = [0, 128], sizes = [2, 128], strides = [1, 1]} : vector<2x512xf32> to vector<2x128xf32>
    %83 = arith.negf %82 : vector<2x128xf32>
    %84 = math.exp %83 : vector<2x128xf32>
    %cst_26 = arith.constant 1.000000e+00 : f32
    %85 = vector.broadcast %cst_26 : f32 to vector<2x128xf32>
    %86 = arith.addf %85, %84 : vector<2x128xf32>
    %87 = arith.divf %85, %86 : vector<2x128xf32>
    %88 = vector.extract_strided_slice %75 {offsets = [0, 256], sizes = [2, 128], strides = [1, 1]} : vector<2x512xf32> to vector<2x128xf32>
    %89 = math.tanh %88 : vector<2x128xf32>
    %90 = vector.extract_strided_slice %75 {offsets = [0, 384], sizes = [2, 128], strides = [1, 1]} : vector<2x512xf32> to vector<2x128xf32>
    %91 = arith.negf %90 : vector<2x128xf32>
    %92 = math.exp %91 : vector<2x128xf32>
    %cst_27 = arith.constant 1.000000e+00 : f32
    %93 = vector.broadcast %cst_27 : f32 to vector<2x128xf32>
    %94 = arith.addf %93, %92 : vector<2x128xf32>
    %95 = arith.divf %93, %94 : vector<2x128xf32>
    %96 = arith.mulf %87, %66 : vector<2x128xf32>
    %97 = arith.mulf %81, %89 : vector<2x128xf32>
    %98 = arith.addf %96, %97 : vector<2x128xf32>
    %99 = math.tanh %98 : vector<2x128xf32>
    %100 = arith.mulf %95, %99 : vector<2x128xf32>
    %c3_i32 = arith.constant 3 : i32
    %101 = arith.index_cast %c3_i32 : i32 to index
    %c0_28 = arith.constant 0 : index
    %c0_29 = arith.constant 0 : index
    %102 = vector.load %arg1[%101, %c0_28, %c0_29] : memref<8x2x512xf32, #tpu.memory_space<vmem>>, vector<1x2x512xf32>
    %103 = vector.shape_cast %102 : vector<1x2x512xf32> to vector<2x512xf32>
    %104 = arith.truncf %100 : vector<2x128xf32> to vector<2x128xbf16>
    %c0_30 = arith.constant 0 : index
    %c0_31 = arith.constant 0 : index
    %105 = vector.load %arg2[%c0_30, %c0_31] : memref<128x512xbf16, #tpu.memory_space<vmem>>, vector<128x512xbf16>
    %cst_32 = arith.constant dense<0.000000e+00> : vector<2x512xf32>
    %106 = tpu.matmul %104, %105, %cst_32 {dimension_numbers = #tpu.dot_dimension_numbers<[1], [0], [0], [1], [0, 0, 1, 1], [], []>} : vector<2x128xbf16>, vector<128x512xbf16>, vector<2x512xf32> -> vector<2x512xf32>
    %107 = arith.addf %103, %106 : vector<2x512xf32>
    %108 = vector.extract_strided_slice %107 {offsets = [0, 0], sizes = [2, 128], strides = [1, 1]} : vector<2x512xf32> to vector<2x128xf32>
    %109 = arith.negf %108 : vector<2x128xf32>
    %110 = math.exp %109 : vector<2x128xf32>
    %cst_33 = arith.constant 1.000000e+00 : f32
    %111 = vector.broadcast %cst_33 : f32 to vector<2x128xf32>
    %112 = arith.addf %111, %110 : vector<2x128xf32>
    %113 = arith.divf %111, %112 : vector<2x128xf32>
    %114 = vector.extract_strided_slice %107 {offsets = [0, 128], sizes = [2, 128], strides = [1, 1]} : vector<2x512xf32> to vector<2x128xf32>
    %115 = arith.negf %114 : vector<2x128xf32>
    %116 = math.exp %115 : vector<2x128xf32>
    %cst_34 = arith.constant 1.000000e+00 : f32
    %117 = vector.broadcast %cst_34 : f32 to vector<2x128xf32>
    %118 = arith.addf %117, %116 : vector<2x128xf32>
    %119 = arith.divf %117, %118 : vector<2x128xf32>
    %120 = vector.extract_strided_slice %107 {offsets = [0, 256], sizes = [2, 128], strides = [1, 1]} : vector<2x512xf32> to vector<2x128xf32>
    %121 = math.tanh %120 : vector<2x128xf32>
    %122 = vector.extract_strided_slice %107 {offsets = [0, 384], sizes = [2, 128], strides = [1, 1]} : vector<2x512xf32> to vector<2x128xf32>
    %123 = arith.negf %122 : vector<2x128xf32>
    %124 = math.exp %123 : vector<2x128xf32>
    %cst_35 = arith.constant 1.000000e+00 : f32
    %125 = vector.broadcast %cst_35 : f32 to vector<2x128xf32>
    %126 = arith.addf %125, %124 : vector<2x128xf32>
    %127 = arith.divf %125, %126 : vector<2x128xf32>
    %128 = arith.mulf %119, %98 : vector<2x128xf32>
    %129 = arith.mulf %113, %121 : vector<2x128xf32>
    %130 = arith.addf %128, %129 : vector<2x128xf32>
    %131 = math.tanh %130 : vector<2x128xf32>
    %132 = arith.mulf %127, %131 : vector<2x128xf32>
    %c4_i32 = arith.constant 4 : i32
    %133 = arith.index_cast %c4_i32 : i32 to index
    %c0_36 = arith.constant 0 : index
    %c0_37 = arith.constant 0 : index
    %134 = vector.load %arg1[%133, %c0_36, %c0_37] : memref<8x2x512xf32, #tpu.memory_space<vmem>>, vector<1x2x512xf32>
    %135 = vector.shape_cast %134 : vector<1x2x512xf32> to vector<2x512xf32>
    %136 = arith.truncf %132 : vector<2x128xf32> to vector<2x128xbf16>
    %c0_38 = arith.constant 0 : index
    %c0_39 = arith.constant 0 : index
    %137 = vector.load %arg2[%c0_38, %c0_39] : memref<128x512xbf16, #tpu.memory_space<vmem>>, vector<128x512xbf16>
    %cst_40 = arith.constant dense<0.000000e+00> : vector<2x512xf32>
    %138 = tpu.matmul %136, %137, %cst_40 {dimension_numbers = #tpu.dot_dimension_numbers<[1], [0], [0], [1], [0, 0, 1, 1], [], []>} : vector<2x128xbf16>, vector<128x512xbf16>, vector<2x512xf32> -> vector<2x512xf32>
    %139 = arith.addf %135, %138 : vector<2x512xf32>
    %140 = vector.extract_strided_slice %139 {offsets = [0, 0], sizes = [2, 128], strides = [1, 1]} : vector<2x512xf32> to vector<2x128xf32>
    %141 = arith.negf %140 : vector<2x128xf32>
    %142 = math.exp %141 : vector<2x128xf32>
    %cst_41 = arith.constant 1.000000e+00 : f32
    %143 = vector.broadcast %cst_41 : f32 to vector<2x128xf32>
    %144 = arith.addf %143, %142 : vector<2x128xf32>
    %145 = arith.divf %143, %144 : vector<2x128xf32>
    %146 = vector.extract_strided_slice %139 {offsets = [0, 128], sizes = [2, 128], strides = [1, 1]} : vector<2x512xf32> to vector<2x128xf32>
    %147 = arith.negf %146 : vector<2x128xf32>
    %148 = math.exp %147 : vector<2x128xf32>
    %cst_42 = arith.constant 1.000000e+00 : f32
    %149 = vector.broadcast %cst_42 : f32 to vector<2x128xf32>
    %150 = arith.addf %149, %148 : vector<2x128xf32>
    %151 = arith.divf %149, %150 : vector<2x128xf32>
    %152 = vector.extract_strided_slice %139 {offsets = [0, 256], sizes = [2, 128], strides = [1, 1]} : vector<2x512xf32> to vector<2x128xf32>
    %153 = math.tanh %152 : vector<2x128xf32>
    %154 = vector.extract_strided_slice %139 {offsets = [0, 384], sizes = [2, 128], strides = [1, 1]} : vector<2x512xf32> to vector<2x128xf32>
    %155 = arith.negf %154 : vector<2x128xf32>
    %156 = math.exp %155 : vector<2x128xf32>
    %cst_43 = arith.constant 1.000000e+00 : f32
    %157 = vector.broadcast %cst_43 : f32 to vector<2x128xf32>
    %158 = arith.addf %157, %156 : vector<2x128xf32>
    %159 = arith.divf %157, %158 : vector<2x128xf32>
    %160 = arith.mulf %151, %130 : vector<2x128xf32>
    %161 = arith.mulf %145, %153 : vector<2x128xf32>
    %162 = arith.addf %160, %161 : vector<2x128xf32>
    %163 = math.tanh %162 : vector<2x128xf32>
    %164 = arith.mulf %159, %163 : vector<2x128xf32>
    %c5_i32 = arith.constant 5 : i32
    %165 = arith.index_cast %c5_i32 : i32 to index
    %c0_44 = arith.constant 0 : index
    %c0_45 = arith.constant 0 : index
    %166 = vector.load %arg1[%165, %c0_44, %c0_45] : memref<8x2x512xf32, #tpu.memory_space<vmem>>, vector<1x2x512xf32>
    %167 = vector.shape_cast %166 : vector<1x2x512xf32> to vector<2x512xf32>
    %168 = arith.truncf %164 : vector<2x128xf32> to vector<2x128xbf16>
    %c0_46 = arith.constant 0 : index
    %c0_47 = arith.constant 0 : index
    %169 = vector.load %arg2[%c0_46, %c0_47] : memref<128x512xbf16, #tpu.memory_space<vmem>>, vector<128x512xbf16>
    %cst_48 = arith.constant dense<0.000000e+00> : vector<2x512xf32>
    %170 = tpu.matmul %168, %169, %cst_48 {dimension_numbers = #tpu.dot_dimension_numbers<[1], [0], [0], [1], [0, 0, 1, 1], [], []>} : vector<2x128xbf16>, vector<128x512xbf16>, vector<2x512xf32> -> vector<2x512xf32>
    %171 = arith.addf %167, %170 : vector<2x512xf32>
    %172 = vector.extract_strided_slice %171 {offsets = [0, 0], sizes = [2, 128], strides = [1, 1]} : vector<2x512xf32> to vector<2x128xf32>
    %173 = arith.negf %172 : vector<2x128xf32>
    %174 = math.exp %173 : vector<2x128xf32>
    %cst_49 = arith.constant 1.000000e+00 : f32
    %175 = vector.broadcast %cst_49 : f32 to vector<2x128xf32>
    %176 = arith.addf %175, %174 : vector<2x128xf32>
    %177 = arith.divf %175, %176 : vector<2x128xf32>
    %178 = vector.extract_strided_slice %171 {offsets = [0, 128], sizes = [2, 128], strides = [1, 1]} : vector<2x512xf32> to vector<2x128xf32>
    %179 = arith.negf %178 : vector<2x128xf32>
    %180 = math.exp %179 : vector<2x128xf32>
    %cst_50 = arith.constant 1.000000e+00 : f32
    %181 = vector.broadcast %cst_50 : f32 to vector<2x128xf32>
    %182 = arith.addf %181, %180 : vector<2x128xf32>
    %183 = arith.divf %181, %182 : vector<2x128xf32>
    %184 = vector.extract_strided_slice %171 {offsets = [0, 256], sizes = [2, 128], strides = [1, 1]} : vector<2x512xf32> to vector<2x128xf32>
    %185 = math.tanh %184 : vector<2x128xf32>
    %186 = vector.extract_strided_slice %171 {offsets = [0, 384], sizes = [2, 128], strides = [1, 1]} : vector<2x512xf32> to vector<2x128xf32>
    %187 = arith.negf %186 : vector<2x128xf32>
    %188 = math.exp %187 : vector<2x128xf32>
    %cst_51 = arith.constant 1.000000e+00 : f32
    %189 = vector.broadcast %cst_51 : f32 to vector<2x128xf32>
    %190 = arith.addf %189, %188 : vector<2x128xf32>
    %191 = arith.divf %189, %190 : vector<2x128xf32>
    %192 = arith.mulf %183, %162 : vector<2x128xf32>
    %193 = arith.mulf %177, %185 : vector<2x128xf32>
    %194 = arith.addf %192, %193 : vector<2x128xf32>
    %195 = math.tanh %194 : vector<2x128xf32>
    %196 = arith.mulf %191, %195 : vector<2x128xf32>
    %c6_i32 = arith.constant 6 : i32
    %197 = arith.index_cast %c6_i32 : i32 to index
    %c0_52 = arith.constant 0 : index
    %c0_53 = arith.constant 0 : index
    %198 = vector.load %arg1[%197, %c0_52, %c0_53] : memref<8x2x512xf32, #tpu.memory_space<vmem>>, vector<1x2x512xf32>
    %199 = vector.shape_cast %198 : vector<1x2x512xf32> to vector<2x512xf32>
    %200 = arith.truncf %196 : vector<2x128xf32> to vector<2x128xbf16>
    %c0_54 = arith.constant 0 : index
    %c0_55 = arith.constant 0 : index
    %201 = vector.load %arg2[%c0_54, %c0_55] : memref<128x512xbf16, #tpu.memory_space<vmem>>, vector<128x512xbf16>
    %cst_56 = arith.constant dense<0.000000e+00> : vector<2x512xf32>
    %202 = tpu.matmul %200, %201, %cst_56 {dimension_numbers = #tpu.dot_dimension_numbers<[1], [0], [0], [1], [0, 0, 1, 1], [], []>} : vector<2x128xbf16>, vector<128x512xbf16>, vector<2x512xf32> -> vector<2x512xf32>
    %203 = arith.addf %199, %202 : vector<2x512xf32>
    %204 = vector.extract_strided_slice %203 {offsets = [0, 0], sizes = [2, 128], strides = [1, 1]} : vector<2x512xf32> to vector<2x128xf32>
    %205 = arith.negf %204 : vector<2x128xf32>
    %206 = math.exp %205 : vector<2x128xf32>
    %cst_57 = arith.constant 1.000000e+00 : f32
    %207 = vector.broadcast %cst_57 : f32 to vector<2x128xf32>
    %208 = arith.addf %207, %206 : vector<2x128xf32>
    %209 = arith.divf %207, %208 : vector<2x128xf32>
    %210 = vector.extract_strided_slice %203 {offsets = [0, 128], sizes = [2, 128], strides = [1, 1]} : vector<2x512xf32> to vector<2x128xf32>
    %211 = arith.negf %210 : vector<2x128xf32>
    %212 = math.exp %211 : vector<2x128xf32>
    %cst_58 = arith.constant 1.000000e+00 : f32
    %213 = vector.broadcast %cst_58 : f32 to vector<2x128xf32>
    %214 = arith.addf %213, %212 : vector<2x128xf32>
    %215 = arith.divf %213, %214 : vector<2x128xf32>
    %216 = vector.extract_strided_slice %203 {offsets = [0, 256], sizes = [2, 128], strides = [1, 1]} : vector<2x512xf32> to vector<2x128xf32>
    %217 = math.tanh %216 : vector<2x128xf32>
    %218 = vector.extract_strided_slice %203 {offsets = [0, 384], sizes = [2, 128], strides = [1, 1]} : vector<2x512xf32> to vector<2x128xf32>
    %219 = arith.negf %218 : vector<2x128xf32>
    %220 = math.exp %219 : vector<2x128xf32>
    %cst_59 = arith.constant 1.000000e+00 : f32
    %221 = vector.broadcast %cst_59 : f32 to vector<2x128xf32>
    %222 = arith.addf %221, %220 : vector<2x128xf32>
    %223 = arith.divf %221, %222 : vector<2x128xf32>
    %224 = arith.mulf %215, %194 : vector<2x128xf32>
    %225 = arith.mulf %209, %217 : vector<2x128xf32>
    %226 = arith.addf %224, %225 : vector<2x128xf32>
    %227 = math.tanh %226 : vector<2x128xf32>
    %228 = arith.mulf %223, %227 : vector<2x128xf32>
    %c7_i32 = arith.constant 7 : i32
    %229 = arith.index_cast %c7_i32 : i32 to index
    %c0_60 = arith.constant 0 : index
    %c0_61 = arith.constant 0 : index
    %230 = vector.load %arg1[%229, %c0_60, %c0_61] : memref<8x2x512xf32, #tpu.memory_space<vmem>>, vector<1x2x512xf32>
    %231 = vector.shape_cast %230 : vector<1x2x512xf32> to vector<2x512xf32>
    %232 = arith.truncf %228 : vector<2x128xf32> to vector<2x128xbf16>
    %c0_62 = arith.constant 0 : index
    %c0_63 = arith.constant 0 : index
    %233 = vector.load %arg2[%c0_62, %c0_63] : memref<128x512xbf16, #tpu.memory_space<vmem>>, vector<128x512xbf16>
    %cst_64 = arith.constant dense<0.000000e+00> : vector<2x512xf32>
    %234 = tpu.matmul %232, %233, %cst_64 {dimension_numbers = #tpu.dot_dimension_numbers<[1], [0], [0], [1], [0, 0, 1, 1], [], []>} : vector<2x128xbf16>, vector<128x512xbf16>, vector<2x512xf32> -> vector<2x512xf32>
    %235 = arith.addf %231, %234 : vector<2x512xf32>
    %236 = vector.extract_strided_slice %235 {offsets = [0, 0], sizes = [2, 128], strides = [1, 1]} : vector<2x512xf32> to vector<2x128xf32>
    %237 = arith.negf %236 : vector<2x128xf32>
    %238 = math.exp %237 : vector<2x128xf32>
    %cst_65 = arith.constant 1.000000e+00 : f32
    %239 = vector.broadcast %cst_65 : f32 to vector<2x128xf32>
    %240 = arith.addf %239, %238 : vector<2x128xf32>
    %241 = arith.divf %239, %240 : vector<2x128xf32>
    %242 = vector.extract_strided_slice %235 {offsets = [0, 128], sizes = [2, 128], strides = [1, 1]} : vector<2x512xf32> to vector<2x128xf32>
    %243 = arith.negf %242 : vector<2x128xf32>
    %244 = math.exp %243 : vector<2x128xf32>
    %cst_66 = arith.constant 1.000000e+00 : f32
    %245 = vector.broadcast %cst_66 : f32 to vector<2x128xf32>
    %246 = arith.addf %245, %244 : vector<2x128xf32>
    %247 = arith.divf %245, %246 : vector<2x128xf32>
    %248 = vector.extract_strided_slice %235 {offsets = [0, 256], sizes = [2, 128], strides = [1, 1]} : vector<2x512xf32> to vector<2x128xf32>
    %249 = math.tanh %248 : vector<2x128xf32>
    %250 = vector.extract_strided_slice %235 {offsets = [0, 384], sizes = [2, 128], strides = [1, 1]} : vector<2x512xf32> to vector<2x128xf32>
    %251 = arith.negf %250 : vector<2x128xf32>
    %252 = math.exp %251 : vector<2x128xf32>
    %cst_67 = arith.constant 1.000000e+00 : f32
    %253 = vector.broadcast %cst_67 : f32 to vector<2x128xf32>
    %254 = arith.addf %253, %252 : vector<2x128xf32>
    %255 = arith.divf %253, %254 : vector<2x128xf32>
    %256 = arith.mulf %247, %226 : vector<2x128xf32>
    %257 = arith.mulf %241, %249 : vector<2x128xf32>
    %258 = arith.addf %256, %257 : vector<2x128xf32>
    %259 = math.tanh %258 : vector<2x128xf32>
    %260 = arith.mulf %255, %259 : vector<2x128xf32>
    %c8_i32 = arith.constant 8 : i32
    %c0_68 = arith.constant 0 : index
    %c0_69 = arith.constant 0 : index
    %261 = vector.load %arg6[%c0_68, %c0_69] : memref<2x128xf32, #tpu.memory_space<vmem>>, vector<2x128xf32>
    tpu.vector_store %arg6[%c0_68, %c0_69], %260 {strides = array<i32>} : memref<2x128xf32, #tpu.memory_space<vmem>>, vector<2x128xf32>,
    %c0_70 = arith.constant 0 : index
    %c0_71 = arith.constant 0 : index
    %262 = vector.load %arg7[%c0_70, %c0_71] : memref<2x128xf32, #tpu.memory_space<vmem>>, vector<2x128xf32>
    tpu.vector_store %arg7[%c0_70, %c0_71], %258 {strides = array<i32>} : memref<2x128xf32, #tpu.memory_space<vmem>>, vector<2x128xf32>,
    %c0_i32_72 = arith.constant 0 : i32
    %263 = arith.cmpi eq, %arg0, %c0_i32_72 : i32
    %264 = arith.extui %263 : i1 to i32
    %c0_i32_73 = arith.constant 0 : i32
    %265 = arith.cmpi ne, %264, %c0_i32_73 : i32
    scf.if %265 {
      %c0_74 = arith.constant 0 : index
      %c0_75 = arith.constant 0 : index
      %266 = vector.load %arg6[%c0_74, %c0_75] : memref<2x128xf32, #tpu.memory_space<vmem>>, vector<2x128xf32>
      %267 = arith.truncf %266 : vector<2x128xf32> to vector<2x128xbf16>
      %c0_76 = arith.constant 0 : index
      %c0_77 = arith.constant 0 : index
      %268 = vector.load %arg3[%c0_76, %c0_77] : memref<128x12xbf16, #tpu.memory_space<vmem>>, vector<128x12xbf16>
      %cst_78 = arith.constant dense<0.000000e+00> : vector<2x12xf32>
      %269 = tpu.matmul %267, %268, %cst_78 {dimension_numbers = #tpu.dot_dimension_numbers<[1], [0], [0], [1], [0, 0, 1, 1], [], []>} : vector<2x128xbf16>, vector<128x12xbf16>, vector<2x12xf32> -> vector<2x12xf32>
      %c0_79 = arith.constant 0 : index
      %c0_80 = arith.constant 0 : index
      %270 = vector.load %arg4[%c0_79, %c0_80] : memref<1x12xf32, #tpu.memory_space<vmem>>, vector<1x12xf32>
      %271 = vector.broadcast %270 : vector<1x12xf32> to vector<2x12xf32>
      %272 = arith.addf %269, %271 : vector<2x12xf32>
      %c0_81 = arith.constant 0 : index
      %c0_82 = arith.constant 0 : index
      %273 = vector.load %arg5[%c0_81, %c0_82] : memref<2x12xf32, #tpu.memory_space<vmem>>, vector<2x12xf32>
      tpu.vector_store %arg5[%c0_81, %c0_82], %272 {strides = array<i32>} : memref<2x12xf32, #tpu.memory_space<vmem>>, vector<2x12xf32>,
    } else {
    }
    return
  }
  func.func @transform_0(%arg0: i32) -> (i32, i32, i32) {
    %c0_i32 = arith.constant 0 : i32
    %c0_i32_0 = arith.constant 0 : i32
    %c0_i32_1 = arith.constant 0 : i32
    return %arg0, %c0_i32, %c0_i32_0 : i32, i32, i32
  }
  func.func @transform_1(%arg0: i32) -> (i32, i32) {
    %c0_i32 = arith.constant 0 : i32
    %c0_i32_0 = arith.constant 0 : i32
    %c0_i32_1 = arith.constant 0 : i32
    return %c0_i32, %c0_i32_0 : i32, i32
  }
  func.func @transform_2(%arg0: i32) -> (i32, i32) {
    %c0_i32 = arith.constant 0 : i32
    %c0_i32_0 = arith.constant 0 : i32
    %c0_i32_1 = arith.constant 0 : i32
    return %c0_i32, %c0_i32_0 : i32, i32
  }
  func.func @transform_3(%arg0: i32) -> (i32, i32) {
    %c0_i32 = arith.constant 0 : i32
    %c0_i32_0 = arith.constant 0 : i32
    %c0_i32_1 = arith.constant 0 : i32
    return %c0_i32, %c0_i32_0 : i32, i32
  }
  func.func @transform_4(%arg0: i32) -> (i32, i32) {
    %c0_i32 = arith.constant 0 : i32
    %c0_i32_0 = arith.constant 0 : i32
    %c0_i32_1 = arith.constant 0 : i32
    return %c0_i32, %c0_i32_0 : i32, i32
  }
}

</mosaic_0001>

<llo_original>
// kernel: lstm_forward.4
$region0: #{lstm_forward.4}
  #allocation0 [shape = 'u32[]', space=smem, size = 0x4, offset = 0x4, fixed_abs, tag = 'smem constant byte address 0x4 - core index']
  #allocation1 [shape = 'u32[144,128]{1,0:T(1,128)}', space=vmem, size = 0x12000, scoped, tag = 'internal scratch']
  %s0 = inlined_call_operand.vmem [shape: f32[16,4], index: 0, kind: input, shape index: {}]
  %s1 = inlined_call_operand.hbm [shape: bf16[4,512], index: 1, kind: input, shape index: {}]
  %s2 = inlined_call_operand.vmem [shape: f32[1,512], index: 2, kind: input, shape index: {}]
  %s3 = inlined_call_operand.vmem [shape: f32[16,512], index: 3, kind: output, shape index: {}]
  %s4 = sld [smem:[#allocation0]]
  $region26: #{lstm_forward.4} parent=0
    _
  %s6 = ssub.s32 1, %s4
  %s7 = scalar_select 0, %s6, %s4
  $region1: #{lstm_forward.4} parent=0
    #allocation2 [shape = 'u8[4096]{0}', space=vmem, size = 0x1000, scoped, tag = 'input window, operand 1, single buffered']
    #allocation3 [shape = 's32[1]{0}', space=sflag, size = 0x4, scoped, tag = 'scoped memory for lstm_forward.4']
    %8 = vsyncpa [#allocation3], 0
    // Predicated region
    $region2: #{lstm_forward.4} parent=1 // pred_check
      _
    $region3: #{lstm_forward.4} parent=1 // pred_check_branch
      %10 = sbr.rel (0) target = $region5
    $region4: #{lstm_forward.4} parent=1 // pred_region
      _
    $region5: #{lstm_forward.4} parent=1 // pred_fallthru
      _
    // Predicated region
    $region6: #{lstm_forward.4} parent=1 // pred_check
      _
    $region7: #{lstm_forward.4} parent=1 // pred_check_branch
      %12 = sbr.rel (0) target = $region9
    $region8: #{lstm_forward.4} parent=1 // pred_region
      %s14 = ssub.s32 128, 128
      %15 = vsyncadd [#allocation3], %s14
      %s17 = sshll.u32 [#allocation2], 4
      %s18 = int_to_ptr.vmem [resolvable:$true] %s17
      %20 = dma.hbm_to_vmem [thread:$0]  %s1, 128, %s18, [#allocation3]
    $region9: #{lstm_forward.4} parent=1 // pred_fallthru
      _
    // Predicated region
    $region10: #{lstm_forward.4} parent=1 // pred_check
      _
    $region11: #{lstm_forward.4} parent=1 // pred_check_branch
      %22 = sbr.rel (0) target = $region13
    $region12: #{lstm_forward.4} parent=1 // pred_region
      _
    $region13: #{lstm_forward.4} parent=1 // pred_fallthru
      _
    // Predicated region
    $region14: #{lstm_forward.4} parent=1 // pred_check
      _
    $region15: #{lstm_forward.4} parent=1 // pred_check_branch
      %24 = sbr.rel (0) target = $region17
    $region16: #{lstm_forward.4} parent=1 // pred_region
      %25 = dma.done [#allocation3], 128
    $region17: #{lstm_forward.4} parent=1 // pred_fallthru
      _
    %v27 = vld [vmem:[%s0] sm:$0xff]
    %v28 = vld [vmem:[%s0 + $0x8] sm:$0xff]
    %v29 = vpack.c.bf16 %v28, %v27
    %v30 = vld [vmem:[#allocation2] sm:$0xff]
    %v31 = vld [vmem:[%s2] sm:$0xf]
    %v33 = vlaneseq
    %v34 = vshrl.u32 %v33, 7
    %v35 = vsub.s32 0, %v34
    %v36 = vrot.slane %v31, %v35
    %v37 = vlaneseq
    %v38 = vshrl.u32 %v37, 7
    %v39 = vsub.s32 1, %v38
    %v40 = vrot.slane %v31, %v39
    %v41 = vlaneseq
    %v42 = vshrl.u32 %v41, 7
    %v43 = vsub.s32 2, %v42
    %v44 = vrot.slane %v31, %v43
    %v45 = vlaneseq
    %v46 = vshrl.u32 %v45, 7
    %v47 = vsub.s32 3, %v46
    %v48 = vrot.slane %v31, %v47
    %v54 = vcombine.high %v30, %v30
    %v56 = vunpack.c.l.s4 1983009808
    %v57 = vunpack.c.0.s8 %v56
    %v58 = vlaneseq
    %v59 = vshrl.u32 %v58, 7
    %v60 = vsub.s32 %v57, %v59
    %v61 = vrot.slane %v30, %v60
    %v63 = vunpack.c.l.s4 1983009808
    %v64 = vunpack.c.0.s8 %v63
    %v65 = vlaneseq
    %v66 = vshrl.u32 %v65, 7
    %v67 = vsub.s32 %v64, %v66
    %v68 = vrot.slane %v54, %v67
    %v69 = vcombine.high %v61, %v61
    %v70 = vcombine.high %v68, %v68
    %vm71 = vcmask 31744
    %v73 = vsel %vm71, %v29, 0
    %vm75 = vcmask 1041408
    %v77 = vsel %vm75, %v61, 0
    %v80 = vsel %vm75, %v69, 0
    %v83 = vsel %vm75, %v68, 0
    %v86 = vsel %vm75, %v70, 0
    %88 = vmatprep.subr.bf16.mxu0 %v80
    %89 = vmatpush1.bf16.msra.mxu0 %v77
    %90 = vmatprep.subr.bf16.mxu0 0
    %91 = vmatpush1.bf16.msra.mxu0 0
    %92 = vmatprep.subr.bf16.mxu0 0
    %93 = vmatpush1.bf16.msra.mxu0 0
    %94 = vmatprep.subr.bf16.mxu0 0
    %95 = vmatpush1.bf16.msra.mxu0 0
    %96 = vmatprep.subr.bf16.mxu0 0
    %97 = vmatpush1.bf16.msra.mxu0 0
    %98 = vmatprep.subr.bf16.mxu0 0
    %99 = vmatpush1.bf16.msra.mxu0 0
    %100 = vmatprep.subr.bf16.mxu0 0
    %101 = vmatpush1.bf16.msra.mxu0 0
    %102 = vmatprep.subr.bf16.mxu0 0
    %103 = vmatpush1.bf16.msra.mxu0 0
    %104 = vmatprep.subr.bf16.mxu0 0
    %105 = vmatpush1.bf16.msra.mxu0 0
    %106 = vmatprep.subr.bf16.mxu0 0
    %107 = vmatpush1.bf16.msra.mxu0 0
    %108 = vmatprep.subr.bf16.mxu0 0
    %109 = vmatpush1.bf16.msra.mxu0 0
    %110 = vmatprep.subr.bf16.mxu0 0
    %111 = vmatpush1.bf16.msra.mxu0 0
    %112 = vmatprep.subr.bf16.mxu0 0
    %113 = vmatpush1.bf16.msra.mxu0 0
    %114 = vmatprep.subr.bf16.mxu0 0
    %115 = vmatpush1.bf16.msra.mxu0 0
    %116 = vmatprep.subr.bf16.mxu0 0
    %117 = vmatpush1.bf16.msra.mxu0 0
    %118 = vmatprep.subr.bf16.mxu0 0
    %119 = vmatpush1.bf16.msra.mxu0 0
    %120 = vmatprep.mubr.bf16.mxu0 0
    %121 = vmatmul.mubr.bf16.gmra.mrb[0].mxu0 %v73
    %v122 = vpop.f32.mrb[0].mxu0
    %v123 = vadd.f32 %v36, %v122
    %v124 = vpop.f32.mrb[0].mxu0
    %v125 = vadd.f32 %v40, %v124
    %v126 = vpop.f32.mrb[0].mxu0
    %v127 = vadd.f32 %v36, %v126
    %v128 = vpop.f32.mrb[0].mxu0
    %v129 = vadd.f32 %v40, %v128
    %130 = vdwg.mxu0
    %131 = vmatprep.subr.bf16.mxu0 %v86
    %132 = vmatpush1.bf16.msra.mxu0 %v83
    %133 = vmatprep.subr.bf16.mxu0 0
    %134 = vmatpush1.bf16.msra.mxu0 0
    %135 = vmatprep.subr.bf16.mxu0 0
    %136 = vmatpush1.bf16.msra.mxu0 0
    %137 = vmatprep.subr.bf16.mxu0 0
    %138 = vmatpush1.bf16.msra.mxu0 0
    %139 = vmatprep.subr.bf16.mxu0 0
    %140 = vmatpush1.bf16.msra.mxu0 0
    %141 = vmatprep.subr.bf16.mxu0 0
    %142 = vmatpush1.bf16.msra.mxu0 0
    %143 = vmatprep.subr.bf16.mxu0 0
    %144 = vmatpush1.bf16.msra.mxu0 0
    %145 = vmatprep.subr.bf16.mxu0 0
    %146 = vmatpush1.bf16.msra.mxu0 0
    %147 = vmatprep.subr.bf16.mxu0 0
    %148 = vmatpush1.bf16.msra.mxu0 0
    %149 = vmatprep.subr.bf16.mxu0 0
    %150 = vmatpush1.bf16.msra.mxu0 0
    %151 = vmatprep.subr.bf16.mxu0 0
    %152 = vmatpush1.bf16.msra.mxu0 0
    %153 = vmatprep.subr.bf16.mxu0 0
    %154 = vmatpush1.bf16.msra.mxu0 0
    %155 = vmatprep.subr.bf16.mxu0 0
    %156 = vmatpush1.bf16.msra.mxu0 0
    %157 = vmatprep.subr.bf16.mxu0 0
    %158 = vmatpush1.bf16.msra.mxu0 0
    %159 = vmatprep.subr.bf16.mxu0 0
    %160 = vmatpush1.bf16.msra.mxu0 0
    %161 = vmatprep.subr.bf16.mxu0 0
    %162 = vmatpush1.bf16.msra.mxu0 0
    %163 = vmatprep.mubr.bf16.mxu0 0
    %164 = vmatmul.mubr.bf16.gmra.mrb[0].mxu0 %v73
    %v165 = vpop.f32.mrb[0].mxu0
    %v166 = vadd.f32 %v44, %v165
    %v167 = vpop.f32.mrb[0].mxu0
    %v168 = vadd.f32 %v48, %v167
    %v169 = vpop.f32.mrb[0].mxu0
    %v170 = vadd.f32 %v44, %v169
    %v171 = vpop.f32.mrb[0].mxu0
    %v172 = vadd.f32 %v48, %v171
    %173 = vdwg.mxu0
    %174 = vst [vmem:[%s3] sm:$0xff] %v123
    %175 = vst [vmem:[%s3 + $0x8] sm:$0xff] %v125
    %176 = vst [vmem:[%s3 + $0x10] sm:$0xff] %v166
    %177 = vst [vmem:[%s3 + $0x18] sm:$0xff] %v168
    %178 = vst [vmem:[%s3 + $0x20] sm:$0xff] %v127
    %179 = vst [vmem:[%s3 + $0x28] sm:$0xff] %v129
    %180 = vst [vmem:[%s3 + $0x30] sm:$0xff] %v170
    %181 = vst [vmem:[%s3 + $0x38] sm:$0xff] %v172
    // Predicated region
    $region18: #{lstm_forward.4} parent=1 // pred_check
      _
    $region19: #{lstm_forward.4} parent=1 // pred_check_branch
      %183 = sbr.rel (0) target = $region21
    $region20: #{lstm_forward.4} parent=1 // pred_region
      _
    $region21: #{lstm_forward.4} parent=1 // pred_fallthru
      _
    // Predicated region
    $region22: #{lstm_forward.4} parent=1 // pred_check
      _
    $region23: #{lstm_forward.4} parent=1 // pred_check_branch
      %185 = sbr.rel (0) target = $region25
    $region24: #{lstm_forward.4} parent=1 // pred_region
      _
    $region25: #{lstm_forward.4} parent=1 // pred_fallthru
      _
    %186 = vsyncpa [#allocation3], 1

// kernel: lstm_forward.6
$region0: #{lstm_forward.6}
  #allocation0 [shape = 'u32[]', space=smem, size = 0x4, offset = 0x4, fixed_abs, tag = 'smem constant byte address 0x4 - core index']
  #allocation1 [shape = 'u32[144,128]{1,0:T(1,128)}', space=vmem, size = 0x12000, scoped, tag = 'internal scratch']
  %s0 = inlined_call_operand.vmem [shape: bf16[16,128], index: 0, kind: input, shape index: {}]
  %s1 = inlined_call_operand.vmem [shape: bf16[128,512], index: 1, kind: input, shape index: {}]
  %s2 = inlined_call_operand.vmem [shape: f32[1,512], index: 2, kind: input, shape index: {}]
  %s3 = inlined_call_operand.vmem [shape: f32[16,512], index: 3, kind: output, shape index: {}]
  %s4 = sld [smem:[#allocation0]]
  $region22: #{lstm_forward.6} parent=0
    _
  %s6 = ssub.s32 1, %s4
  %s7 = scalar_select 0, %s6, %s4
  // Predicated region
  $region2: #{lstm_forward.6} parent=0 // pred_check
    _
  $region3: #{lstm_forward.6} parent=0 // pred_check_branch
    %9 = sbr.rel (0) target = $region5
  $region4: #{lstm_forward.6} parent=0 // pred_region
    _
  $region5: #{lstm_forward.6} parent=0 // pred_fallthru
    _
  // Predicated region
  $region6: #{lstm_forward.6} parent=0 // pred_check
    _
  $region7: #{lstm_forward.6} parent=0 // pred_check_branch
    %11 = sbr.rel (0) target = $region9
  $region8: #{lstm_forward.6} parent=0 // pred_region
    _
  $region9: #{lstm_forward.6} parent=0 // pred_fallthru
    _
  // Predicated region
  $region10: #{lstm_forward.6} parent=0 // pred_check
    _
  $region11: #{lstm_forward.6} parent=0 // pred_check_branch
    %13 = sbr.rel (0) target = $region13
  $region12: #{lstm_forward.6} parent=0 // pred_region
    _
  $region13: #{lstm_forward.6} parent=0 // pred_fallthru
    _
  %v15 = vld [vmem:[%s0] sm:$0xf]
  %v16 = vld [vmem:[%s0 + $0x4] sm:$0xf]
  %v17 = vld [vmem:[%s1] sm:$0xff]
  %v18 = vld [vmem:[%s1 + $0x8] sm:$0xff]
  %v19 = vld [vmem:[%s1 + $0x10] sm:$0xff]
  %v20 = vld [vmem:[%s1 + $0x18] sm:$0xff]
  %v21 = vld [vmem:[%s1 + $0x20] sm:$0xff]
  %v22 = vld [vmem:[%s1 + $0x28] sm:$0xff]
  %v23 = vld [vmem:[%s1 + $0x30] sm:$0xff]
  %v24 = vld [vmem:[%s1 + $0x38] sm:$0xff]
  %v25 = vld [vmem:[%s1 + $0x40] sm:$0xff]
  %v26 = vld [vmem:[%s1 + $0x48] sm:$0xff]
  %v27 = vld [vmem:[%s1 + $0x50] sm:$0xff]
  %v28 = vld [vmem:[%s1 + $0x58] sm:$0xff]
  %v29 = vld [vmem:[%s1 + $0x60] sm:$0xff]
  %v30 = vld [vmem:[%s1 + $0x68] sm:$0xff]
  %v31 = vld [vmem:[%s1 + $0x70] sm:$0xff]
  %v32 = vld [vmem:[%s1 + $0x78] sm:$0xff]
  %v33 = vld [vmem:[%s1 + $0x80] sm:$0xff]
  %v34 = vld [vmem:[%s1 + $0x88] sm:$0xff]
  %v35 = vld [vmem:[%s1 + $0x90] sm:$0xff]
  %v36 = vld [vmem:[%s1 + $0x98] sm:$0xff]
  %v37 = vld [vmem:[%s1 + $0xa0] sm:$0xff]
  %v38 = vld [vmem:[%s1 + $0xa8] sm:$0xff]
  %v39 = vld [vmem:[%s1 + $0xb0] sm:$0xff]
  %v40 = vld [vmem:[%s1 + $0xb8] sm:$0xff]
  %v41 = vld [vmem:[%s1 + $0xc0] sm:$0xff]
  %v42 = vld [vmem:[%s1 + $0xc8] sm:$0xff]
  %v43 = vld [vmem:[%s1 + $0xd0] sm:$0xff]
  %v44 = vld [vmem:[%s1 + $0xd8] sm:$0xff]
  %v45 = vld [vmem:[%s1 + $0xe0] sm:$0xff]
  %v46 = vld [vmem:[%s1 + $0xe8] sm:$0xff]
  %v47 = vld [vmem:[%s1 + $0xf0] sm:$0xff]
  %v48 = vld [vmem:[%s1 + $0xf8] sm:$0xff]
  %v49 = vld [vmem:[%s2] sm:$0xf]
  %v51 = vlaneseq
  %v52 = vshrl.u32 %v51, 7
  %v53 = vsub.s32 0, %v52
  %v54 = vrot.slane %v49, %v53
  %v55 = vlaneseq
  %v56 = vshrl.u32 %v55, 7
  %v57 = vsub.s32 1, %v56
  %v58 = vrot.slane %v49, %v57
  %v59 = vlaneseq
  %v60 = vshrl.u32 %v59, 7
  %v61 = vsub.s32 2, %v60
  %v62 = vrot.slane %v49, %v61
  %v63 = vlaneseq
  %v64 = vshrl.u32 %v63, 7
  %v65 = vsub.s32 3, %v64
  %v66 = vrot.slane %v49, %v65
  %v73 = vunpack.c.l.b16 %v15
  %v74 = vunpack.c.l.b16 %v16
  %v75 = vpack.c.b16 %v74, %v73
  %v109 = vunpack.c.l.b16 %v17
  %v110 = vunpack.c.h.b16 %v17
  %v111 = vunpack.c.l.b16 %v18
  %v112 = vunpack.c.h.b16 %v18
  %v113 = vunpack.c.l.b16 %v19
  %v114 = vunpack.c.h.b16 %v19
  %v115 = vunpack.c.l.b16 %v20
  %v116 = vunpack.c.h.b16 %v20
  %v117 = vunpack.c.l.b16 %v21
  %v118 = vunpack.c.h.b16 %v21
  %v119 = vunpack.c.l.b16 %v22
  %v120 = vunpack.c.h.b16 %v22
  %v121 = vunpack.c.l.b16 %v23
  %v122 = vunpack.c.h.b16 %v23
  %v123 = vunpack.c.l.b16 %v24
  %v124 = vunpack.c.h.b16 %v24
  %v125 = vunpack.c.l.b16 %v25
  %v126 = vunpack.c.h.b16 %v25
  %v127 = vunpack.c.l.b16 %v26
  %v128 = vunpack.c.h.b16 %v26
  %v129 = vunpack.c.l.b16 %v27
  %v130 = vunpack.c.h.b16 %v27
  %v131 = vunpack.c.l.b16 %v28
  %v132 = vunpack.c.h.b16 %v28
  %v133 = vunpack.c.l.b16 %v29
  %v134 = vunpack.c.h.b16 %v29
  %v135 = vunpack.c.l.b16 %v30
  %v136 = vunpack.c.h.b16 %v30
  %v137 = vunpack.c.l.b16 %v31
  %v138 = vunpack.c.h.b16 %v31
  %v139 = vunpack.c.l.b16 %v32
  %v140 = vunpack.c.h.b16 %v32
  %v141 = vunpack.c.l.b16 %v33
  %v142 = vunpack.c.h.b16 %v33
  %v143 = vunpack.c.l.b16 %v34
  %v144 = vunpack.c.h.b16 %v34
  %v145 = vunpack.c.l.b16 %v35
  %v146 = vunpack.c.h.b16 %v35
  %v147 = vunpack.c.l.b16 %v36
  %v148 = vunpack.c.h.b16 %v36
  %v149 = vunpack.c.l.b16 %v37
  %v150 = vunpack.c.h.b16 %v37
  %v151 = vunpack.c.l.b16 %v38
  %v152 = vunpack.c.h.b16 %v38
  %v153 = vunpack.c.l.b16 %v39
  %v154 = vunpack.c.h.b16 %v39
  %v155 = vunpack.c.l.b16 %v40
  %v156 = vunpack.c.h.b16 %v40
  %v157 = vunpack.c.l.b16 %v41
  %v158 = vunpack.c.h.b16 %v41
  %v159 = vunpack.c.l.b16 %v42
  %v160 = vunpack.c.h.b16 %v42
  %v161 = vunpack.c.l.b16 %v43
  %v162 = vunpack.c.h.b16 %v43
  %v163 = vunpack.c.l.b16 %v44
  %v164 = vunpack.c.h.b16 %v44
  %v165 = vunpack.c.l.b16 %v45
  %v166 = vunpack.c.h.b16 %v45
  %v167 = vunpack.c.l.b16 %v46
  %v168 = vunpack.c.h.b16 %v46
  %v169 = vunpack.c.l.b16 %v47
  %v170 = vunpack.c.h.b16 %v47
  %v171 = vunpack.c.l.b16 %v48
  %v172 = vunpack.c.h.b16 %v48
  %v173 = vpack.c.b16 %v113, %v109
  %v174 = vpack.c.b16 %v114, %v110
  %v175 = vpack.c.b16 %v115, %v111
  %v176 = vpack.c.b16 %v116, %v112
  %v177 = vpack.c.b16 %v121, %v117
  %v178 = vpack.c.b16 %v122, %v118
  %v179 = vpack.c.b16 %v123, %v119
  %v180 = vpack.c.b16 %v124, %v120
  %v181 = vpack.c.b16 %v129, %v125
  %v182 = vpack.c.b16 %v130, %v126
  %v183 = vpack.c.b16 %v131, %v127
  %v184 = vpack.c.b16 %v132, %v128
  %v185 = vpack.c.b16 %v137, %v133
  %v186 = vpack.c.b16 %v138, %v134
  %v187 = vpack.c.b16 %v139, %v135
  %v188 = vpack.c.b16 %v140, %v136
  %v189 = vpack.c.b16 %v145, %v141
  %v190 = vpack.c.b16 %v146, %v142
  %v191 = vpack.c.b16 %v147, %v143
  %v192 = vpack.c.b16 %v148, %v144
  %v193 = vpack.c.b16 %v153, %v149
  %v194 = vpack.c.b16 %v154, %v150
  %v195 = vpack.c.b16 %v155, %v151
  %v196 = vpack.c.b16 %v156, %v152
  %v197 = vpack.c.b16 %v161, %v157
  %v198 = vpack.c.b16 %v162, %v158
  %v199 = vpack.c.b16 %v163, %v159
  %v200 = vpack.c.b16 %v164, %v160
  %v201 = vpack.c.b16 %v169, %v165
  %v202 = vpack.c.b16 %v170, %v166
  %v203 = vpack.c.b16 %v171, %v167
  %v204 = vpack.c.b16 %v172, %v168
  %237 = vmatprep.subr.bf16.mxu0 %v174
  %238 = vmatpush1.bf16.msra.mxu0 %v173
  %239 = vmatprep.subr.bf16.mxu0 %v178
  %240 = vmatpush1.bf16.msra.mxu0 %v177
  %241 = vmatprep.subr.bf16.mxu0 %v182
  %242 = vmatpush1.bf16.msra.mxu0 %v181
  %243 = vmatprep.subr.bf16.mxu0 %v186
  %244 = vmatpush1.bf16.msra.mxu0 %v185
  %245 = vmatprep.subr.bf16.mxu0 %v190
  %246 = vmatpush1.bf16.msra.mxu0 %v189
  %247 = vmatprep.subr.bf16.mxu0 %v194
  %248 = vmatpush1.bf16.msra.mxu0 %v193
  %249 = vmatprep.subr.bf16.mxu0 %v198
  %250 = vmatpush1.bf16.msra.mxu0 %v197
  %251 = vmatprep.subr.bf16.mxu0 %v202
  %252 = vmatpush1.bf16.msra.mxu0 %v201
  %253 = vmatprep.subr.bf16.mxu0 0
  %254 = vmatpush1.bf16.msra.mxu0 0
  %255 = vmatprep.subr.bf16.mxu0 0
  %256 = vmatpush1.bf16.msra.mxu0 0
  %257 = vmatprep.subr.bf16.mxu0 0
  %258 = vmatpush1.bf16.msra.mxu0 0
  %259 = vmatprep.subr.bf16.mxu0 0
  %260 = vmatpush1.bf16.msra.mxu0 0
  %261 = vmatprep.subr.bf16.mxu0 0
  %262 = vmatpush1.bf16.msra.mxu0 0
  %263 = vmatprep.subr.bf16.mxu0 0
  %264 = vmatpush1.bf16.msra.mxu0 0
  %265 = vmatprep.subr.bf16.mxu0 0
  %266 = vmatpush1.bf16.msra.mxu0 0
  %267 = vmatprep.subr.bf16.mxu0 0
  %268 = vmatpush1.bf16.msra.mxu0 0
  %269 = vmatprep.mubr.bf16.mxu0 0
  %270 = vmatmul.mubr.bf16.gmra.mrb[0].mxu0 %v75
  %v271 = vpop.f32.mrb[0].mxu0
  %v272 = vadd.f32 %v54, %v271
  %v273 = vpop.f32.mrb[0].mxu0
  %v274 = vadd.f32 %v58, %v273
  %v275 = vpop.f32.mrb[0].mxu0
  %v276 = vadd.f32 %v54, %v275
  %v277 = vpop.f32.mrb[0].mxu0
  %v278 = vadd.f32 %v58, %v277
  %279 = vdwg.mxu0
  %280 = vmatprep.subr.bf16.mxu0 %v176
  %281 = vmatpush1.bf16.msra.mxu0 %v175
  %282 = vmatprep.subr.bf16.mxu0 %v180
  %283 = vmatpush1.bf16.msra.mxu0 %v179
  %284 = vmatprep.subr.bf16.mxu0 %v184
  %285 = vmatpush1.bf16.msra.mxu0 %v183
  %286 = vmatprep.subr.bf16.mxu0 %v188
  %287 = vmatpush1.bf16.msra.mxu0 %v187
  %288 = vmatprep.subr.bf16.mxu0 %v192
  %289 = vmatpush1.bf16.msra.mxu0 %v191
  %290 = vmatprep.subr.bf16.mxu0 %v196
  %291 = vmatpush1.bf16.msra.mxu0 %v195
  %292 = vmatprep.subr.bf16.mxu0 %v200
  %293 = vmatpush1.bf16.msra.mxu0 %v199
  %294 = vmatprep.subr.bf16.mxu0 %v204
  %295 = vmatpush1.bf16.msra.mxu0 %v203
  %296 = vmatprep.subr.bf16.mxu0 0
  %297 = vmatpush1.bf16.msra.mxu0 0
  %298 = vmatprep.subr.bf16.mxu0 0
  %299 = vmatpush1.bf16.msra.mxu0 0
  %300 = vmatprep.subr.bf16.mxu0 0
  %301 = vmatpush1.bf16.msra.mxu0 0
  %302 = vmatprep.subr.bf16.mxu0 0
  %303 = vmatpush1.bf16.msra.mxu0 0
  %304 = vmatprep.subr.bf16.mxu0 0
  %305 = vmatpush1.bf16.msra.mxu0 0
  %306 = vmatprep.subr.bf16.mxu0 0
  %307 = vmatpush1.bf16.msra.mxu0 0
  %308 = vmatprep.subr.bf16.mxu0 0
  %309 = vmatpush1.bf16.msra.mxu0 0
  %310 = vmatprep.subr.bf16.mxu0 0
  %311 = vmatpush1.bf16.msra.mxu0 0
  %312 = vmatprep.mubr.bf16.mxu0 0
  %313 = vmatmul.mubr.bf16.gmra.mrb[0].mxu0 %v75
  %v314 = vpop.f32.mrb[0].mxu0
  %v315 = vadd.f32 %v62, %v314
  %v316 = vpop.f32.mrb[0].mxu0
  %v317 = vadd.f32 %v66, %v316
  %v318 = vpop.f32.mrb[0].mxu0
  %v319 = vadd.f32 %v62, %v318
  %v320 = vpop.f32.mrb[0].mxu0
  %v321 = vadd.f32 %v66, %v320
  %322 = vdwg.mxu0
  %323 = vst [vmem:[%s3] sm:$0xff] %v272
  %324 = vst [vmem:[%s3 + $0x8] sm:$0xff] %v274
  %325 = vst [vmem:[%s3 + $0x10] sm:$0xff] %v315
  %326 = vst [vmem:[%s3 + $0x18] sm:$0xff] %v317
  %327 = vst [vmem:[%s3 + $0x20] sm:$0xff] %v276
  %328 = vst [vmem:[%s3 + $0x28] sm:$0xff] %v278
  %329 = vst [vmem:[%s3 + $0x30] sm:$0xff] %v319
  %330 = vst [vmem:[%s3 + $0x38] sm:$0xff] %v321
  // Predicated region
  $region14: #{lstm_forward.6} parent=0 // pred_check
    _
  $region15: #{lstm_forward.6} parent=0 // pred_check_branch
    %332 = sbr.rel (0) target = $region17
  $region16: #{lstm_forward.6} parent=0 // pred_region
    _
  $region17: #{lstm_forward.6} parent=0 // pred_fallthru
    _
  // Predicated region
  $region18: #{lstm_forward.6} parent=0 // pred_check
    _
  $region19: #{lstm_forward.6} parent=0 // pred_check_branch
    %334 = sbr.rel (0) target = $region21
  $region20: #{lstm_forward.6} parent=0 // pred_region
    _
  $region21: #{lstm_forward.6} parent=0 // pred_fallthru
    _

// kernel: lstm_forward.7
$region0: #{lstm_forward.7}
  #allocation0 [shape = 'u32[]', space=smem, size = 0x4, offset = 0x4, fixed_abs, tag = 'smem constant byte address 0x4 - core index']
  #allocation1 [shape = 'u32[144,128]{1,0:T(1,128)}', space=vmem, size = 0x12000, scoped, tag = 'internal scratch']
  #allocation2 [shape = 'f32[2,128]{1,0:T(2,128)}', space=vmem, size = 0x400, scoped, tag = 'scratch operand']
  #allocation3 [shape = 'f32[2,128]{1,0:T(2,128)}', space=vmem, size = 0x400, scoped, tag = 'scratch operand']
  %s0 = inlined_call_operand.vmem [shape: f32[8,2,512], index: 0, kind: input, shape index: {}]
  %s1 = inlined_call_operand.vmem [shape: bf16[128,512], index: 1, kind: input, shape index: {}]
  %s2 = inlined_call_operand.vmem [shape: bf16[128,12], index: 2, kind: input, shape index: {}]
  %s3 = inlined_call_operand.vmem [shape: f32[1,12], index: 3, kind: input, shape index: {}]
  %s4 = inlined_call_operand.hbm [shape: f32[2,12], index: 4, kind: output, shape index: {}]
  %s5 = sld [smem:[#allocation0]]
  $region34: #{lstm_forward.7} parent=0
    _
  %s7 = ssub.s32 1, %s5
  %s8 = scalar_select 0, %s7, %s5
  $region1: #{lstm_forward.7} parent=0
    #allocation4 [shape = 'u8[1024]{0}', space=vmem, size = 0x400, scoped, tag = 'output window, operand 0, single buffered']
    #allocation5 [shape = 's32[1]{0}', space=sflag, size = 0x4, scoped, tag = 'scoped memory for lstm_forward.7']
    %9 = vsyncpa [#allocation5], 0
    // Predicated region
    $region2: #{lstm_forward.7} parent=1 // pred_check
      _
    $region3: #{lstm_forward.7} parent=1 // pred_check_branch
      %11 = sbr.rel (0) target = $region5
    $region4: #{lstm_forward.7} parent=1 // pred_region
      _
    $region5: #{lstm_forward.7} parent=1 // pred_fallthru
      _
    // Predicated region
    $region6: #{lstm_forward.7} parent=1 // pred_check
      _
    $region7: #{lstm_forward.7} parent=1 // pred_check_branch
      %13 = sbr.rel (0) target = $region9
    $region8: #{lstm_forward.7} parent=1 // pred_region
      _
    $region9: #{lstm_forward.7} parent=1 // pred_fallthru
      _
    // Predicated region
    $region10: #{lstm_forward.7} parent=1 // pred_check
      _
    $region11: #{lstm_forward.7} parent=1 // pred_check_branch
      %15 = sbr.rel (0) target = $region13
    $region12: #{lstm_forward.7} parent=1 // pred_region
      _
    $region13: #{lstm_forward.7} parent=1 // pred_fallthru
      _
    // Predicated region
    $region14: #{lstm_forward.7} parent=1 // pred_check
      _
    $region15: #{lstm_forward.7} parent=1 // pred_check_branch
      %17 = sbr.rel (0) target = $region17
    $region16: #{lstm_forward.7} parent=1 // pred_region
      _
    $region17: #{lstm_forward.7} parent=1 // pred_fallthru
      _
    %p19 = scmp.eq.s32.totalorder 0, 0
    // Predicated region
    $region18: #{lstm_forward.7} parent=1 // pred_check
      %p20 = pneg %p19
    $region19: #{lstm_forward.7} parent=1 // pred_check_branch
      %22 = sbr.rel (%p20) target = $region21
    $region20: #{lstm_forward.7} parent=1 // pred_region
      %23 = vst [vmem:[#allocation2] sm:$0x3] 0.0
      %24 = vst [vmem:[#allocation3] sm:$0x3] 0.0
    $region21: #{lstm_forward.7} parent=1 // pred_fallthru
      _
    %v25 = vld [vmem:[#allocation2] sm:$0x3]
    %v26 = vld [vmem:[#allocation3] sm:$0x3]
    %v27 = vld [vmem:[%s0] sm:$0xff]
    %v28 = vpack.c.bf16 %v25, %v25
    %v29 = vld [vmem:[%s1] sm:$0xff]
    %v30 = vld [vmem:[%s1 + $0x8] sm:$0xff]
    %v31 = vld [vmem:[%s1 + $0x10] sm:$0xff]
    %v32 = vld [vmem:[%s1 + $0x18] sm:$0xff]
    %v33 = vld [vmem:[%s1 + $0x20] sm:$0xff]
    %v34 = vld [vmem:[%s1 + $0x28] sm:$0xff]
    %v35 = vld [vmem:[%s1 + $0x30] sm:$0xff]
    %v36 = vld [vmem:[%s1 + $0x38] sm:$0xff]
    %v37 = vld [vmem:[%s1 + $0x40] sm:$0xff]
    %v38 = vld [vmem:[%s1 + $0x48] sm:$0xff]
    %v39 = vld [vmem:[%s1 + $0x50] sm:$0xff]
    %v40 = vld [vmem:[%s1 + $0x58] sm:$0xff]
    %v41 = vld [vmem:[%s1 + $0x60] sm:$0xff]
    %v42 = vld [vmem:[%s1 + $0x68] sm:$0xff]
    %v43 = vld [vmem:[%s1 + $0x70] sm:$0xff]
    %v44 = vld [vmem:[%s1 + $0x78] sm:$0xff]
    %v45 = vld [vmem:[%s1 + $0x80] sm:$0xff]
    %v46 = vld [vmem:[%s1 + $0x88] sm:$0xff]
    %v47 = vld [vmem:[%s1 + $0x90] sm:$0xff]
    %v48 = vld [vmem:[%s1 + $0x98] sm:$0xff]
    %v49 = vld [vmem:[%s1 + $0xa0] sm:$0xff]
    %v50 = vld [vmem:[%s1 + $0xa8] sm:$0xff]
    %v51 = vld [vmem:[%s1 + $0xb0] sm:$0xff]
    %v52 = vld [vmem:[%s1 + $0xb8] sm:$0xff]
    %v53 = vld [vmem:[%s1 + $0xc0] sm:$0xff]
    %v54 = vld [vmem:[%s1 + $0xc8] sm:$0xff]
    %v55 = vld [vmem:[%s1 + $0xd0] sm:$0xff]
    %v56 = vld [vmem:[%s1 + $0xd8] sm:$0xff]
    %v57 = vld [vmem:[%s1 + $0xe0] sm:$0xff]
    %v58 = vld [vmem:[%s1 + $0xe8] sm:$0xff]
    %v59 = vld [vmem:[%s1 + $0xf0] sm:$0xff]
    %v60 = vld [vmem:[%s1 + $0xf8] sm:$0xff]
    %v93 = vunpack.c.l.b16 %v29
    %v94 = vunpack.c.h.b16 %v29
    %v95 = vunpack.c.l.b16 %v30
    %v96 = vunpack.c.h.b16 %v30
    %v97 = vunpack.c.l.b16 %v31
    %v98 = vunpack.c.h.b16 %v31
    %v99 = vunpack.c.l.b16 %v32
    %v100 = vunpack.c.h.b16 %v32
    %v101 = vunpack.c.l.b16 %v33
    %v102 = vunpack.c.h.b16 %v33
    %v103 = vunpack.c.l.b16 %v34
    %v104 = vunpack.c.h.b16 %v34
    %v105 = vunpack.c.l.b16 %v35
    %v106 = vunpack.c.h.b16 %v35
    %v107 = vunpack.c.l.b16 %v36
    %v108 = vunpack.c.h.b16 %v36
    %v109 = vunpack.c.l.b16 %v37
    %v110 = vunpack.c.h.b16 %v37
    %v111 = vunpack.c.l.b16 %v38
    %v112 = vunpack.c.h.b16 %v38
    %v113 = vunpack.c.l.b16 %v39
    %v114 = vunpack.c.h.b16 %v39
    %v115 = vunpack.c.l.b16 %v40
    %v116 = vunpack.c.h.b16 %v40
    %v117 = vunpack.c.l.b16 %v41
    %v118 = vunpack.c.h.b16 %v41
    %v119 = vunpack.c.l.b16 %v42
    %v120 = vunpack.c.h.b16 %v42
    %v121 = vunpack.c.l.b16 %v43
    %v122 = vunpack.c.h.b16 %v43
    %v123 = vunpack.c.l.b16 %v44
    %v124 = vunpack.c.h.b16 %v44
    %v125 = vunpack.c.l.b16 %v45
    %v126 = vunpack.c.h.b16 %v45
    %v127 = vunpack.c.l.b16 %v46
    %v128 = vunpack.c.h.b16 %v46
    %v129 = vunpack.c.l.b16 %v47
    %v130 = vunpack.c.h.b16 %v47
    %v131 = vunpack.c.l.b16 %v48
    %v132 = vunpack.c.h.b16 %v48
    %v133 = vunpack.c.l.b16 %v49
    %v134 = vunpack.c.h.b16 %v49
    %v135 = vunpack.c.l.b16 %v50
    %v136 = vunpack.c.h.b16 %v50
    %v137 = vunpack.c.l.b16 %v51
    %v138 = vunpack.c.h.b16 %v51
    %v139 = vunpack.c.l.b16 %v52
    %v140 = vunpack.c.h.b16 %v52
    %v141 = vunpack.c.l.b16 %v53
    %v142 = vunpack.c.h.b16 %v53
    %v143 = vunpack.c.l.b16 %v54
    %v144 = vunpack.c.h.b16 %v54
    %v145 = vunpack.c.l.b16 %v55
    %v146 = vunpack.c.h.b16 %v55
    %v147 = vunpack.c.l.b16 %v56
    %v148 = vunpack.c.h.b16 %v56
    %v149 = vunpack.c.l.b16 %v57
    %v150 = vunpack.c.h.b16 %v57
    %v151 = vunpack.c.l.b16 %v58
    %v152 = vunpack.c.h.b16 %v58
    %v153 = vunpack.c.l.b16 %v59
    %v154 = vunpack.c.h.b16 %v59
    %v155 = vunpack.c.l.b16 %v60
    %v156 = vunpack.c.h.b16 %v60
    %v157 = vpack.c.b16 %v97, %v93
    %v158 = vpack.c.b16 %v98, %v94
    %v159 = vpack.c.b16 %v99, %v95
    %v160 = vpack.c.b16 %v100, %v96
    %v161 = vpack.c.b16 %v105, %v101
    %v162 = vpack.c.b16 %v106, %v102
    %v163 = vpack.c.b16 %v107, %v103
    %v164 = vpack.c.b16 %v108, %v104
    %v165 = vpack.c.b16 %v113, %v109
    %v166 = vpack.c.b16 %v114, %v110
    %v167 = vpack.c.b16 %v115, %v111
    %v168 = vpack.c.b16 %v116, %v112
    %v169 = vpack.c.b16 %v121, %v117
    %v170 = vpack.c.b16 %v122, %v118
    %v171 = vpack.c.b16 %v123, %v119
    %v172 = vpack.c.b16 %v124, %v120
    %v173 = vpack.c.b16 %v129, %v125
    %v174 = vpack.c.b16 %v130, %v126
    %v175 = vpack.c.b16 %v131, %v127
    %v176 = vpack.c.b16 %v132, %v128
    %v177 = vpack.c.b16 %v137, %v133
    %v178 = vpack.c.b16 %v138, %v134
    %v179 = vpack.c.b16 %v139, %v135
    %v180 = vpack.c.b16 %v140, %v136
    %v181 = vpack.c.b16 %v145, %v141
    %v182 = vpack.c.b16 %v146, %v142
    %v183 = vpack.c.b16 %v147, %v143
    %v184 = vpack.c.b16 %v148, %v144
    %v185 = vpack.c.b16 %v153, %v149
    %v186 = vpack.c.b16 %v154, %v150
    %v187 = vpack.c.b16 %v155, %v151
    %v188 = vpack.c.b16 %v156, %v152
    %221 = vmatprep.subr.bf16.mxu0 %v158
    %222 = vmatpush1.bf16.msra.mxu0 %v157
    %223 = vmatprep.subr.bf16.mxu0 %v162
    %224 = vmatpush1.bf16.msra.mxu0 %v161
    %225 = vmatprep.subr.bf16.mxu0 %v166
    %226 = vmatpush1.bf16.msra.mxu0 %v165
    %227 = vmatprep.subr.bf16.mxu0 %v170
    %228 = vmatpush1.bf16.msra.mxu0 %v169
    %229 = vmatprep.subr.bf16.mxu0 %v174
    %230 = vmatpush1.bf16.msra.mxu0 %v173
    %231 = vmatprep.subr.bf16.mxu0 %v178
    %232 = vmatpush1.bf16.msra.mxu0 %v177
    %233 = vmatprep.subr.bf16.mxu0 %v182
    %234 = vmatpush1.bf16.msra.mxu0 %v181
    %235 = vmatprep.subr.bf16.mxu0 %v186
    %236 = vmatpush1.bf16.msra.mxu0 %v185
    %237 = vmatprep.subr.bf16.mxu0 0
    %238 = vmatpush1.bf16.msra.mxu0 0
    %239 = vmatprep.subr.bf16.mxu0 0
    %240 = vmatpush1.bf16.msra.mxu0 0
    %241 = vmatprep.subr.bf16.mxu0 0
    %242 = vmatpush1.bf16.msra.mxu0 0
    %243 = vmatprep.subr.bf16.mxu0 0
    %244 = vmatpush1.bf16.msra.mxu0 0
    %245 = vmatprep.subr.bf16.mxu0 0
    %246 = vmatpush1.bf16.msra.mxu0 0
    %247 = vmatprep.subr.bf16.mxu0 0
    %248 = vmatpush1.bf16.msra.mxu0 0
    %249 = vmatprep.subr.bf16.mxu0 0
    %250 = vmatpush1.bf16.msra.mxu0 0
    %251 = vmatprep.subr.bf16.mxu0 0
    %252 = vmatpush1.bf16.msra.mxu0 0
    %253 = vmatprep.mubr.bf16.mxu0 0
    %254 = vmatmul.mubr.bf16.gmra.mrb[0].mxu0 %v28
    %v255 = vpop.f32.mrb[0].mxu0
    %v256 = vadd.f32 0.0, %v255
    %v257 = vpop.f32.mrb[0].mxu0
    %v258 = vadd.f32 0.0, %v257
    %v259 = vpop.f32.mrb[0].mxu0
    %v260 = vpop.f32.mrb[0].mxu0
    %261 = vdwg.mxu0
    %262 = vmatprep.subr.bf16.mxu0 %v160
    %263 = vmatpush1.bf16.msra.mxu0 %v159
    %264 = vmatprep.subr.bf16.mxu0 %v164
    %265 = vmatpush1.bf16.msra.mxu0 %v163
    %266 = vmatprep.subr.bf16.mxu0 %v168
    %267 = vmatpush1.bf16.msra.mxu0 %v167
    %268 = vmatprep.subr.bf16.mxu0 %v172
    %269 = vmatpush1.bf16.msra.mxu0 %v171
    %270 = vmatprep.subr.bf16.mxu0 %v176
    %271 = vmatpush1.bf16.msra.mxu0 %v175
    %272 = vmatprep.subr.bf16.mxu0 %v180
    %273 = vmatpush1.bf16.msra.mxu0 %v179
    %274 = vmatprep.subr.bf16.mxu0 %v184
    %275 = vmatpush1.bf16.msra.mxu0 %v183
    %276 = vmatprep.subr.bf16.mxu0 %v188
    %277 = vmatpush1.bf16.msra.mxu0 %v187
    %278 = vmatprep.subr.bf16.mxu0 0
    %279 = vmatpush1.bf16.msra.mxu0 0
    %280 = vmatprep.subr.bf16.mxu0 0
    %281 = vmatpush1.bf16.msra.mxu0 0
    %282 = vmatprep.subr.bf16.mxu0 0
    %283 = vmatpush1.bf16.msra.mxu0 0
    %284 = vmatprep.subr.bf16.mxu0 0
    %285 = vmatpush1.bf16.msra.mxu0 0
    %286 = vmatprep.subr.bf16.mxu0 0
    %287 = vmatpush1.bf16.msra.mxu0 0
    %288 = vmatprep.subr.bf16.mxu0 0
    %289 = vmatpush1.bf16.msra.mxu0 0
    %290 = vmatprep.subr.bf16.mxu0 0
    %291 = vmatpush1.bf16.msra.mxu0 0
    %292 = vmatprep.subr.bf16.mxu0 0
    %293 = vmatpush1.bf16.msra.mxu0 0
    %294 = vmatprep.mubr.bf16.mxu0 0
    %295 = vmatmul.mubr.bf16.gmra.mrb[0].mxu0 %v28
    %v296 = vpop.f32.mrb[0].mxu0
    %v297 = vadd.f32 0.0, %v296
    %v298 = vpop.f32.mrb[0].mxu0
    %v299 = vadd.f32 0.0, %v298
    %v300 = vpop.f32.mrb[0].mxu0
    %v301 = vpop.f32.mrb[0].mxu0
    %302 = vdwg.mxu0
    %v307 = vcombine.low %v256, %v258
    %v308 = vcombine.low %v297, %v299
    %v310 = vunpack.c.l.s4 1983009808
    %v311 = vunpack.c.0.s8 %v310
    %v312 = vlaneseq
    %v313 = vshrl.u32 %v312, 7
    %v314 = vsub.s32 %v311, %v313
    %v315 = vrot.slane %v307, %v314
    %v317 = vunpack.c.l.s4 1983009808
    %v318 = vunpack.c.0.s8 %v317
    %v319 = vlaneseq
    %v320 = vshrl.u32 %v319, 7
    %v321 = vsub.s32 %v318, %v320
    %v322 = vrot.slane %v308, %v321
    %v323 = vcombine.low %v315, %v322
    %v325 = vadd.f32 %v27, %v323
    %v326 = vxor.u32 %v325, 2147483648
    %v327 = vmul.f32 %v326, 1.442695
    %v328 = vpow.pop %v327
    %v329 = vadd.f32 %v328, 1.0
    %v330 = vrcp.pop %v329
    %v331 = vmul.f32 1.0, %v330
    %v333 = vrot.slane %v325, 2
    %v335 = vxor.u32 %v333, 2147483648
    %v336 = vmul.f32 %v335, 1.442695
    %v337 = vpow.pop %v336
    %v338 = vadd.f32 %v337, 1.0
    %v339 = vrcp.pop %v338
    %v340 = vmul.f32 1.0, %v339
    %v341 = vrot.slane %v325, 4
    %v343 = vtanh.pop %v341
    %v344 = vrot.slane %v325, 6
    %v346 = vxor.u32 %v344, 2147483648
    %v347 = vmul.f32 %v346, 1.442695
    %v348 = vpow.pop %v347
    %v349 = vadd.f32 %v348, 1.0
    %v350 = vrcp.pop %v349
    %v351 = vmul.f32 1.0, %v350
    %v352 = vmul.f32 %v340, %v26
    %v353 = vmul.f32 %v331, %v343
    %v354 = vadd.f32 %v352, %v353
    %v355 = vtanh.pop %v354
    %v356 = vmul.f32 %v351, %v355
    %s357 = scalar_lea.vmem %s0, 8
    %v358 = vld [vmem:[%s357] sm:$0xff]
    %v359 = vpack.c.bf16 %v356, %v356
    %360 = vmatprep.subr.bf16.mxu0 %v158
    %361 = vmatpush1.bf16.msra.mxu0 %v157
    %362 = vmatprep.subr.bf16.mxu0 %v162
    %363 = vmatpush1.bf16.msra.mxu0 %v161
    %364 = vmatprep.subr.bf16.mxu0 %v166
    %365 = vmatpush1.bf16.msra.mxu0 %v165
    %366 = vmatprep.subr.bf16.mxu0 %v170
    %367 = vmatpush1.bf16.msra.mxu0 %v169
    %368 = vmatprep.subr.bf16.mxu0 %v174
    %369 = vmatpush1.bf16.msra.mxu0 %v173
    %370 = vmatprep.subr.bf16.mxu0 %v178
    %371 = vmatpush1.bf16.msra.mxu0 %v177
    %372 = vmatprep.subr.bf16.mxu0 %v182
    %373 = vmatpush1.bf16.msra.mxu0 %v181
    %374 = vmatprep.subr.bf16.mxu0 %v186
    %375 = vmatpush1.bf16.msra.mxu0 %v185
    %376 = vmatprep.subr.bf16.mxu0 0
    %377 = vmatpush1.bf16.msra.mxu0 0
    %378 = vmatprep.subr.bf16.mxu0 0
    %379 = vmatpush1.bf16.msra.mxu0 0
    %380 = vmatprep.subr.bf16.mxu0 0
    %381 = vmatpush1.bf16.msra.mxu0 0
    %382 = vmatprep.subr.bf16.mxu0 0
    %383 = vmatpush1.bf16.msra.mxu0 0
    %384 = vmatprep.subr.bf16.mxu0 0
    %385 = vmatpush1.bf16.msra.mxu0 0
    %386 = vmatprep.subr.bf16.mxu0 0
    %387 = vmatpush1.bf16.msra.mxu0 0
    %388 = vmatprep.subr.bf16.mxu0 0
    %389 = vmatpush1.bf16.msra.mxu0 0
    %390 = vmatprep.subr.bf16.mxu0 0
    %391 = vmatpush1.bf16.msra.mxu0 0
    %392 = vmatprep.mubr.bf16.mxu0 0
    %393 = vmatmul.mubr.bf16.gmra.mrb[0].mxu0 %v359
    %v394 = vpop.f32.mrb[0].mxu0
    %v395 = vadd.f32 0.0, %v394
    %v396 = vpop.f32.mrb[0].mxu0
    %v397 = vadd.f32 0.0, %v396
    %v398 = vpop.f32.mrb[0].mxu0
    %v399 = vpop.f32.mrb[0].mxu0
    %400 = vdwg.mxu0
    %401 = vmatprep.subr.bf16.mxu0 %v160
    %402 = vmatpush1.bf16.msra.mxu0 %v159
    %403 = vmatprep.subr.bf16.mxu0 %v164
    %404 = vmatpush1.bf16.msra.mxu0 %v163
    %405 = vmatprep.subr.bf16.mxu0 %v168
    %406 = vmatpush1.bf16.msra.mxu0 %v167
    %407 = vmatprep.subr.bf16.mxu0 %v172
    %408 = vmatpush1.bf16.msra.mxu0 %v171
    %409 = vmatprep.subr.bf16.mxu0 %v176
    %410 = vmatpush1.bf16.msra.mxu0 %v175
    %411 = vmatprep.subr.bf16.mxu0 %v180
    %412 = vmatpush1.bf16.msra.mxu0 %v179
    %413 = vmatprep.subr.bf16.mxu0 %v184
    %414 = vmatpush1.bf16.msra.mxu0 %v183
    %415 = vmatprep.subr.bf16.mxu0 %v188
    %416 = vmatpush1.bf16.msra.mxu0 %v187
    %417 = vmatprep.subr.bf16.mxu0 0
    %418 = vmatpush1.bf16.msra.mxu0 0
    %419 = vmatprep.subr.bf16.mxu0 0
    %420 = vmatpush1.bf16.msra.mxu0 0
    %421 = vmatprep.subr.bf16.mxu0 0
    %422 = vmatpush1.bf16.msra.mxu0 0
    %423 = vmatprep.subr.bf16.mxu0 0
    %424 = vmatpush1.bf16.msra.mxu0 0
    %425 = vmatprep.subr.bf16.mxu0 0
    %426 = vmatpush1.bf16.msra.mxu0 0
    %427 = vmatprep.subr.bf16.mxu0 0
    %428 = vmatpush1.bf16.msra.mxu0 0
    %429 = vmatprep.subr.bf16.mxu0 0
    %430 = vmatpush1.bf16.msra.mxu0 0
    %431 = vmatprep.subr.bf16.mxu0 0
    %432 = vmatpush1.bf16.msra.mxu0 0
    %433 = vmatprep.mubr.bf16.mxu0 0
    %434 = vmatmul.mubr.bf16.gmra.mrb[0].mxu0 %v359
    %v435 = vpop.f32.mrb[0].mxu0
    %v436 = vadd.f32 0.0, %v435
    %v437 = vpop.f32.mrb[0].mxu0
    %v438 = vadd.f32 0.0, %v437
    %v439 = vpop.f32.mrb[0].mxu0
    %v440 = vpop.f32.mrb[0].mxu0
    %441 = vdwg.mxu0
    %v446 = vcombine.low %v395, %v397
    %v447 = vcombine.low %v436, %v438
    %v449 = vunpack.c.l.s4 1983009808
    %v450 = vunpack.c.0.s8 %v449
    %v451 = vlaneseq
    %v452 = vshrl.u32 %v451, 7
    %v453 = vsub.s32 %v450, %v452
    %v454 = vrot.slane %v446, %v453
    %v456 = vunpack.c.l.s4 1983009808
    %v457 = vunpack.c.0.s8 %v456
    %v458 = vlaneseq
    %v459 = vshrl.u32 %v458, 7
    %v460 = vsub.s32 %v457, %v459
    %v461 = vrot.slane %v447, %v460
    %v462 = vcombine.low %v454, %v461
    %v464 = vadd.f32 %v358, %v462
    %v465 = vxor.u32 %v464, 2147483648
    %v466 = vmul.f32 %v465, 1.442695
    %v467 = vpow.pop %v466
    %v468 = vadd.f32 %v467, 1.0
    %v469 = vrcp.pop %v468
    %v470 = vmul.f32 1.0, %v469
    %v472 = vrot.slane %v464, 2
    %v474 = vxor.u32 %v472, 2147483648
    %v475 = vmul.f32 %v474, 1.442695
    %v476 = vpow.pop %v475
    %v477 = vadd.f32 %v476, 1.0
    %v478 = vrcp.pop %v477
    %v479 = vmul.f32 1.0, %v478
    %v480 = vrot.slane %v464, 4
    %v482 = vtanh.pop %v480
    %v483 = vrot.slane %v464, 6
    %v485 = vxor.u32 %v483, 2147483648
    %v486 = vmul.f32 %v485, 1.442695
    %v487 = vpow.pop %v486
    %v488 = vadd.f32 %v487, 1.0
    %v489 = vrcp.pop %v488
    %v490 = vmul.f32 1.0, %v489
    %v491 = vmul.f32 %v479, %v354
    %v492 = vmul.f32 %v470, %v482
    %v493 = vadd.f32 %v491, %v492
    %v494 = vtanh.pop %v493
    %v495 = vmul.f32 %v490, %v494
    %s496 = scalar_lea.vmem %s0, 16
    %v497 = vld [vmem:[%s496] sm:$0xff]
    %v498 = vpack.c.bf16 %v495, %v495
    %499 = vmatprep.subr.bf16.mxu0 %v158
    %500 = vmatpush1.bf16.msra.mxu0 %v157
    %501 = vmatprep.subr.bf16.mxu0 %v162
    %502 = vmatpush1.bf16.msra.mxu0 %v161
    %503 = vmatprep.subr.bf16.mxu0 %v166
    %504 = vmatpush1.bf16.msra.mxu0 %v165
    %505 = vmatprep.subr.bf16.mxu0 %v170
    %506 = vmatpush1.bf16.msra.mxu0 %v169
    %507 = vmatprep.subr.bf16.mxu0 %v174
    %508 = vmatpush1.bf16.msra.mxu0 %v173
    %509 = vmatprep.subr.bf16.mxu0 %v178
    %510 = vmatpush1.bf16.msra.mxu0 %v177
    %511 = vmatprep.subr.bf16.mxu0 %v182
    %512 = vmatpush1.bf16.msra.mxu0 %v181
    %513 = vmatprep.subr.bf16.mxu0 %v186
    %514 = vmatpush1.bf16.msra.mxu0 %v185
    %515 = vmatprep.subr.bf16.mxu0 0
    %516 = vmatpush1.bf16.msra.mxu0 0
    %517 = vmatprep.subr.bf16.mxu0 0
    %518 = vmatpush1.bf16.msra.mxu0 0
    %519 = vmatprep.subr.bf16.mxu0 0
    %520 = vmatpush1.bf16.msra.mxu0 0
    %521 = vmatprep.subr.bf16.mxu0 0
    %522 = vmatpush1.bf16.msra.mxu0 0
    %523 = vmatprep.subr.bf16.mxu0 0
    %524 = vmatpush1.bf16.msra.mxu0 0
    %525 = vmatprep.subr.bf16.mxu0 0
    %526 = vmatpush1.bf16.msra.mxu0 0
    %527 = vmatprep.subr.bf16.mxu0 0
    %528 = vmatpush1.bf16.msra.mxu0 0
    %529 = vmatprep.subr.bf16.mxu0 0
    %530 = vmatpush1.bf16.msra.mxu0 0
    %531 = vmatprep.mubr.bf16.mxu0 0
    %532 = vmatmul.mubr.bf16.gmra.mrb[0].mxu0 %v498
    %v533 = vpop.f32.mrb[0].mxu0
    %v534 = vadd.f32 0.0, %v533
    %v535 = vpop.f32.mrb[0].mxu0
    %v536 = vadd.f32 0.0, %v535
    %v537 = vpop.f32.mrb[0].mxu0
    %v538 = vpop.f32.mrb[0].mxu0
    %539 = vdwg.mxu0
    %540 = vmatprep.subr.bf16.mxu0 %v160
    %541 = vmatpush1.bf16.msra.mxu0 %v159
    %542 = vmatprep.subr.bf16.mxu0 %v164
    %543 = vmatpush1.bf16.msra.mxu0 %v163
    %544 = vmatprep.subr.bf16.mxu0 %v168
    %545 = vmatpush1.bf16.msra.mxu0 %v167
    %546 = vmatprep.subr.bf16.mxu0 %v172
    %547 = vmatpush1.bf16.msra.mxu0 %v171
    %548 = vmatprep.subr.bf16.mxu0 %v176
    %549 = vmatpush1.bf16.msra.mxu0 %v175
    %550 = vmatprep.subr.bf16.mxu0 %v180
    %551 = vmatpush1.bf16.msra.mxu0 %v179
    %552 = vmatprep.subr.bf16.mxu0 %v184
    %553 = vmatpush1.bf16.msra.mxu0 %v183
    %554 = vmatprep.subr.bf16.mxu0 %v188
    %555 = vmatpush1.bf16.msra.mxu0 %v187
    %556 = vmatprep.subr.bf16.mxu0 0
    %557 = vmatpush1.bf16.msra.mxu0 0
    %558 = vmatprep.subr.bf16.mxu0 0
    %559 = vmatpush1.bf16.msra.mxu0 0
    %560 = vmatprep.subr.bf16.mxu0 0
    %561 = vmatpush1.bf16.msra.mxu0 0
    %562 = vmatprep.subr.bf16.mxu0 0
    %563 = vmatpush1.bf16.msra.mxu0 0
    %564 = vmatprep.subr.bf16.mxu0 0
    %565 = vmatpush1.bf16.msra.mxu0 0
    %566 = vmatprep.subr.bf16.mxu0 0
    %567 = vmatpush1.bf16.msra.mxu0 0
    %568 = vmatprep.subr.bf16.mxu0 0
    %569 = vmatpush1.bf16.msra.mxu0 0
    %570 = vmatprep.subr.bf16.mxu0 0
    %571 = vmatpush1.bf16.msra.mxu0 0
    %572 = vmatprep.mubr.bf16.mxu0 0
    %573 = vmatmul.mubr.bf16.gmra.mrb[0].mxu0 %v498
    %v574 = vpop.f32.mrb[0].mxu0
    %v575 = vadd.f32 0.0, %v574
    %v576 = vpop.f32.mrb[0].mxu0
    %v577 = vadd.f32 0.0, %v576
    %v578 = vpop.f32.mrb[0].mxu0
    %v579 = vpop.f32.mrb[0].mxu0
    %580 = vdwg.mxu0
    %v585 = vcombine.low %v534, %v536
    %v586 = vcombine.low %v575, %v577
    %v588 = vunpack.c.l.s4 1983009808
    %v589 = vunpack.c.0.s8 %v588
    %v590 = vlaneseq
    %v591 = vshrl.u32 %v590, 7
    %v592 = vsub.s32 %v589, %v591
    %v593 = vrot.slane %v585, %v592
    %v595 = vunpack.c.l.s4 1983009808
    %v596 = vunpack.c.0.s8 %v595
    %v597 = vlaneseq
    %v598 = vshrl.u32 %v597, 7
    %v599 = vsub.s32 %v596, %v598
    %v600 = vrot.slane %v586, %v599
    %v601 = vcombine.low %v593, %v600
    %v603 = vadd.f32 %v497, %v601
    %v604 = vxor.u32 %v603, 2147483648
    %v605 = vmul.f32 %v604, 1.442695
    %v606 = vpow.pop %v605
    %v607 = vadd.f32 %v606, 1.0
    %v608 = vrcp.pop %v607
    %v609 = vmul.f32 1.0, %v608
    %v611 = vrot.slane %v603, 2
    %v613 = vxor.u32 %v611, 2147483648
    %v614 = vmul.f32 %v613, 1.442695
    %v615 = vpow.pop %v614
    %v616 = vadd.f32 %v615, 1.0
    %v617 = vrcp.pop %v616
    %v618 = vmul.f32 1.0, %v617
    %v619 = vrot.slane %v603, 4
    %v621 = vtanh.pop %v619
    %v622 = vrot.slane %v603, 6
    %v624 = vxor.u32 %v622, 2147483648
    %v625 = vmul.f32 %v624, 1.442695
    %v626 = vpow.pop %v625
    %v627 = vadd.f32 %v626, 1.0
    %v628 = vrcp.pop %v627
    %v629 = vmul.f32 1.0, %v628
    %v630 = vmul.f32 %v618, %v493
    %v631 = vmul.f32 %v609, %v621
    %v632 = vadd.f32 %v630, %v631
    %v633 = vtanh.pop %v632
    %v634 = vmul.f32 %v629, %v633
    %s635 = scalar_lea.vmem %s0, 24
    %v636 = vld [vmem:[%s635] sm:$0xff]
    %v637 = vpack.c.bf16 %v634, %v634
    %638 = vmatprep.subr.bf16.mxu0 %v158
    %639 = vmatpush1.bf16.msra.mxu0 %v157
    %640 = vmatprep.subr.bf16.mxu0 %v162
    %641 = vmatpush1.bf16.msra.mxu0 %v161
    %642 = vmatprep.subr.bf16.mxu0 %v166
    %643 = vmatpush1.bf16.msra.mxu0 %v165
    %644 = vmatprep.subr.bf16.mxu0 %v170
    %645 = vmatpush1.bf16.msra.mxu0 %v169
    %646 = vmatprep.subr.bf16.mxu0 %v174
    %647 = vmatpush1.bf16.msra.mxu0 %v173
    %648 = vmatprep.subr.bf16.mxu0 %v178
    %649 = vmatpush1.bf16.msra.mxu0 %v177
    %650 = vmatprep.subr.bf16.mxu0 %v182
    %651 = vmatpush1.bf16.msra.mxu0 %v181
    %652 = vmatprep.subr.bf16.mxu0 %v186
    %653 = vmatpush1.bf16.msra.mxu0 %v185
    %654 = vmatprep.subr.bf16.mxu0 0
    %655 = vmatpush1.bf16.msra.mxu0 0
    %656 = vmatprep.subr.bf16.mxu0 0
    %657 = vmatpush1.bf16.msra.mxu0 0
    %658 = vmatprep.subr.bf16.mxu0 0
    %659 = vmatpush1.bf16.msra.mxu0 0
    %660 = vmatprep.subr.bf16.mxu0 0
    %661 = vmatpush1.bf16.msra.mxu0 0
    %662 = vmatprep.subr.bf16.mxu0 0
    %663 = vmatpush1.bf16.msra.mxu0 0
    %664 = vmatprep.subr.bf16.mxu0 0
    %665 = vmatpush1.bf16.msra.mxu0 0
    %666 = vmatprep.subr.bf16.mxu0 0
    %667 = vmatpush1.bf16.msra.mxu0 0
    %668 = vmatprep.subr.bf16.mxu0 0
    %669 = vmatpush1.bf16.msra.mxu0 0
    %670 = vmatprep.mubr.bf16.mxu0 0
    %671 = vmatmul.mubr.bf16.gmra.mrb[0].mxu0 %v637
    %v672 = vpop.f32.mrb[0].mxu0
    %v673 = vadd.f32 0.0, %v672
    %v674 = vpop.f32.mrb[0].mxu0
    %v675 = vadd.f32 0.0, %v674
    %v676 = vpop.f32.mrb[0].mxu0
    %v677 = vpop.f32.mrb[0].mxu0
    %678 = vdwg.mxu0
    %679 = vmatprep.subr.bf16.mxu0 %v160
    %680 = vmatpush1.bf16.msra.mxu0 %v159
    %681 = vmatprep.subr.bf16.mxu0 %v164
    %682 = vmatpush1.bf16.msra.mxu0 %v163
    %683 = vmatprep.subr.bf16.mxu0 %v168
    %684 = vmatpush1.bf16.msra.mxu0 %v167
    %685 = vmatprep.subr.bf16.mxu0 %v172
    %686 = vmatpush1.bf16.msra.mxu0 %v171
    %687 = vmatprep.subr.bf16.mxu0 %v176
    %688 = vmatpush1.bf16.msra.mxu0 %v175
    %689 = vmatprep.subr.bf16.mxu0 %v180
    %690 = vmatpush1.bf16.msra.mxu0 %v179
    %691 = vmatprep.subr.bf16.mxu0 %v184
    %692 = vmatpush1.bf16.msra.mxu0 %v183
    %693 = vmatprep.subr.bf16.mxu0 %v188
    %694 = vmatpush1.bf16.msra.mxu0 %v187
    %695 = vmatprep.subr.bf16.mxu0 0
    %696 = vmatpush1.bf16.msra.mxu0 0
    %697 = vmatprep.subr.bf16.mxu0 0
    %698 = vmatpush1.bf16.msra.mxu0 0
    %699 = vmatprep.subr.bf16.mxu0 0
    %700 = vmatpush1.bf16.msra.mxu0 0
    %701 = vmatprep.subr.bf16.mxu0 0
    %702 = vmatpush1.bf16.msra.mxu0 0
    %703 = vmatprep.subr.bf16.mxu0 0
    %704 = vmatpush1.bf16.msra.mxu0 0
    %705 = vmatprep.subr.bf16.mxu0 0
    %706 = vmatpush1.bf16.msra.mxu0 0
    %707 = vmatprep.subr.bf16.mxu0 0
    %708 = vmatpush1.bf16.msra.mxu0 0
    %709 = vmatprep.subr.bf16.mxu0 0
    %710 = vmatpush1.bf16.msra.mxu0 0
    %711 = vmatprep.mubr.bf16.mxu0 0
    %712 = vmatmul.mubr.bf16.gmra.mrb[0].mxu0 %v637
    %v713 = vpop.f32.mrb[0].mxu0
    %v714 = vadd.f32 0.0, %v713
    %v715 = vpop.f32.mrb[0].mxu0
    %v716 = vadd.f32 0.0, %v715
    %v717 = vpop.f32.mrb[0].mxu0
    %v718 = vpop.f32.mrb[0].mxu0
    %719 = vdwg.mxu0
    %v724 = vcombine.low %v673, %v675
    %v725 = vcombine.low %v714, %v716
    %v727 = vunpack.c.l.s4 1983009808
    %v728 = vunpack.c.0.s8 %v727
    %v729 = vlaneseq
    %v730 = vshrl.u32 %v729, 7
    %v731 = vsub.s32 %v728, %v730
    %v732 = vrot.slane %v724, %v731
    %v734 = vunpack.c.l.s4 1983009808
    %v735 = vunpack.c.0.s8 %v734
    %v736 = vlaneseq
    %v737 = vshrl.u32 %v736, 7
    %v738 = vsub.s32 %v735, %v737
    %v739 = vrot.slane %v725, %v738
    %v740 = vcombine.low %v732, %v739
    %v742 = vadd.f32 %v636, %v740
    %v743 = vxor.u32 %v742, 2147483648
    %v744 = vmul.f32 %v743, 1.442695
    %v745 = vpow.pop %v744
    %v746 = vadd.f32 %v745, 1.0
    %v747 = vrcp.pop %v746
    %v748 = vmul.f32 1.0, %v747
    %v750 = vrot.slane %v742, 2
    %v752 = vxor.u32 %v750, 2147483648
    %v753 = vmul.f32 %v752, 1.442695
    %v754 = vpow.pop %v753
    %v755 = vadd.f32 %v754, 1.0
    %v756 = vrcp.pop %v755
    %v757 = vmul.f32 1.0, %v756
    %v758 = vrot.slane %v742, 4
    %v760 = vtanh.pop %v758
    %v761 = vrot.slane %v742, 6
    %v763 = vxor.u32 %v761, 2147483648
    %v764 = vmul.f32 %v763, 1.442695
    %v765 = vpow.pop %v764
    %v766 = vadd.f32 %v765, 1.0
    %v767 = vrcp.pop %v766
    %v768 = vmul.f32 1.0, %v767
    %v769 = vmul.f32 %v757, %v632
    %v770 = vmul.f32 %v748, %v760
    %v771 = vadd.f32 %v769, %v770
    %v772 = vtanh.pop %v771
    %v773 = vmul.f32 %v768, %v772
    %s774 = scalar_lea.vmem %s0, 32
    %v775 = vld [vmem:[%s774] sm:$0xff]
    %v776 = vpack.c.bf16 %v773, %v773
    %777 = vmatprep.subr.bf16.mxu0 %v158
    %778 = vmatpush1.bf16.msra.mxu0 %v157
    %779 = vmatprep.subr.bf16.mxu0 %v162
    %780 = vmatpush1.bf16.msra.mxu0 %v161
    %781 = vmatprep.subr.bf16.mxu0 %v166
    %782 = vmatpush1.bf16.msra.mxu0 %v165
    %783 = vmatprep.subr.bf16.mxu0 %v170
    %784 = vmatpush1.bf16.msra.mxu0 %v169
    %785 = vmatprep.subr.bf16.mxu0 %v174
    %786 = vmatpush1.bf16.msra.mxu0 %v173
    %787 = vmatprep.subr.bf16.mxu0 %v178
    %788 = vmatpush1.bf16.msra.mxu0 %v177
    %789 = vmatprep.subr.bf16.mxu0 %v182
    %790 = vmatpush1.bf16.msra.mxu0 %v181
    %791 = vmatprep.subr.bf16.mxu0 %v186
    %792 = vmatpush1.bf16.msra.mxu0 %v185
    %793 = vmatprep.subr.bf16.mxu0 0
    %794 = vmatpush1.bf16.msra.mxu0 0
    %795 = vmatprep.subr.bf16.mxu0 0
    %796 = vmatpush1.bf16.msra.mxu0 0
    %797 = vmatprep.subr.bf16.mxu0 0
    %798 = vmatpush1.bf16.msra.mxu0 0
    %799 = vmatprep.subr.bf16.mxu0 0
    %800 = vmatpush1.bf16.msra.mxu0 0
    %801 = vmatprep.subr.bf16.mxu0 0
    %802 = vmatpush1.bf16.msra.mxu0 0
    %803 = vmatprep.subr.bf16.mxu0 0
    %804 = vmatpush1.bf16.msra.mxu0 0
    %805 = vmatprep.subr.bf16.mxu0 0
    %806 = vmatpush1.bf16.msra.mxu0 0
    %807 = vmatprep.subr.bf16.mxu0 0
    %808 = vmatpush1.bf16.msra.mxu0 0
    %809 = vmatprep.mubr.bf16.mxu0 0
    %810 = vmatmul.mubr.bf16.gmra.mrb[0].mxu0 %v776
    %v811 = vpop.f32.mrb[0].mxu0
    %v812 = vadd.f32 0.0, %v811
    %v813 = vpop.f32.mrb[0].mxu0
    %v814 = vadd.f32 0.0, %v813
    %v815 = vpop.f32.mrb[0].mxu0
    %v816 = vpop.f32.mrb[0].mxu0
    %817 = vdwg.mxu0
    %818 = vmatprep.subr.bf16.mxu0 %v160
    %819 = vmatpush1.bf16.msra.mxu0 %v159
    %820 = vmatprep.subr.bf16.mxu0 %v164
    %821 = vmatpush1.bf16.msra.mxu0 %v163
    %822 = vmatprep.subr.bf16.mxu0 %v168
    %823 = vmatpush1.bf16.msra.mxu0 %v167
    %824 = vmatprep.subr.bf16.mxu0 %v172
    %825 = vmatpush1.bf16.msra.mxu0 %v171
    %826 = vmatprep.subr.bf16.mxu0 %v176
    %827 = vmatpush1.bf16.msra.mxu0 %v175
    %828 = vmatprep.subr.bf16.mxu0 %v180
    %829 = vmatpush1.bf16.msra.mxu0 %v179
    %830 = vmatprep.subr.bf16.mxu0 %v184
    %831 = vmatpush1.bf16.msra.mxu0 %v183
    %832 = vmatprep.subr.bf16.mxu0 %v188
    %833 = vmatpush1.bf16.msra.mxu0 %v187
    %834 = vmatprep.subr.bf16.mxu0 0
    %835 = vmatpush1.bf16.msra.mxu0 0
    %836 = vmatprep.subr.bf16.mxu0 0
    %837 = vmatpush1.bf16.msra.mxu0 0
    %838 = vmatprep.subr.bf16.mxu0 0
    %839 = vmatpush1.bf16.msra.mxu0 0
    %840 = vmatprep.subr.bf16.mxu0 0
    %841 = vmatpush1.bf16.msra.mxu0 0
    %842 = vmatprep.subr.bf16.mxu0 0
    %843 = vmatpush1.bf16.msra.mxu0 0
    %844 = vmatprep.subr.bf16.mxu0 0
    %845 = vmatpush1.bf16.msra.mxu0 0
    %846 = vmatprep.subr.bf16.mxu0 0
    %847 = vmatpush1.bf16.msra.mxu0 0
    %848 = vmatprep.subr.bf16.mxu0 0
    %849 = vmatpush1.bf16.msra.mxu0 0
    %850 = vmatprep.mubr.bf16.mxu0 0
    %851 = vmatmul.mubr.bf16.gmra.mrb[0].mxu0 %v776
    %v852 = vpop.f32.mrb[0].mxu0
    %v853 = vadd.f32 0.0, %v852
    %v854 = vpop.f32.mrb[0].mxu0
    %v855 = vadd.f32 0.0, %v854
    %v856 = vpop.f32.mrb[0].mxu0
    %v857 = vpop.f32.mrb[0].mxu0
    %858 = vdwg.mxu0
    %v863 = vcombine.low %v812, %v814
    %v864 = vcombine.low %v853, %v855
    %v866 = vunpack.c.l.s4 1983009808
    %v867 = vunpack.c.0.s8 %v866
    %v868 = vlaneseq
    %v869 = vshrl.u32 %v868, 7
    %v870 = vsub.s32 %v867, %v869
    %v871 = vrot.slane %v863, %v870
    %v873 = vunpack.c.l.s4 1983009808
    %v874 = vunpack.c.0.s8 %v873
    %v875 = vlaneseq
    %v876 = vshrl.u32 %v875, 7
    %v877 = vsub.s32 %v874, %v876
    %v878 = vrot.slane %v864, %v877
    %v879 = vcombine.low %v871, %v878
    %v881 = vadd.f32 %v775, %v879
    %v882 = vxor.u32 %v881, 2147483648
    %v883 = vmul.f32 %v882, 1.442695
    %v884 = vpow.pop %v883
    %v885 = vadd.f32 %v884, 1.0
    %v886 = vrcp.pop %v885
    %v887 = vmul.f32 1.0, %v886
    %v889 = vrot.slane %v881, 2
    %v891 = vxor.u32 %v889, 2147483648
    %v892 = vmul.f32 %v891, 1.442695
    %v893 = vpow.pop %v892
    %v894 = vadd.f32 %v893, 1.0
    %v895 = vrcp.pop %v894
    %v896 = vmul.f32 1.0, %v895
    %v897 = vrot.slane %v881, 4
    %v899 = vtanh.pop %v897
    %v900 = vrot.slane %v881, 6
    %v902 = vxor.u32 %v900, 2147483648
    %v903 = vmul.f32 %v902, 1.442695
    %v904 = vpow.pop %v903
    %v905 = vadd.f32 %v904, 1.0
    %v906 = vrcp.pop %v905
    %v907 = vmul.f32 1.0, %v906
    %v908 = vmul.f32 %v896, %v771
    %v909 = vmul.f32 %v887, %v899
    %v910 = vadd.f32 %v908, %v909
    %v911 = vtanh.pop %v910
    %v912 = vmul.f32 %v907, %v911
    %s913 = scalar_lea.vmem %s0, 40
    %v914 = vld [vmem:[%s913] sm:$0xff]
    %v915 = vpack.c.bf16 %v912, %v912
    %916 = vmatprep.subr.bf16.mxu0 %v158
    %917 = vmatpush1.bf16.msra.mxu0 %v157
    %918 = vmatprep.subr.bf16.mxu0 %v162
    %919 = vmatpush1.bf16.msra.mxu0 %v161
    %920 = vmatprep.subr.bf16.mxu0 %v166
    %921 = vmatpush1.bf16.msra.mxu0 %v165
    %922 = vmatprep.subr.bf16.mxu0 %v170
    %923 = vmatpush1.bf16.msra.mxu0 %v169
    %924 = vmatprep.subr.bf16.mxu0 %v174
    %925 = vmatpush1.bf16.msra.mxu0 %v173
    %926 = vmatprep.subr.bf16.mxu0 %v178
    %927 = vmatpush1.bf16.msra.mxu0 %v177
    %928 = vmatprep.subr.bf16.mxu0 %v182
    %929 = vmatpush1.bf16.msra.mxu0 %v181
    %930 = vmatprep.subr.bf16.mxu0 %v186
    %931 = vmatpush1.bf16.msra.mxu0 %v185
    %932 = vmatprep.subr.bf16.mxu0 0
    %933 = vmatpush1.bf16.msra.mxu0 0
    %934 = vmatprep.subr.bf16.mxu0 0
    %935 = vmatpush1.bf16.msra.mxu0 0
    %936 = vmatprep.subr.bf16.mxu0 0
    %937 = vmatpush1.bf16.msra.mxu0 0
    %938 = vmatprep.subr.bf16.mxu0 0
    %939 = vmatpush1.bf16.msra.mxu0 0
    %940 = vmatprep.subr.bf16.mxu0 0
    %941 = vmatpush1.bf16.msra.mxu0 0
    %942 = vmatprep.subr.bf16.mxu0 0
    %943 = vmatpush1.bf16.msra.mxu0 0
    %944 = vmatprep.subr.bf16.mxu0 0
    %945 = vmatpush1.bf16.msra.mxu0 0
    %946 = vmatprep.subr.bf16.mxu0 0
    %947 = vmatpush1.bf16.msra.mxu0 0
    %948 = vmatprep.mubr.bf16.mxu0 0
    %949 = vmatmul.mubr.bf16.gmra.mrb[0].mxu0 %v915
    %v950 = vpop.f32.mrb[0].mxu0
    %v951 = vadd.f32 0.0, %v950
    %v952 = vpop.f32.mrb[0].mxu0
    %v953 = vadd.f32 0.0, %v952
    %v954 = vpop.f32.mrb[0].mxu0
    %v955 = vpop.f32.mrb[0].mxu0
    %956 = vdwg.mxu0
    %957 = vmatprep.subr.bf16.mxu0 %v160
    %958 = vmatpush1.bf16.msra.mxu0 %v159
    %959 = vmatprep.subr.bf16.mxu0 %v164
    %960 = vmatpush1.bf16.msra.mxu0 %v163
    %961 = vmatprep.subr.bf16.mxu0 %v168
    %962 = vmatpush1.bf16.msra.mxu0 %v167
    %963 = vmatprep.subr.bf16.mxu0 %v172
    %964 = vmatpush1.bf16.msra.mxu0 %v171
    %965 = vmatprep.subr.bf16.mxu0 %v176
    %966 = vmatpush1.bf16.msra.mxu0 %v175
    %967 = vmatprep.subr.bf16.mxu0 %v180
    %968 = vmatpush1.bf16.msra.mxu0 %v179
    %969 = vmatprep.subr.bf16.mxu0 %v184
    %970 = vmatpush1.bf16.msra.mxu0 %v183
    %971 = vmatprep.subr.bf16.mxu0 %v188
    %972 = vmatpush1.bf16.msra.mxu0 %v187
    %973 = vmatprep.subr.bf16.mxu0 0
    %974 = vmatpush1.bf16.msra.mxu0 0
    %975 = vmatprep.subr.bf16.mxu0 0
    %976 = vmatpush1.bf16.msra.mxu0 0
    %977 = vmatprep.subr.bf16.mxu0 0
    %978 = vmatpush1.bf16.msra.mxu0 0
    %979 = vmatprep.subr.bf16.mxu0 0
    %980 = vmatpush1.bf16.msra.mxu0 0
    %981 = vmatprep.subr.bf16.mxu0 0
    %982 = vmatpush1.bf16.msra.mxu0 0
    %983 = vmatprep.subr.bf16.mxu0 0
    %984 = vmatpush1.bf16.msra.mxu0 0
    %985 = vmatprep.subr.bf16.mxu0 0
    %986 = vmatpush1.bf16.msra.mxu0 0
    %987 = vmatprep.subr.bf16.mxu0 0
    %988 = vmatpush1.bf16.msra.mxu0 0
    %989 = vmatprep.mubr.bf16.mxu0 0
    %990 = vmatmul.mubr.bf16.gmra.mrb[0].mxu0 %v915
    %v991 = vpop.f32.mrb[0].mxu0
    %v992 = vadd.f32 0.0, %v991
    %v993 = vpop.f32.mrb[0].mxu0
    %v994 = vadd.f32 0.0, %v993
    %v995 = vpop.f32.mrb[0].mxu0
    %v996 = vpop.f32.mrb[0].mxu0
    %997 = vdwg.mxu0
    %v1002 = vcombine.low %v951, %v953
    %v1003 = vcombine.low %v992, %v994
    %v1005 = vunpack.c.l.s4 1983009808
    %v1006 = vunpack.c.0.s8 %v1005
    %v1007 = vlaneseq
    %v1008 = vshrl.u32 %v1007, 7
    %v1009 = vsub.s32 %v1006, %v1008
    %v1010 = vrot.slane %v1002, %v1009
    %v1012 = vunpack.c.l.s4 1983009808
    %v1013 = vunpack.c.0.s8 %v1012
    %v1014 = vlaneseq
    %v1015 = vshrl.u32 %v1014, 7
    %v1016 = vsub.s32 %v1013, %v1015
    %v1017 = vrot.slane %v1003, %v1016
    %v1018 = vcombine.low %v1010, %v1017
    %v1020 = vadd.f32 %v914, %v1018
    %v1021 = vxor.u32 %v1020, 2147483648
    %v1022 = vmul.f32 %v1021, 1.442695
    %v1023 = vpow.pop %v1022
    %v1024 = vadd.f32 %v1023, 1.0
    %v1025 = vrcp.pop %v1024
    %v1026 = vmul.f32 1.0, %v1025
    %v1028 = vrot.slane %v1020, 2
    %v1030 = vxor.u32 %v1028, 2147483648
    %v1031 = vmul.f32 %v1030, 1.442695
    %v1032 = vpow.pop %v1031
    %v1033 = vadd.f32 %v1032, 1.0
    %v1034 = vrcp.pop %v1033
    %v1035 = vmul.f32 1.0, %v1034
    %v1036 = vrot.slane %v1020, 4
    %v1038 = vtanh.pop %v1036
    %v1039 = vrot.slane %v1020, 6
    %v1041 = vxor.u32 %v1039, 2147483648
    %v1042 = vmul.f32 %v1041, 1.442695
    %v1043 = vpow.pop %v1042
    %v1044 = vadd.f32 %v1043, 1.0
    %v1045 = vrcp.pop %v1044
    %v1046 = vmul.f32 1.0, %v1045
    %v1047 = vmul.f32 %v1035, %v910
    %v1048 = vmul.f32 %v1026, %v1038
    %v1049 = vadd.f32 %v1047, %v1048
    %v1050 = vtanh.pop %v1049
    %v1051 = vmul.f32 %v1046, %v1050
    %s1052 = scalar_lea.vmem %s0, 48
    %v1053 = vld [vmem:[%s1052] sm:$0xff]
    %v1054 = vpack.c.bf16 %v1051, %v1051
    %1055 = vmatprep.subr.bf16.mxu0 %v158
    %1056 = vmatpush1.bf16.msra.mxu0 %v157
    %1057 = vmatprep.subr.bf16.mxu0 %v162
    %1058 = vmatpush1.bf16.msra.mxu0 %v161
    %1059 = vmatprep.subr.bf16.mxu0 %v166
    %1060 = vmatpush1.bf16.msra.mxu0 %v165
    %1061 = vmatprep.subr.bf16.mxu0 %v170
    %1062 = vmatpush1.bf16.msra.mxu0 %v169
    %1063 = vmatprep.subr.bf16.mxu0 %v174
    %1064 = vmatpush1.bf16.msra.mxu0 %v173
    %1065 = vmatprep.subr.bf16.mxu0 %v178
    %1066 = vmatpush1.bf16.msra.mxu0 %v177
    %1067 = vmatprep.subr.bf16.mxu0 %v182
    %1068 = vmatpush1.bf16.msra.mxu0 %v181
    %1069 = vmatprep.subr.bf16.mxu0 %v186
    %1070 = vmatpush1.bf16.msra.mxu0 %v185
    %1071 = vmatprep.subr.bf16.mxu0 0
    %1072 = vmatpush1.bf16.msra.mxu0 0
    %1073 = vmatprep.subr.bf16.mxu0 0
    %1074 = vmatpush1.bf16.msra.mxu0 0
    %1075 = vmatprep.subr.bf16.mxu0 0
    %1076 = vmatpush1.bf16.msra.mxu0 0
    %1077 = vmatprep.subr.bf16.mxu0 0
    %1078 = vmatpush1.bf16.msra.mxu0 0
    %1079 = vmatprep.subr.bf16.mxu0 0
    %1080 = vmatpush1.bf16.msra.mxu0 0
    %1081 = vmatprep.subr.bf16.mxu0 0
    %1082 = vmatpush1.bf16.msra.mxu0 0
    %1083 = vmatprep.subr.bf16.mxu0 0
    %1084 = vmatpush1.bf16.msra.mxu0 0
    %1085 = vmatprep.subr.bf16.mxu0 0
    %1086 = vmatpush1.bf16.msra.mxu0 0
    %1087 = vmatprep.mubr.bf16.mxu0 0
    %1088 = vmatmul.mubr.bf16.gmra.mrb[0].mxu0 %v1054
    %v1089 = vpop.f32.mrb[0].mxu0
    %v1090 = vadd.f32 0.0, %v1089
    %v1091 = vpop.f32.mrb[0].mxu0
    %v1092 = vadd.f32 0.0, %v1091
    %v1093 = vpop.f32.mrb[0].mxu0
    %v1094 = vpop.f32.mrb[0].mxu0
    %1095 = vdwg.mxu0
    %1096 = vmatprep.subr.bf16.mxu0 %v160
    %1097 = vmatpush1.bf16.msra.mxu0 %v159
    %1098 = vmatprep.subr.bf16.mxu0 %v164
    %1099 = vmatpush1.bf16.msra.mxu0 %v163
    %1100 = vmatprep.subr.bf16.mxu0 %v168
    %1101 = vmatpush1.bf16.msra.mxu0 %v167
    %1102 = vmatprep.subr.bf16.mxu0 %v172
    %1103 = vmatpush1.bf16.msra.mxu0 %v171
    %1104 = vmatprep.subr.bf16.mxu0 %v176
    %1105 = vmatpush1.bf16.msra.mxu0 %v175
    %1106 = vmatprep.subr.bf16.mxu0 %v180
    %1107 = vmatpush1.bf16.msra.mxu0 %v179
    %1108 = vmatprep.subr.bf16.mxu0 %v184
    %1109 = vmatpush1.bf16.msra.mxu0 %v183
    %1110 = vmatprep.subr.bf16.mxu0 %v188
    %1111 = vmatpush1.bf16.msra.mxu0 %v187
    %1112 = vmatprep.subr.bf16.mxu0 0
    %1113 = vmatpush1.bf16.msra.mxu0 0
    %1114 = vmatprep.subr.bf16.mxu0 0
    %1115 = vmatpush1.bf16.msra.mxu0 0
    %1116 = vmatprep.subr.bf16.mxu0 0
    %1117 = vmatpush1.bf16.msra.mxu0 0
    %1118 = vmatprep.subr.bf16.mxu0 0
    %1119 = vmatpush1.bf16.msra.mxu0 0
    %1120 = vmatprep.subr.bf16.mxu0 0
    %1121 = vmatpush1.bf16.msra.mxu0 0
    %1122 = vmatprep.subr.bf16.mxu0 0
    %1123 = vmatpush1.bf16.msra.mxu0 0
    %1124 = vmatprep.subr.bf16.mxu0 0
    %1125 = vmatpush1.bf16.msra.mxu0 0
    %1126 = vmatprep.subr.bf16.mxu0 0
    %1127 = vmatpush1.bf16.msra.mxu0 0
    %1128 = vmatprep.mubr.bf16.mxu0 0
    %1129 = vmatmul.mubr.bf16.gmra.mrb[0].mxu0 %v1054
    %v1130 = vpop.f32.mrb[0].mxu0
    %v1131 = vadd.f32 0.0, %v1130
    %v1132 = vpop.f32.mrb[0].mxu0
    %v1133 = vadd.f32 0.0, %v1132
    %v1134 = vpop.f32.mrb[0].mxu0
    %v1135 = vpop.f32.mrb[0].mxu0
    %1136 = vdwg.mxu0
    %v1141 = vcombine.low %v1090, %v1092
    %v1142 = vcombine.low %v1131, %v1133
    %v1144 = vunpack.c.l.s4 1983009808
    %v1145 = vunpack.c.0.s8 %v1144
    %v1146 = vlaneseq
    %v1147 = vshrl.u32 %v1146, 7
    %v1148 = vsub.s32 %v1145, %v1147
    %v1149 = vrot.slane %v1141, %v1148
    %v1151 = vunpack.c.l.s4 1983009808
    %v1152 = vunpack.c.0.s8 %v1151
    %v1153 = vlaneseq
    %v1154 = vshrl.u32 %v1153, 7
    %v1155 = vsub.s32 %v1152, %v1154
    %v1156 = vrot.slane %v1142, %v1155
    %v1157 = vcombine.low %v1149, %v1156
    %v1159 = vadd.f32 %v1053, %v1157
    %v1160 = vxor.u32 %v1159, 2147483648
    %v1161 = vmul.f32 %v1160, 1.442695
    %v1162 = vpow.pop %v1161
    %v1163 = vadd.f32 %v1162, 1.0
    %v1164 = vrcp.pop %v1163
    %v1165 = vmul.f32 1.0, %v1164
    %v1167 = vrot.slane %v1159, 2
    %v1169 = vxor.u32 %v1167, 2147483648
    %v1170 = vmul.f32 %v1169, 1.442695
    %v1171 = vpow.pop %v1170
    %v1172 = vadd.f32 %v1171, 1.0
    %v1173 = vrcp.pop %v1172
    %v1174 = vmul.f32 1.0, %v1173
    %v1175 = vrot.slane %v1159, 4
    %v1177 = vtanh.pop %v1175
    %v1178 = vrot.slane %v1159, 6
    %v1180 = vxor.u32 %v1178, 2147483648
    %v1181 = vmul.f32 %v1180, 1.442695
    %v1182 = vpow.pop %v1181
    %v1183 = vadd.f32 %v1182, 1.0
    %v1184 = vrcp.pop %v1183
    %v1185 = vmul.f32 1.0, %v1184
    %v1186 = vmul.f32 %v1174, %v1049
    %v1187 = vmul.f32 %v1165, %v1177
    %v1188 = vadd.f32 %v1186, %v1187
    %v1189 = vtanh.pop %v1188
    %v1190 = vmul.f32 %v1185, %v1189
    %s1191 = scalar_lea.vmem %s0, 56
    %v1192 = vld [vmem:[%s1191] sm:$0xff]
    %v1193 = vpack.c.bf16 %v1190, %v1190
    %1194 = vmatprep.subr.bf16.mxu0 %v158
    %1195 = vmatpush1.bf16.msra.mxu0 %v157
    %1196 = vmatprep.subr.bf16.mxu0 %v162
    %1197 = vmatpush1.bf16.msra.mxu0 %v161
    %1198 = vmatprep.subr.bf16.mxu0 %v166
    %1199 = vmatpush1.bf16.msra.mxu0 %v165
    %1200 = vmatprep.subr.bf16.mxu0 %v170
    %1201 = vmatpush1.bf16.msra.mxu0 %v169
    %1202 = vmatprep.subr.bf16.mxu0 %v174
    %1203 = vmatpush1.bf16.msra.mxu0 %v173
    %1204 = vmatprep.subr.bf16.mxu0 %v178
    %1205 = vmatpush1.bf16.msra.mxu0 %v177
    %1206 = vmatprep.subr.bf16.mxu0 %v182
    %1207 = vmatpush1.bf16.msra.mxu0 %v181
    %1208 = vmatprep.subr.bf16.mxu0 %v186
    %1209 = vmatpush1.bf16.msra.mxu0 %v185
    %1210 = vmatprep.subr.bf16.mxu0 0
    %1211 = vmatpush1.bf16.msra.mxu0 0
    %1212 = vmatprep.subr.bf16.mxu0 0
    %1213 = vmatpush1.bf16.msra.mxu0 0
    %1214 = vmatprep.subr.bf16.mxu0 0
    %1215 = vmatpush1.bf16.msra.mxu0 0
    %1216 = vmatprep.subr.bf16.mxu0 0
    %1217 = vmatpush1.bf16.msra.mxu0 0
    %1218 = vmatprep.subr.bf16.mxu0 0
    %1219 = vmatpush1.bf16.msra.mxu0 0
    %1220 = vmatprep.subr.bf16.mxu0 0
    %1221 = vmatpush1.bf16.msra.mxu0 0
    %1222 = vmatprep.subr.bf16.mxu0 0
    %1223 = vmatpush1.bf16.msra.mxu0 0
    %1224 = vmatprep.subr.bf16.mxu0 0
    %1225 = vmatpush1.bf16.msra.mxu0 0
    %1226 = vmatprep.mubr.bf16.mxu0 0
    %1227 = vmatmul.mubr.bf16.gmra.mrb[0].mxu0 %v1193
    %v1228 = vpop.f32.mrb[0].mxu0
    %v1229 = vadd.f32 0.0, %v1228
    %v1230 = vpop.f32.mrb[0].mxu0
    %v1231 = vadd.f32 0.0, %v1230
    %v1232 = vpop.f32.mrb[0].mxu0
    %v1233 = vpop.f32.mrb[0].mxu0
    %1234 = vdwg.mxu0
    %1235 = vmatprep.subr.bf16.mxu0 %v160
    %1236 = vmatpush1.bf16.msra.mxu0 %v159
    %1237 = vmatprep.subr.bf16.mxu0 %v164
    %1238 = vmatpush1.bf16.msra.mxu0 %v163
    %1239 = vmatprep.subr.bf16.mxu0 %v168
    %1240 = vmatpush1.bf16.msra.mxu0 %v167
    %1241 = vmatprep.subr.bf16.mxu0 %v172
    %1242 = vmatpush1.bf16.msra.mxu0 %v171
    %1243 = vmatprep.subr.bf16.mxu0 %v176
    %1244 = vmatpush1.bf16.msra.mxu0 %v175
    %1245 = vmatprep.subr.bf16.mxu0 %v180
    %1246 = vmatpush1.bf16.msra.mxu0 %v179
    %1247 = vmatprep.subr.bf16.mxu0 %v184
    %1248 = vmatpush1.bf16.msra.mxu0 %v183
    %1249 = vmatprep.subr.bf16.mxu0 %v188
    %1250 = vmatpush1.bf16.msra.mxu0 %v187
    %1251 = vmatprep.subr.bf16.mxu0 0
    %1252 = vmatpush1.bf16.msra.mxu0 0
    %1253 = vmatprep.subr.bf16.mxu0 0
    %1254 = vmatpush1.bf16.msra.mxu0 0
    %1255 = vmatprep.subr.bf16.mxu0 0
    %1256 = vmatpush1.bf16.msra.mxu0 0
    %1257 = vmatprep.subr.bf16.mxu0 0
    %1258 = vmatpush1.bf16.msra.mxu0 0
    %1259 = vmatprep.subr.bf16.mxu0 0
    %1260 = vmatpush1.bf16.msra.mxu0 0
    %1261 = vmatprep.subr.bf16.mxu0 0
    %1262 = vmatpush1.bf16.msra.mxu0 0
    %1263 = vmatprep.subr.bf16.mxu0 0
    %1264 = vmatpush1.bf16.msra.mxu0 0
    %1265 = vmatprep.subr.bf16.mxu0 0
    %1266 = vmatpush1.bf16.msra.mxu0 0
    %1267 = vmatprep.mubr.bf16.mxu0 0
    %1268 = vmatmul.mubr.bf16.gmra.mrb[0].mxu0 %v1193
    %v1269 = vpop.f32.mrb[0].mxu0
    %v1270 = vadd.f32 0.0, %v1269
    %v1271 = vpop.f32.mrb[0].mxu0
    %v1272 = vadd.f32 0.0, %v1271
    %v1273 = vpop.f32.mrb[0].mxu0
    %v1274 = vpop.f32.mrb[0].mxu0
    %1275 = vdwg.mxu0
    %v1280 = vcombine.low %v1229, %v1231
    %v1281 = vcombine.low %v1270, %v1272
    %v1283 = vunpack.c.l.s4 1983009808
    %v1284 = vunpack.c.0.s8 %v1283
    %v1285 = vlaneseq
    %v1286 = vshrl.u32 %v1285, 7
    %v1287 = vsub.s32 %v1284, %v1286
    %v1288 = vrot.slane %v1280, %v1287
    %v1290 = vunpack.c.l.s4 1983009808
    %v1291 = vunpack.c.0.s8 %v1290
    %v1292 = vlaneseq
    %v1293 = vshrl.u32 %v1292, 7
    %v1294 = vsub.s32 %v1291, %v1293
    %v1295 = vrot.slane %v1281, %v1294
    %v1296 = vcombine.low %v1288, %v1295
    %v1298 = vadd.f32 %v1192, %v1296
    %v1299 = vxor.u32 %v1298, 2147483648
    %v1300 = vmul.f32 %v1299, 1.442695
    %v1301 = vpow.pop %v1300
    %v1302 = vadd.f32 %v1301, 1.0
    %v1303 = vrcp.pop %v1302
    %v1304 = vmul.f32 1.0, %v1303
    %v1306 = vrot.slane %v1298, 2
    %v1308 = vxor.u32 %v1306, 2147483648
    %v1309 = vmul.f32 %v1308, 1.442695
    %v1310 = vpow.pop %v1309
    %v1311 = vadd.f32 %v1310, 1.0
    %v1312 = vrcp.pop %v1311
    %v1313 = vmul.f32 1.0, %v1312
    %v1314 = vrot.slane %v1298, 4
    %v1316 = vtanh.pop %v1314
    %v1317 = vrot.slane %v1298, 6
    %v1319 = vxor.u32 %v1317, 2147483648
    %v1320 = vmul.f32 %v1319, 1.442695
    %v1321 = vpow.pop %v1320
    %v1322 = vadd.f32 %v1321, 1.0
    %v1323 = vrcp.pop %v1322
    %v1324 = vmul.f32 1.0, %v1323
    %v1325 = vmul.f32 %v1313, %v1188
    %v1326 = vmul.f32 %v1304, %v1316
    %v1327 = vadd.f32 %v1325, %v1326
    %v1328 = vtanh.pop %v1327
    %v1329 = vmul.f32 %v1324, %v1328
    %1330 = vst [vmem:[#allocation2] sm:$0x3] %v1329
    %1331 = vst [vmem:[#allocation3] sm:$0x3] %v1327
    // Predicated region
    $region22: #{lstm_forward.7} parent=1 // pred_check
      %p1332 = pneg %p19
    $region23: #{lstm_forward.7} parent=1 // pred_check_branch
      %1334 = sbr.rel (%p1332) target = $region25
    $region24: #{lstm_forward.7} parent=1 // pred_region
      %v1335 = vld [vmem:[#allocation2] sm:$0x3]
      %v1336 = vpack.c.bf16 %v1335, %v1335
      %v1337 = vld [vmem:[%s2] sm:$0xf]
      %v1338 = vld [vmem:[%s2 + $0x4] sm:$0xf]
      %v1339 = vld [vmem:[%s2 + $0x8] sm:$0xf]
      %v1340 = vld [vmem:[%s2 + $0xc] sm:$0xf]
      %v1341 = vld [vmem:[%s2 + $0x10] sm:$0xf]
      %v1342 = vld [vmem:[%s2 + $0x14] sm:$0xf]
      %v1343 = vld [vmem:[%s2 + $0x18] sm:$0xf]
      %v1344 = vld [vmem:[%s2 + $0x1c] sm:$0xf]
      %v1345 = vld [vmem:[%s2 + $0x20] sm:$0xf]
      %v1346 = vld [vmem:[%s2 + $0x24] sm:$0xf]
      %v1347 = vld [vmem:[%s2 + $0x28] sm:$0xf]
      %v1348 = vld [vmem:[%s2 + $0x2c] sm:$0xf]
      %v1349 = vld [vmem:[%s2 + $0x30] sm:$0xf]
      %v1350 = vld [vmem:[%s2 + $0x34] sm:$0xf]
      %v1351 = vld [vmem:[%s2 + $0x38] sm:$0xf]
      %v1352 = vld [vmem:[%s2 + $0x3c] sm:$0xf]
      %v1353 = vld [vmem:[%s3] sm:$0x1]
      %v1355 = vlaneseq
      %v1356 = vshrl.u32 %v1355, 7
      %v1357 = vsub.s32 0, %v1356
      %v1358 = vrot.slane %v1353, %v1357
      %v1376 = vunpack.c.l.b16 %v1337
      %v1377 = vunpack.c.l.b16 %v1338
      %v1378 = vunpack.c.l.b16 %v1339
      %v1379 = vunpack.c.l.b16 %v1340
      %v1380 = vunpack.c.l.b16 %v1341
      %v1381 = vunpack.c.l.b16 %v1342
      %v1382 = vunpack.c.l.b16 %v1343
      %v1383 = vunpack.c.l.b16 %v1344
      %v1384 = vunpack.c.l.b16 %v1345
      %v1385 = vunpack.c.l.b16 %v1346
      %v1386 = vunpack.c.l.b16 %v1347
      %v1387 = vunpack.c.l.b16 %v1348
      %v1388 = vunpack.c.l.b16 %v1349
      %v1389 = vunpack.c.l.b16 %v1350
      %v1390 = vunpack.c.l.b16 %v1351
      %v1391 = vunpack.c.l.b16 %v1352
      %v1392 = vpack.c.b16 %v1377, %v1376
      %v1393 = vpack.c.b16 %v1379, %v1378
      %v1394 = vpack.c.b16 %v1381, %v1380
      %v1395 = vpack.c.b16 %v1383, %v1382
      %v1396 = vpack.c.b16 %v1385, %v1384
      %v1397 = vpack.c.b16 %v1387, %v1386
      %v1398 = vpack.c.b16 %v1389, %v1388
      %v1399 = vpack.c.b16 %v1391, %v1390
      %1408 = vmatprep.subr.bf16.mxu0 0
      %1409 = vmatpush1.bf16.msra.mxu0 %v1392
      %1410 = vmatprep.subr.bf16.mxu0 0
      %1411 = vmatpush1.bf16.msra.mxu0 %v1393
      %1412 = vmatprep.subr.bf16.mxu0 0
      %1413 = vmatpush1.bf16.msra.mxu0 %v1394
      %1414 = vmatprep.subr.bf16.mxu0 0
      %1415 = vmatpush1.bf16.msra.mxu0 %v1395
      %1416 = vmatprep.subr.bf16.mxu0 0
      %1417 = vmatpush1.bf16.msra.mxu0 %v1396
      %1418 = vmatprep.subr.bf16.mxu0 0
      %1419 = vmatpush1.bf16.msra.mxu0 %v1397
      %1420 = vmatprep.subr.bf16.mxu0 0
      %1421 = vmatpush1.bf16.msra.mxu0 %v1398
      %1422 = vmatprep.subr.bf16.mxu0 0
      %1423 = vmatpush1.bf16.msra.mxu0 %v1399
      %1424 = vmatprep.subr.bf16.mxu0 0
      %1425 = vmatpush1.bf16.msra.mxu0 0
      %1426 = vmatprep.subr.bf16.mxu0 0
      %1427 = vmatpush1.bf16.msra.mxu0 0
      %1428 = vmatprep.subr.bf16.mxu0 0
      %1429 = vmatpush1.bf16.msra.mxu0 0
      %1430 = vmatprep.subr.bf16.mxu0 0
      %1431 = vmatpush1.bf16.msra.mxu0 0
      %1432 = vmatprep.subr.bf16.mxu0 0
      %1433 = vmatpush1.bf16.msra.mxu0 0
      %1434 = vmatprep.subr.bf16.mxu0 0
      %1435 = vmatpush1.bf16.msra.mxu0 0
      %1436 = vmatprep.subr.bf16.mxu0 0
      %1437 = vmatpush1.bf16.msra.mxu0 0
      %1438 = vmatprep.subr.bf16.mxu0 0
      %1439 = vmatpush1.bf16.msra.mxu0 0
      %1440 = vmatprep.mubr.bf16.mxu0 0
      %1441 = vmatmul.mubr.bf16.gmra.mrb[0].mxu0 %v1336
      %v1442 = vpop.f32.mrb[0].mxu0
      %v1443 = vadd.f32 %v1358, %v1442
      %v1444 = vpop.f32.mrb[0].mxu0
      %v1445 = vpop.f32.mrb[0].mxu0
      %v1446 = vpop.f32.mrb[0].mxu0
      %1447 = vdwg.mxu0
      %vm1448 = vcmask 91136
      %1449 = vst.msk [vmem:[#allocation4] sm:$0x3] %vm1448, %v1443
    $region25: #{lstm_forward.7} parent=1 // pred_fallthru
      _
    // Predicated region
    $region26: #{lstm_forward.7} parent=1 // pred_check
      _
    $region27: #{lstm_forward.7} parent=1 // pred_check_branch
      %1451 = sbr.rel (0) target = $region29
    $region28: #{lstm_forward.7} parent=1 // pred_region
      %s1453 = ssub.s32 32, 32
      %1454 = vsyncadd [#allocation5], %s1453
      %s1456 = sshll.u32 [#allocation4], 4
      %s1457 = int_to_ptr.vmem [resolvable:$true] %s1456
      %1459 = dma.vmem_to_hbm [thread:$0]  %s1457, 32, %s4, [#allocation5]
    $region29: #{lstm_forward.7} parent=1 // pred_fallthru
      _
    // Predicated region
    $region30: #{lstm_forward.7} parent=1 // pred_check
      _
    $region31: #{lstm_forward.7} parent=1 // pred_check_branch
      %1461 = sbr.rel (0) target = $region33
    $region32: #{lstm_forward.7} parent=1 // pred_region
      %1462 = dma.done [#allocation5], 32
    $region33: #{lstm_forward.7} parent=1 // pred_fallthru
      _
    %1463 = vsyncpa [#allocation5], 1

// kernel: lstm_forward.5
$region0: #{lstm_forward.5}
  #allocation0 [shape = 'u32[]', space=smem, size = 0x4, offset = 0x4, fixed_abs, tag = 'smem constant byte address 0x4 - core index']
  #allocation1 [shape = 'u32[144,128]{1,0:T(1,128)}', space=vmem, size = 0x12000, scoped, tag = 'internal scratch']
  #allocation2 [shape = 'f32[2,128]{1,0:T(2,128)}', space=vmem, size = 0x400, scoped, tag = 'scratch operand']
  #allocation3 [shape = 'f32[2,128]{1,0:T(2,128)}', space=vmem, size = 0x400, scoped, tag = 'scratch operand']
  %s0 = inlined_call_operand.vmem [shape: f32[8,2,512], index: 0, kind: input, shape index: {}]
  %s1 = inlined_call_operand.vmem [shape: bf16[128,512], index: 1, kind: input, shape index: {}]
  %s2 = inlined_call_operand.vmem [shape: bf16[8,2,128], index: 2, kind: output, shape index: {}]
  %s3 = sld [smem:[#allocation0]]
  $region22: #{lstm_forward.5} parent=0
    _
  %s5 = ssub.s32 1, %s3
  %s6 = scalar_select 0, %s5, %s3
  // Predicated region
  $region2: #{lstm_forward.5} parent=0 // pred_check
    _
  $region3: #{lstm_forward.5} parent=0 // pred_check_branch
    %8 = sbr.rel (0) target = $region5
  $region4: #{lstm_forward.5} parent=0 // pred_region
    _
  $region5: #{lstm_forward.5} parent=0 // pred_fallthru
    _
  // Predicated region
  $region6: #{lstm_forward.5} parent=0 // pred_check
    _
  $region7: #{lstm_forward.5} parent=0 // pred_check_branch
    %10 = sbr.rel (0) target = $region9
  $region8: #{lstm_forward.5} parent=0 // pred_region
    _
  $region9: #{lstm_forward.5} parent=0 // pred_fallthru
    _
  %p12 = scmp.eq.s32.totalorder 0, 0
  // Predicated region
  $region10: #{lstm_forward.5} parent=0 // pred_check
    %p13 = pneg %p12
  $region11: #{lstm_forward.5} parent=0 // pred_check_branch
    %15 = sbr.rel (%p13) target = $region13
  $region12: #{lstm_forward.5} parent=0 // pred_region
    %16 = vst [vmem:[#allocation2] sm:$0x3] 0.0
    %17 = vst [vmem:[#allocation3] sm:$0x3] 0.0
  $region13: #{lstm_forward.5} parent=0 // pred_fallthru
    _
  %v18 = vld [vmem:[#allocation2] sm:$0x3]
  %v19 = vld [vmem:[#allocation3] sm:$0x3]
  %v20 = vld [vmem:[%s0] sm:$0xff]
  %v21 = vpack.c.bf16 %v18, %v18
  %v22 = vld [vmem:[%s1] sm:$0xff]
  %v23 = vld [vmem:[%s1 + $0x8] sm:$0xff]
  %v24 = vld [vmem:[%s1 + $0x10] sm:$0xff]
  %v25 = vld [vmem:[%s1 + $0x18] sm:$0xff]
  %v26 = vld [vmem:[%s1 + $0x20] sm:$0xff]
  %v27 = vld [vmem:[%s1 + $0x28] sm:$0xff]
  %v28 = vld [vmem:[%s1 + $0x30] sm:$0xff]
  %v29 = vld [vmem:[%s1 + $0x38] sm:$0xff]
  %v30 = vld [vmem:[%s1 + $0x40] sm:$0xff]
  %v31 = vld [vmem:[%s1 + $0x48] sm:$0xff]
  %v32 = vld [vmem:[%s1 + $0x50] sm:$0xff]
  %v33 = vld [vmem:[%s1 + $0x58] sm:$0xff]
  %v34 = vld [vmem:[%s1 + $0x60] sm:$0xff]
  %v35 = vld [vmem:[%s1 + $0x68] sm:$0xff]
  %v36 = vld [vmem:[%s1 + $0x70] sm:$0xff]
  %v37 = vld [vmem:[%s1 + $0x78] sm:$0xff]
  %v38 = vld [vmem:[%s1 + $0x80] sm:$0xff]
  %v39 = vld [vmem:[%s1 + $0x88] sm:$0xff]
  %v40 = vld [vmem:[%s1 + $0x90] sm:$0xff]
  %v41 = vld [vmem:[%s1 + $0x98] sm:$0xff]
  %v42 = vld [vmem:[%s1 + $0xa0] sm:$0xff]
  %v43 = vld [vmem:[%s1 + $0xa8] sm:$0xff]
  %v44 = vld [vmem:[%s1 + $0xb0] sm:$0xff]
  %v45 = vld [vmem:[%s1 + $0xb8] sm:$0xff]
  %v46 = vld [vmem:[%s1 + $0xc0] sm:$0xff]
  %v47 = vld [vmem:[%s1 + $0xc8] sm:$0xff]
  %v48 = vld [vmem:[%s1 + $0xd0] sm:$0xff]
  %v49 = vld [vmem:[%s1 + $0xd8] sm:$0xff]
  %v50 = vld [vmem:[%s1 + $0xe0] sm:$0xff]
  %v51 = vld [vmem:[%s1 + $0xe8] sm:$0xff]
  %v52 = vld [vmem:[%s1 + $0xf0] sm:$0xff]
  %v53 = vld [vmem:[%s1 + $0xf8] sm:$0xff]
  %v86 = vunpack.c.l.b16 %v22
  %v87 = vunpack.c.h.b16 %v22
  %v88 = vunpack.c.l.b16 %v23
  %v89 = vunpack.c.h.b16 %v23
  %v90 = vunpack.c.l.b16 %v24
  %v91 = vunpack.c.h.b16 %v24
  %v92 = vunpack.c.l.b16 %v25
  %v93 = vunpack.c.h.b16 %v25
  %v94 = vunpack.c.l.b16 %v26
  %v95 = vunpack.c.h.b16 %v26
  %v96 = vunpack.c.l.b16 %v27
  %v97 = vunpack.c.h.b16 %v27
  %v98 = vunpack.c.l.b16 %v28
  %v99 = vunpack.c.h.b16 %v28
  %v100 = vunpack.c.l.b16 %v29
  %v101 = vunpack.c.h.b16 %v29
  %v102 = vunpack.c.l.b16 %v30
  %v103 = vunpack.c.h.b16 %v30
  %v104 = vunpack.c.l.b16 %v31
  %v105 = vunpack.c.h.b16 %v31
  %v106 = vunpack.c.l.b16 %v32
  %v107 = vunpack.c.h.b16 %v32
  %v108 = vunpack.c.l.b16 %v33
  %v109 = vunpack.c.h.b16 %v33
  %v110 = vunpack.c.l.b16 %v34
  %v111 = vunpack.c.h.b16 %v34
  %v112 = vunpack.c.l.b16 %v35
  %v113 = vunpack.c.h.b16 %v35
  %v114 = vunpack.c.l.b16 %v36
  %v115 = vunpack.c.h.b16 %v36
  %v116 = vunpack.c.l.b16 %v37
  %v117 = vunpack.c.h.b16 %v37
  %v118 = vunpack.c.l.b16 %v38
  %v119 = vunpack.c.h.b16 %v38
  %v120 = vunpack.c.l.b16 %v39
  %v121 = vunpack.c.h.b16 %v39
  %v122 = vunpack.c.l.b16 %v40
  %v123 = vunpack.c.h.b16 %v40
  %v124 = vunpack.c.l.b16 %v41
  %v125 = vunpack.c.h.b16 %v41
  %v126 = vunpack.c.l.b16 %v42
  %v127 = vunpack.c.h.b16 %v42
  %v128 = vunpack.c.l.b16 %v43
  %v129 = vunpack.c.h.b16 %v43
  %v130 = vunpack.c.l.b16 %v44
  %v131 = vunpack.c.h.b16 %v44
  %v132 = vunpack.c.l.b16 %v45
  %v133 = vunpack.c.h.b16 %v45
  %v134 = vunpack.c.l.b16 %v46
  %v135 = vunpack.c.h.b16 %v46
  %v136 = vunpack.c.l.b16 %v47
  %v137 = vunpack.c.h.b16 %v47
  %v138 = vunpack.c.l.b16 %v48
  %v139 = vunpack.c.h.b16 %v48
  %v140 = vunpack.c.l.b16 %v49
  %v141 = vunpack.c.h.b16 %v49
  %v142 = vunpack.c.l.b16 %v50
  %v143 = vunpack.c.h.b16 %v50
  %v144 = vunpack.c.l.b16 %v51
  %v145 = vunpack.c.h.b16 %v51
  %v146 = vunpack.c.l.b16 %v52
  %v147 = vunpack.c.h.b16 %v52
  %v148 = vunpack.c.l.b16 %v53
  %v149 = vunpack.c.h.b16 %v53
  %v150 = vpack.c.b16 %v90, %v86
  %v151 = vpack.c.b16 %v91, %v87
  %v152 = vpack.c.b16 %v92, %v88
  %v153 = vpack.c.b16 %v93, %v89
  %v154 = vpack.c.b16 %v98, %v94
  %v155 = vpack.c.b16 %v99, %v95
  %v156 = vpack.c.b16 %v100, %v96
  %v157 = vpack.c.b16 %v101, %v97
  %v158 = vpack.c.b16 %v106, %v102
  %v159 = vpack.c.b16 %v107, %v103
  %v160 = vpack.c.b16 %v108, %v104
  %v161 = vpack.c.b16 %v109, %v105
  %v162 = vpack.c.b16 %v114, %v110
  %v163 = vpack.c.b16 %v115, %v111
  %v164 = vpack.c.b16 %v116, %v112
  %v165 = vpack.c.b16 %v117, %v113
  %v166 = vpack.c.b16 %v122, %v118
  %v167 = vpack.c.b16 %v123, %v119
  %v168 = vpack.c.b16 %v124, %v120
  %v169 = vpack.c.b16 %v125, %v121
  %v170 = vpack.c.b16 %v130, %v126
  %v171 = vpack.c.b16 %v131, %v127
  %v172 = vpack.c.b16 %v132, %v128
  %v173 = vpack.c.b16 %v133, %v129
  %v174 = vpack.c.b16 %v138, %v134
  %v175 = vpack.c.b16 %v139, %v135
  %v176 = vpack.c.b16 %v140, %v136
  %v177 = vpack.c.b16 %v141, %v137
  %v178 = vpack.c.b16 %v146, %v142
  %v179 = vpack.c.b16 %v147, %v143
  %v180 = vpack.c.b16 %v148, %v144
  %v181 = vpack.c.b16 %v149, %v145
  %214 = vmatprep.subr.bf16.mxu0 %v151
  %215 = vmatpush1.bf16.msra.mxu0 %v150
  %216 = vmatprep.subr.bf16.mxu0 %v155
  %217 = vmatpush1.bf16.msra.mxu0 %v154
  %218 = vmatprep.subr.bf16.mxu0 %v159
  %219 = vmatpush1.bf16.msra.mxu0 %v158
  %220 = vmatprep.subr.bf16.mxu0 %v163
  %221 = vmatpush1.bf16.msra.mxu0 %v162
  %222 = vmatprep.subr.bf16.mxu0 %v167
  %223 = vmatpush1.bf16.msra.mxu0 %v166
  %224 = vmatprep.subr.bf16.mxu0 %v171
  %225 = vmatpush1.bf16.msra.mxu0 %v170
  %226 = vmatprep.subr.bf16.mxu0 %v175
  %227 = vmatpush1.bf16.msra.mxu0 %v174
  %228 = vmatprep.subr.bf16.mxu0 %v179
  %229 = vmatpush1.bf16.msra.mxu0 %v178
  %230 = vmatprep.subr.bf16.mxu0 0
  %231 = vmatpush1.bf16.msra.mxu0 0
  %232 = vmatprep.subr.bf16.mxu0 0
  %233 = vmatpush1.bf16.msra.mxu0 0
  %234 = vmatprep.subr.bf16.mxu0 0
  %235 = vmatpush1.bf16.msra.mxu0 0
  %236 = vmatprep.subr.bf16.mxu0 0
  %237 = vmatpush1.bf16.msra.mxu0 0
  %238 = vmatprep.subr.bf16.mxu0 0
  %239 = vmatpush1.bf16.msra.mxu0 0
  %240 = vmatprep.subr.bf16.mxu0 0
  %241 = vmatpush1.bf16.msra.mxu0 0
  %242 = vmatprep.subr.bf16.mxu0 0
  %243 = vmatpush1.bf16.msra.mxu0 0
  %244 = vmatprep.subr.bf16.mxu0 0
  %245 = vmatpush1.bf16.msra.mxu0 0
  %246 = vmatprep.mubr.bf16.mxu0 0
  %247 = vmatmul.mubr.bf16.gmra.mrb[0].mxu0 %v21
  %v248 = vpop.f32.mrb[0].mxu0
  %v249 = vadd.f32 0.0, %v248
  %v250 = vpop.f32.mrb[0].mxu0
  %v251 = vadd.f32 0.0, %v250
  %v252 = vpop.f32.mrb[0].mxu0
  %v253 = vpop.f32.mrb[0].mxu0
  %254 = vdwg.mxu0
  %255 = vmatprep.subr.bf16.mxu0 %v153
  %256 = vmatpush1.bf16.msra.mxu0 %v152
  %257 = vmatprep.subr.bf16.mxu0 %v157
  %258 = vmatpush1.bf16.msra.mxu0 %v156
  %259 = vmatprep.subr.bf16.mxu0 %v161
  %260 = vmatpush1.bf16.msra.mxu0 %v160
  %261 = vmatprep.subr.bf16.mxu0 %v165
  %262 = vmatpush1.bf16.msra.mxu0 %v164
  %263 = vmatprep.subr.bf16.mxu0 %v169
  %264 = vmatpush1.bf16.msra.mxu0 %v168
  %265 = vmatprep.subr.bf16.mxu0 %v173
  %266 = vmatpush1.bf16.msra.mxu0 %v172
  %267 = vmatprep.subr.bf16.mxu0 %v177
  %268 = vmatpush1.bf16.msra.mxu0 %v176
  %269 = vmatprep.subr.bf16.mxu0 %v181
  %270 = vmatpush1.bf16.msra.mxu0 %v180
  %271 = vmatprep.subr.bf16.mxu0 0
  %272 = vmatpush1.bf16.msra.mxu0 0
  %273 = vmatprep.subr.bf16.mxu0 0
  %274 = vmatpush1.bf16.msra.mxu0 0
  %275 = vmatprep.subr.bf16.mxu0 0
  %276 = vmatpush1.bf16.msra.mxu0 0
  %277 = vmatprep.subr.bf16.mxu0 0
  %278 = vmatpush1.bf16.msra.mxu0 0
  %279 = vmatprep.subr.bf16.mxu0 0
  %280 = vmatpush1.bf16.msra.mxu0 0
  %281 = vmatprep.subr.bf16.mxu0 0
  %282 = vmatpush1.bf16.msra.mxu0 0
  %283 = vmatprep.subr.bf16.mxu0 0
  %284 = vmatpush1.bf16.msra.mxu0 0
  %285 = vmatprep.subr.bf16.mxu0 0
  %286 = vmatpush1.bf16.msra.mxu0 0
  %287 = vmatprep.mubr.bf16.mxu0 0
  %288 = vmatmul.mubr.bf16.gmra.mrb[0].mxu0 %v21
  %v289 = vpop.f32.mrb[0].mxu0
  %v290 = vadd.f32 0.0, %v289
  %v291 = vpop.f32.mrb[0].mxu0
  %v292 = vadd.f32 0.0, %v291
  %v293 = vpop.f32.mrb[0].mxu0
  %v294 = vpop.f32.mrb[0].mxu0
  %295 = vdwg.mxu0
  %v300 = vcombine.low %v249, %v251
  %v301 = vcombine.low %v290, %v292
  %v303 = vunpack.c.l.s4 1983009808
  %v304 = vunpack.c.0.s8 %v303
  %v305 = vlaneseq
  %v306 = vshrl.u32 %v305, 7
  %v307 = vsub.s32 %v304, %v306
  %v308 = vrot.slane %v300, %v307
  %v310 = vunpack.c.l.s4 1983009808
  %v311 = vunpack.c.0.s8 %v310
  %v312 = vlaneseq
  %v313 = vshrl.u32 %v312, 7
  %v314 = vsub.s32 %v311, %v313
  %v315 = vrot.slane %v301, %v314
  %v316 = vcombine.low %v308, %v315
  %v318 = vadd.f32 %v20, %v316
  %v319 = vxor.u32 %v318, 2147483648
  %v320 = vmul.f32 %v319, 1.442695
  %v321 = vpow.pop %v320
  %v322 = vadd.f32 %v321, 1.0
  %v323 = vrcp.pop %v322
  %v324 = vmul.f32 1.0, %v323
  %v326 = vrot.slane %v318, 2
  %v328 = vxor.u32 %v326, 2147483648
  %v329 = vmul.f32 %v328, 1.442695
  %v330 = vpow.pop %v329
  %v331 = vadd.f32 %v330, 1.0
  %v332 = vrcp.pop %v331
  %v333 = vmul.f32 1.0, %v332
  %v334 = vrot.slane %v318, 4
  %v336 = vtanh.pop %v334
  %v337 = vrot.slane %v318, 6
  %v339 = vxor.u32 %v337, 2147483648
  %v340 = vmul.f32 %v339, 1.442695
  %v341 = vpow.pop %v340
  %v342 = vadd.f32 %v341, 1.0
  %v343 = vrcp.pop %v342
  %v344 = vmul.f32 1.0, %v343
  %v345 = vmul.f32 %v333, %v19
  %v346 = vmul.f32 %v324, %v336
  %v347 = vadd.f32 %v345, %v346
  %v348 = vtanh.pop %v347
  %v349 = vmul.f32 %v344, %v348
  %v350 = vpack.c.bf16 %v349, %v349
  %351 = vst [vmem:[%s2] sm:$0x1] %v350
  %s352 = scalar_lea.vmem %s0, 8
  %v353 = vld [vmem:[%s352] sm:$0xff]
  %v354 = vld [vmem:[%s1] sm:$0xff]
  %v355 = vld [vmem:[%s1 + $0x8] sm:$0xff]
  %v356 = vld [vmem:[%s1 + $0x10] sm:$0xff]
  %v357 = vld [vmem:[%s1 + $0x18] sm:$0xff]
  %v358 = vld [vmem:[%s1 + $0x20] sm:$0xff]
  %v359 = vld [vmem:[%s1 + $0x28] sm:$0xff]
  %v360 = vld [vmem:[%s1 + $0x30] sm:$0xff]
  %v361 = vld [vmem:[%s1 + $0x38] sm:$0xff]
  %v362 = vld [vmem:[%s1 + $0x40] sm:$0xff]
  %v363 = vld [vmem:[%s1 + $0x48] sm:$0xff]
  %v364 = vld [vmem:[%s1 + $0x50] sm:$0xff]
  %v365 = vld [vmem:[%s1 + $0x58] sm:$0xff]
  %v366 = vld [vmem:[%s1 + $0x60] sm:$0xff]
  %v367 = vld [vmem:[%s1 + $0x68] sm:$0xff]
  %v368 = vld [vmem:[%s1 + $0x70] sm:$0xff]
  %v369 = vld [vmem:[%s1 + $0x78] sm:$0xff]
  %v370 = vld [vmem:[%s1 + $0x80] sm:$0xff]
  %v371 = vld [vmem:[%s1 + $0x88] sm:$0xff]
  %v372 = vld [vmem:[%s1 + $0x90] sm:$0xff]
  %v373 = vld [vmem:[%s1 + $0x98] sm:$0xff]
  %v374 = vld [vmem:[%s1 + $0xa0] sm:$0xff]
  %v375 = vld [vmem:[%s1 + $0xa8] sm:$0xff]
  %v376 = vld [vmem:[%s1 + $0xb0] sm:$0xff]
  %v377 = vld [vmem:[%s1 + $0xb8] sm:$0xff]
  %v378 = vld [vmem:[%s1 + $0xc0] sm:$0xff]
  %v379 = vld [vmem:[%s1 + $0xc8] sm:$0xff]
  %v380 = vld [vmem:[%s1 + $0xd0] sm:$0xff]
  %v381 = vld [vmem:[%s1 + $0xd8] sm:$0xff]
  %v382 = vld [vmem:[%s1 + $0xe0] sm:$0xff]
  %v383 = vld [vmem:[%s1 + $0xe8] sm:$0xff]
  %v384 = vld [vmem:[%s1 + $0xf0] sm:$0xff]
  %v385 = vld [vmem:[%s1 + $0xf8] sm:$0xff]
  %v418 = vunpack.c.l.b16 %v354
  %v419 = vunpack.c.h.b16 %v354
  %v420 = vunpack.c.l.b16 %v355
  %v421 = vunpack.c.h.b16 %v355
  %v422 = vunpack.c.l.b16 %v356
  %v423 = vunpack.c.h.b16 %v356
  %v424 = vunpack.c.l.b16 %v357
  %v425 = vunpack.c.h.b16 %v357
  %v426 = vunpack.c.l.b16 %v358
  %v427 = vunpack.c.h.b16 %v358
  %v428 = vunpack.c.l.b16 %v359
  %v429 = vunpack.c.h.b16 %v359
  %v430 = vunpack.c.l.b16 %v360
  %v431 = vunpack.c.h.b16 %v360
  %v432 = vunpack.c.l.b16 %v361
  %v433 = vunpack.c.h.b16 %v361
  %v434 = vunpack.c.l.b16 %v362
  %v435 = vunpack.c.h.b16 %v362
  %v436 = vunpack.c.l.b16 %v363
  %v437 = vunpack.c.h.b16 %v363
  %v438 = vunpack.c.l.b16 %v364
  %v439 = vunpack.c.h.b16 %v364
  %v440 = vunpack.c.l.b16 %v365
  %v441 = vunpack.c.h.b16 %v365
  %v442 = vunpack.c.l.b16 %v366
  %v443 = vunpack.c.h.b16 %v366
  %v444 = vunpack.c.l.b16 %v367
  %v445 = vunpack.c.h.b16 %v367
  %v446 = vunpack.c.l.b16 %v368
  %v447 = vunpack.c.h.b16 %v368
  %v448 = vunpack.c.l.b16 %v369
  %v449 = vunpack.c.h.b16 %v369
  %v450 = vunpack.c.l.b16 %v370
  %v451 = vunpack.c.h.b16 %v370
  %v452 = vunpack.c.l.b16 %v371
  %v453 = vunpack.c.h.b16 %v371
  %v454 = vunpack.c.l.b16 %v372
  %v455 = vunpack.c.h.b16 %v372
  %v456 = vunpack.c.l.b16 %v373
  %v457 = vunpack.c.h.b16 %v373
  %v458 = vunpack.c.l.b16 %v374
  %v459 = vunpack.c.h.b16 %v374
  %v460 = vunpack.c.l.b16 %v375
  %v461 = vunpack.c.h.b16 %v375
  %v462 = vunpack.c.l.b16 %v376
  %v463 = vunpack.c.h.b16 %v376
  %v464 = vunpack.c.l.b16 %v377
  %v465 = vunpack.c.h.b16 %v377
  %v466 = vunpack.c.l.b16 %v378
  %v467 = vunpack.c.h.b16 %v378
  %v468 = vunpack.c.l.b16 %v379
  %v469 = vunpack.c.h.b16 %v379
  %v470 = vunpack.c.l.b16 %v380
  %v471 = vunpack.c.h.b16 %v380
  %v472 = vunpack.c.l.b16 %v381
  %v473 = vunpack.c.h.b16 %v381
  %v474 = vunpack.c.l.b16 %v382
  %v475 = vunpack.c.h.b16 %v382
  %v476 = vunpack.c.l.b16 %v383
  %v477 = vunpack.c.h.b16 %v383
  %v478 = vunpack.c.l.b16 %v384
  %v479 = vunpack.c.h.b16 %v384
  %v480 = vunpack.c.l.b16 %v385
  %v481 = vunpack.c.h.b16 %v385
  %v482 = vpack.c.b16 %v422, %v418
  %v483 = vpack.c.b16 %v423, %v419
  %v484 = vpack.c.b16 %v424, %v420
  %v485 = vpack.c.b16 %v425, %v421
  %v486 = vpack.c.b16 %v430, %v426
  %v487 = vpack.c.b16 %v431, %v427
  %v488 = vpack.c.b16 %v432, %v428
  %v489 = vpack.c.b16 %v433, %v429
  %v490 = vpack.c.b16 %v438, %v434
  %v491 = vpack.c.b16 %v439, %v435
  %v492 = vpack.c.b16 %v440, %v436
  %v493 = vpack.c.b16 %v441, %v437
  %v494 = vpack.c.b16 %v446, %v442
  %v495 = vpack.c.b16 %v447, %v443
  %v496 = vpack.c.b16 %v448, %v444
  %v497 = vpack.c.b16 %v449, %v445
  %v498 = vpack.c.b16 %v454, %v450
  %v499 = vpack.c.b16 %v455, %v451
  %v500 = vpack.c.b16 %v456, %v452
  %v501 = vpack.c.b16 %v457, %v453
  %v502 = vpack.c.b16 %v462, %v458
  %v503 = vpack.c.b16 %v463, %v459
  %v504 = vpack.c.b16 %v464, %v460
  %v505 = vpack.c.b16 %v465, %v461
  %v506 = vpack.c.b16 %v470, %v466
  %v507 = vpack.c.b16 %v471, %v467
  %v508 = vpack.c.b16 %v472, %v468
  %v509 = vpack.c.b16 %v473, %v469
  %v510 = vpack.c.b16 %v478, %v474
  %v511 = vpack.c.b16 %v479, %v475
  %v512 = vpack.c.b16 %v480, %v476
  %v513 = vpack.c.b16 %v481, %v477
  %546 = vmatprep.subr.bf16.mxu0 %v483
  %547 = vmatpush1.bf16.msra.mxu0 %v482
  %548 = vmatprep.subr.bf16.mxu0 %v487
  %549 = vmatpush1.bf16.msra.mxu0 %v486
  %550 = vmatprep.subr.bf16.mxu0 %v491
  %551 = vmatpush1.bf16.msra.mxu0 %v490
  %552 = vmatprep.subr.bf16.mxu0 %v495
  %553 = vmatpush1.bf16.msra.mxu0 %v494
  %554 = vmatprep.subr.bf16.mxu0 %v499
  %555 = vmatpush1.bf16.msra.mxu0 %v498
  %556 = vmatprep.subr.bf16.mxu0 %v503
  %557 = vmatpush1.bf16.msra.mxu0 %v502
  %558 = vmatprep.subr.bf16.mxu0 %v507
  %559 = vmatpush1.bf16.msra.mxu0 %v506
  %560 = vmatprep.subr.bf16.mxu0 %v511
  %561 = vmatpush1.bf16.msra.mxu0 %v510
  %562 = vmatprep.subr.bf16.mxu0 0
  %563 = vmatpush1.bf16.msra.mxu0 0
  %564 = vmatprep.subr.bf16.mxu0 0
  %565 = vmatpush1.bf16.msra.mxu0 0
  %566 = vmatprep.subr.bf16.mxu0 0
  %567 = vmatpush1.bf16.msra.mxu0 0
  %568 = vmatprep.subr.bf16.mxu0 0
  %569 = vmatpush1.bf16.msra.mxu0 0
  %570 = vmatprep.subr.bf16.mxu0 0
  %571 = vmatpush1.bf16.msra.mxu0 0
  %572 = vmatprep.subr.bf16.mxu0 0
  %573 = vmatpush1.bf16.msra.mxu0 0
  %574 = vmatprep.subr.bf16.mxu0 0
  %575 = vmatpush1.bf16.msra.mxu0 0
  %576 = vmatprep.subr.bf16.mxu0 0
  %577 = vmatpush1.bf16.msra.mxu0 0
  %578 = vmatprep.mubr.bf16.mxu0 0
  %579 = vmatmul.mubr.bf16.gmra.mrb[0].mxu0 %v350
  %v580 = vpop.f32.mrb[0].mxu0
  %v581 = vadd.f32 0.0, %v580
  %v582 = vpop.f32.mrb[0].mxu0
  %v583 = vadd.f32 0.0, %v582
  %v584 = vpop.f32.mrb[0].mxu0
  %v585 = vpop.f32.mrb[0].mxu0
  %586 = vdwg.mxu0
  %587 = vmatprep.subr.bf16.mxu0 %v485
  %588 = vmatpush1.bf16.msra.mxu0 %v484
  %589 = vmatprep.subr.bf16.mxu0 %v489
  %590 = vmatpush1.bf16.msra.mxu0 %v488
  %591 = vmatprep.subr.bf16.mxu0 %v493
  %592 = vmatpush1.bf16.msra.mxu0 %v492
  %593 = vmatprep.subr.bf16.mxu0 %v497
  %594 = vmatpush1.bf16.msra.mxu0 %v496
  %595 = vmatprep.subr.bf16.mxu0 %v501
  %596 = vmatpush1.bf16.msra.mxu0 %v500
  %597 = vmatprep.subr.bf16.mxu0 %v505
  %598 = vmatpush1.bf16.msra.mxu0 %v504
  %599 = vmatprep.subr.bf16.mxu0 %v509
  %600 = vmatpush1.bf16.msra.mxu0 %v508
  %601 = vmatprep.subr.bf16.mxu0 %v513
  %602 = vmatpush1.bf16.msra.mxu0 %v512
  %603 = vmatprep.subr.bf16.mxu0 0
  %604 = vmatpush1.bf16.msra.mxu0 0
  %605 = vmatprep.subr.bf16.mxu0 0
  %606 = vmatpush1.bf16.msra.mxu0 0
  %607 = vmatprep.subr.bf16.mxu0 0
  %608 = vmatpush1.bf16.msra.mxu0 0
  %609 = vmatprep.subr.bf16.mxu0 0
  %610 = vmatpush1.bf16.msra.mxu0 0
  %611 = vmatprep.subr.bf16.mxu0 0
  %612 = vmatpush1.bf16.msra.mxu0 0
  %613 = vmatprep.subr.bf16.mxu0 0
  %614 = vmatpush1.bf16.msra.mxu0 0
  %615 = vmatprep.subr.bf16.mxu0 0
  %616 = vmatpush1.bf16.msra.mxu0 0
  %617 = vmatprep.subr.bf16.mxu0 0
  %618 = vmatpush1.bf16.msra.mxu0 0
  %619 = vmatprep.mubr.bf16.mxu0 0
  %620 = vmatmul.mubr.bf16.gmra.mrb[0].mxu0 %v350
  %v621 = vpop.f32.mrb[0].mxu0
  %v622 = vadd.f32 0.0, %v621
  %v623 = vpop.f32.mrb[0].mxu0
  %v624 = vadd.f32 0.0, %v623
  %v625 = vpop.f32.mrb[0].mxu0
  %v626 = vpop.f32.mrb[0].mxu0
  %627 = vdwg.mxu0
  %v632 = vcombine.low %v581, %v583
  %v633 = vcombine.low %v622, %v624
  %v635 = vunpack.c.l.s4 1983009808
  %v636 = vunpack.c.0.s8 %v635
  %v637 = vlaneseq
  %v638 = vshrl.u32 %v637, 7
  %v639 = vsub.s32 %v636, %v638
  %v640 = vrot.slane %v632, %v639
  %v642 = vunpack.c.l.s4 1983009808
  %v643 = vunpack.c.0.s8 %v642
  %v644 = vlaneseq
  %v645 = vshrl.u32 %v644, 7
  %v646 = vsub.s32 %v643, %v645
  %v647 = vrot.slane %v633, %v646
  %v648 = vcombine.low %v640, %v647
  %v650 = vadd.f32 %v353, %v648
  %v651 = vxor.u32 %v650, 2147483648
  %v652 = vmul.f32 %v651, 1.442695
  %v653 = vpow.pop %v652
  %v654 = vadd.f32 %v653, 1.0
  %v655 = vrcp.pop %v654
  %v656 = vmul.f32 1.0, %v655
  %v658 = vrot.slane %v650, 2
  %v660 = vxor.u32 %v658, 2147483648
  %v661 = vmul.f32 %v660, 1.442695
  %v662 = vpow.pop %v661
  %v663 = vadd.f32 %v662, 1.0
  %v664 = vrcp.pop %v663
  %v665 = vmul.f32 1.0, %v664
  %v666 = vrot.slane %v650, 4
  %v668 = vtanh.pop %v666
  %v669 = vrot.slane %v650, 6
  %v671 = vxor.u32 %v669, 2147483648
  %v672 = vmul.f32 %v671, 1.442695
  %v673 = vpow.pop %v672
  %v674 = vadd.f32 %v673, 1.0
  %v675 = vrcp.pop %v674
  %v676 = vmul.f32 1.0, %v675
  %v677 = vmul.f32 %v665, %v347
  %v678 = vmul.f32 %v656, %v668
  %v679 = vadd.f32 %v677, %v678
  %v680 = vtanh.pop %v679
  %v681 = vmul.f32 %v676, %v680
  %v682 = vpack.c.bf16 %v681, %v681
  %s683 = scalar_lea.vmem %s2, 1
  %684 = vst [vmem:[%s683] sm:$0x1] %v682
  %s685 = scalar_lea.vmem %s0, 16
  %v686 = vld [vmem:[%s685] sm:$0xff]
  %v687 = vld [vmem:[%s1] sm:$0xff]
  %v688 = vld [vmem:[%s1 + $0x8] sm:$0xff]
  %v689 = vld [vmem:[%s1 + $0x10] sm:$0xff]
  %v690 = vld [vmem:[%s1 + $0x18] sm:$0xff]
  %v691 = vld [vmem:[%s1 + $0x20] sm:$0xff]
  %v692 = vld [vmem:[%s1 + $0x28] sm:$0xff]
  %v693 = vld [vmem:[%s1 + $0x30] sm:$0xff]
  %v694 = vld [vmem:[%s1 + $0x38] sm:$0xff]
  %v695 = vld [vmem:[%s1 + $0x40] sm:$0xff]
  %v696 = vld [vmem:[%s1 + $0x48] sm:$0xff]
  %v697 = vld [vmem:[%s1 + $0x50] sm:$0xff]
  %v698 = vld [vmem:[%s1 + $0x58] sm:$0xff]
  %v699 = vld [vmem:[%s1 + $0x60] sm:$0xff]
  %v700 = vld [vmem:[%s1 + $0x68] sm:$0xff]
  %v701 = vld [vmem:[%s1 + $0x70] sm:$0xff]
  %v702 = vld [vmem:[%s1 + $0x78] sm:$0xff]
  %v703 = vld [vmem:[%s1 + $0x80] sm:$0xff]
  %v704 = vld [vmem:[%s1 + $0x88] sm:$0xff]
  %v705 = vld [vmem:[%s1 + $0x90] sm:$0xff]
  %v706 = vld [vmem:[%s1 + $0x98] sm:$0xff]
  %v707 = vld [vmem:[%s1 + $0xa0] sm:$0xff]
  %v708 = vld [vmem:[%s1 + $0xa8] sm:$0xff]
  %v709 = vld [vmem:[%s1 + $0xb0] sm:$0xff]
  %v710 = vld [vmem:[%s1 + $0xb8] sm:$0xff]
  %v711 = vld [vmem:[%s1 + $0xc0] sm:$0xff]
  %v712 = vld [vmem:[%s1 + $0xc8] sm:$0xff]
  %v713 = vld [vmem:[%s1 + $0xd0] sm:$0xff]
  %v714 = vld [vmem:[%s1 + $0xd8] sm:$0xff]
  %v715 = vld [vmem:[%s1 + $0xe0] sm:$0xff]
  %v716 = vld [vmem:[%s1 + $0xe8] sm:$0xff]
  %v717 = vld [vmem:[%s1 + $0xf0] sm:$0xff]
  %v718 = vld [vmem:[%s1 + $0xf8] sm:$0xff]
  %v751 = vunpack.c.l.b16 %v687
  %v752 = vunpack.c.h.b16 %v687
  %v753 = vunpack.c.l.b16 %v688
  %v754 = vunpack.c.h.b16 %v688
  %v755 = vunpack.c.l.b16 %v689
  %v756 = vunpack.c.h.b16 %v689
  %v757 = vunpack.c.l.b16 %v690
  %v758 = vunpack.c.h.b16 %v690
  %v759 = vunpack.c.l.b16 %v691
  %v760 = vunpack.c.h.b16 %v691
  %v761 = vunpack.c.l.b16 %v692
  %v762 = vunpack.c.h.b16 %v692
  %v763 = vunpack.c.l.b16 %v693
  %v764 = vunpack.c.h.b16 %v693
  %v765 = vunpack.c.l.b16 %v694
  %v766 = vunpack.c.h.b16 %v694
  %v767 = vunpack.c.l.b16 %v695
  %v768 = vunpack.c.h.b16 %v695
  %v769 = vunpack.c.l.b16 %v696
  %v770 = vunpack.c.h.b16 %v696
  %v771 = vunpack.c.l.b16 %v697
  %v772 = vunpack.c.h.b16 %v697
  %v773 = vunpack.c.l.b16 %v698
  %v774 = vunpack.c.h.b16 %v698
  %v775 = vunpack.c.l.b16 %v699
  %v776 = vunpack.c.h.b16 %v699
  %v777 = vunpack.c.l.b16 %v700
  %v778 = vunpack.c.h.b16 %v700
  %v779 = vunpack.c.l.b16 %v701
  %v780 = vunpack.c.h.b16 %v701
  %v781 = vunpack.c.l.b16 %v702
  %v782 = vunpack.c.h.b16 %v702
  %v783 = vunpack.c.l.b16 %v703
  %v784 = vunpack.c.h.b16 %v703
  %v785 = vunpack.c.l.b16 %v704
  %v786 = vunpack.c.h.b16 %v704
  %v787 = vunpack.c.l.b16 %v705
  %v788 = vunpack.c.h.b16 %v705
  %v789 = vunpack.c.l.b16 %v706
  %v790 = vunpack.c.h.b16 %v706
  %v791 = vunpack.c.l.b16 %v707
  %v792 = vunpack.c.h.b16 %v707
  %v793 = vunpack.c.l.b16 %v708
  %v794 = vunpack.c.h.b16 %v708
  %v795 = vunpack.c.l.b16 %v709
  %v796 = vunpack.c.h.b16 %v709
  %v797 = vunpack.c.l.b16 %v710
  %v798 = vunpack.c.h.b16 %v710
  %v799 = vunpack.c.l.b16 %v711
  %v800 = vunpack.c.h.b16 %v711
  %v801 = vunpack.c.l.b16 %v712
  %v802 = vunpack.c.h.b16 %v712
  %v803 = vunpack.c.l.b16 %v713
  %v804 = vunpack.c.h.b16 %v713
  %v805 = vunpack.c.l.b16 %v714
  %v806 = vunpack.c.h.b16 %v714
  %v807 = vunpack.c.l.b16 %v715
  %v808 = vunpack.c.h.b16 %v715
  %v809 = vunpack.c.l.b16 %v716
  %v810 = vunpack.c.h.b16 %v716
  %v811 = vunpack.c.l.b16 %v717
  %v812 = vunpack.c.h.b16 %v717
  %v813 = vunpack.c.l.b16 %v718
  %v814 = vunpack.c.h.b16 %v718
  %v815 = vpack.c.b16 %v755, %v751
  %v816 = vpack.c.b16 %v756, %v752
  %v817 = vpack.c.b16 %v757, %v753
  %v818 = vpack.c.b16 %v758, %v754
  %v819 = vpack.c.b16 %v763, %v759
  %v820 = vpack.c.b16 %v764, %v760
  %v821 = vpack.c.b16 %v765, %v761
  %v822 = vpack.c.b16 %v766, %v762
  %v823 = vpack.c.b16 %v771, %v767
  %v824 = vpack.c.b16 %v772, %v768
  %v825 = vpack.c.b16 %v773, %v769
  %v826 = vpack.c.b16 %v774, %v770
  %v827 = vpack.c.b16 %v779, %v775
  %v828 = vpack.c.b16 %v780, %v776
  %v829 = vpack.c.b16 %v781, %v777
  %v830 = vpack.c.b16 %v782, %v778
  %v831 = vpack.c.b16 %v787, %v783
  %v832 = vpack.c.b16 %v788, %v784
  %v833 = vpack.c.b16 %v789, %v785
  %v834 = vpack.c.b16 %v790, %v786
  %v835 = vpack.c.b16 %v795, %v791
  %v836 = vpack.c.b16 %v796, %v792
  %v837 = vpack.c.b16 %v797, %v793
  %v838 = vpack.c.b16 %v798, %v794
  %v839 = vpack.c.b16 %v803, %v799
  %v840 = vpack.c.b16 %v804, %v800
  %v841 = vpack.c.b16 %v805, %v801
  %v842 = vpack.c.b16 %v806, %v802
  %v843 = vpack.c.b16 %v811, %v807
  %v844 = vpack.c.b16 %v812, %v808
  %v845 = vpack.c.b16 %v813, %v809
  %v846 = vpack.c.b16 %v814, %v810
  %879 = vmatprep.subr.bf16.mxu0 %v816
  %880 = vmatpush1.bf16.msra.mxu0 %v815
  %881 = vmatprep.subr.bf16.mxu0 %v820
  %882 = vmatpush1.bf16.msra.mxu0 %v819
  %883 = vmatprep.subr.bf16.mxu0 %v824
  %884 = vmatpush1.bf16.msra.mxu0 %v823
  %885 = vmatprep.subr.bf16.mxu0 %v828
  %886 = vmatpush1.bf16.msra.mxu0 %v827
  %887 = vmatprep.subr.bf16.mxu0 %v832
  %888 = vmatpush1.bf16.msra.mxu0 %v831
  %889 = vmatprep.subr.bf16.mxu0 %v836
  %890 = vmatpush1.bf16.msra.mxu0 %v835
  %891 = vmatprep.subr.bf16.mxu0 %v840
  %892 = vmatpush1.bf16.msra.mxu0 %v839
  %893 = vmatprep.subr.bf16.mxu0 %v844
  %894 = vmatpush1.bf16.msra.mxu0 %v843
  %895 = vmatprep.subr.bf16.mxu0 0
  %896 = vmatpush1.bf16.msra.mxu0 0
  %897 = vmatprep.subr.bf16.mxu0 0
  %898 = vmatpush1.bf16.msra.mxu0 0
  %899 = vmatprep.subr.bf16.mxu0 0
  %900 = vmatpush1.bf16.msra.mxu0 0
  %901 = vmatprep.subr.bf16.mxu0 0
  %902 = vmatpush1.bf16.msra.mxu0 0
  %903 = vmatprep.subr.bf16.mxu0 0
  %904 = vmatpush1.bf16.msra.mxu0 0
  %905 = vmatprep.subr.bf16.mxu0 0
  %906 = vmatpush1.bf16.msra.mxu0 0
  %907 = vmatprep.subr.bf16.mxu0 0
  %908 = vmatpush1.bf16.msra.mxu0 0
  %909 = vmatprep.subr.bf16.mxu0 0
  %910 = vmatpush1.bf16.msra.mxu0 0
  %911 = vmatprep.mubr.bf16.mxu0 0
  %912 = vmatmul.mubr.bf16.gmra.mrb[0].mxu0 %v682
  %v913 = vpop.f32.mrb[0].mxu0
  %v914 = vadd.f32 0.0, %v913
  %v915 = vpop.f32.mrb[0].mxu0
  %v916 = vadd.f32 0.0, %v915
  %v917 = vpop.f32.mrb[0].mxu0
  %v918 = vpop.f32.mrb[0].mxu0
  %919 = vdwg.mxu0
  %920 = vmatprep.subr.bf16.mxu0 %v818
  %921 = vmatpush1.bf16.msra.mxu0 %v817
  %922 = vmatprep.subr.bf16.mxu0 %v822
  %923 = vmatpush1.bf16.msra.mxu0 %v821
  %924 = vmatprep.subr.bf16.mxu0 %v826
  %925 = vmatpush1.bf16.msra.mxu0 %v825
  %926 = vmatprep.subr.bf16.mxu0 %v830
  %927 = vmatpush1.bf16.msra.mxu0 %v829
  %928 = vmatprep.subr.bf16.mxu0 %v834
  %929 = vmatpush1.bf16.msra.mxu0 %v833
  %930 = vmatprep.subr.bf16.mxu0 %v838
  %931 = vmatpush1.bf16.msra.mxu0 %v837
  %932 = vmatprep.subr.bf16.mxu0 %v842
  %933 = vmatpush1.bf16.msra.mxu0 %v841
  %934 = vmatprep.subr.bf16.mxu0 %v846
  %935 = vmatpush1.bf16.msra.mxu0 %v845
  %936 = vmatprep.subr.bf16.mxu0 0
  %937 = vmatpush1.bf16.msra.mxu0 0
  %938 = vmatprep.subr.bf16.mxu0 0
  %939 = vmatpush1.bf16.msra.mxu0 0
  %940 = vmatprep.subr.bf16.mxu0 0
  %941 = vmatpush1.bf16.msra.mxu0 0
  %942 = vmatprep.subr.bf16.mxu0 0
  %943 = vmatpush1.bf16.msra.mxu0 0
  %944 = vmatprep.subr.bf16.mxu0 0
  %945 = vmatpush1.bf16.msra.mxu0 0
  %946 = vmatprep.subr.bf16.mxu0 0
  %947 = vmatpush1.bf16.msra.mxu0 0
  %948 = vmatprep.subr.bf16.mxu0 0
  %949 = vmatpush1.bf16.msra.mxu0 0
  %950 = vmatprep.subr.bf16.mxu0 0
  %951 = vmatpush1.bf16.msra.mxu0 0
  %952 = vmatprep.mubr.bf16.mxu0 0
  %953 = vmatmul.mubr.bf16.gmra.mrb[0].mxu0 %v682
  %v954 = vpop.f32.mrb[0].mxu0
  %v955 = vadd.f32 0.0, %v954
  %v956 = vpop.f32.mrb[0].mxu0
  %v957 = vadd.f32 0.0, %v956
  %v958 = vpop.f32.mrb[0].mxu0
  %v959 = vpop.f32.mrb[0].mxu0
  %960 = vdwg.mxu0
  %v965 = vcombine.low %v914, %v916
  %v966 = vcombine.low %v955, %v957
  %v968 = vunpack.c.l.s4 1983009808
  %v969 = vunpack.c.0.s8 %v968
  %v970 = vlaneseq
  %v971 = vshrl.u32 %v970, 7
  %v972 = vsub.s32 %v969, %v971
  %v973 = vrot.slane %v965, %v972
  %v975 = vunpack.c.l.s4 1983009808
  %v976 = vunpack.c.0.s8 %v975
  %v977 = vlaneseq
  %v978 = vshrl.u32 %v977, 7
  %v979 = vsub.s32 %v976, %v978
  %v980 = vrot.slane %v966, %v979
  %v981 = vcombine.low %v973, %v980
  %v983 = vadd.f32 %v686, %v981
  %v984 = vxor.u32 %v983, 2147483648
  %v985 = vmul.f32 %v984, 1.442695
  %v986 = vpow.pop %v985
  %v987 = vadd.f32 %v986, 1.0
  %v988 = vrcp.pop %v987
  %v989 = vmul.f32 1.0, %v988
  %v991 = vrot.slane %v983, 2
  %v993 = vxor.u32 %v991, 2147483648
  %v994 = vmul.f32 %v993, 1.442695
  %v995 = vpow.pop %v994
  %v996 = vadd.f32 %v995, 1.0
  %v997 = vrcp.pop %v996
  %v998 = vmul.f32 1.0, %v997
  %v999 = vrot.slane %v983, 4
  %v1001 = vtanh.pop %v999
  %v1002 = vrot.slane %v983, 6
  %v1004 = vxor.u32 %v1002, 2147483648
  %v1005 = vmul.f32 %v1004, 1.442695
  %v1006 = vpow.pop %v1005
  %v1007 = vadd.f32 %v1006, 1.0
  %v1008 = vrcp.pop %v1007
  %v1009 = vmul.f32 1.0, %v1008
  %v1010 = vmul.f32 %v998, %v679
  %v1011 = vmul.f32 %v989, %v1001
  %v1012 = vadd.f32 %v1010, %v1011
  %v1013 = vtanh.pop %v1012
  %v1014 = vmul.f32 %v1009, %v1013
  %v1015 = vpack.c.bf16 %v1014, %v1014
  %s1016 = scalar_lea.vmem %s2, 2
  %1017 = vst [vmem:[%s1016] sm:$0x1] %v1015
  %s1018 = scalar_lea.vmem %s0, 24
  %v1019 = vld [vmem:[%s1018] sm:$0xff]
  %v1020 = vld [vmem:[%s1] sm:$0xff]
  %v1021 = vld [vmem:[%s1 + $0x8] sm:$0xff]
  %v1022 = vld [vmem:[%s1 + $0x10] sm:$0xff]
  %v1023 = vld [vmem:[%s1 + $0x18] sm:$0xff]
  %v1024 = vld [vmem:[%s1 + $0x20] sm:$0xff]
  %v1025 = vld [vmem:[%s1 + $0x28] sm:$0xff]
  %v1026 = vld [vmem:[%s1 + $0x30] sm:$0xff]
  %v1027 = vld [vmem:[%s1 + $0x38] sm:$0xff]
  %v1028 = vld [vmem:[%s1 + $0x40] sm:$0xff]
  %v1029 = vld [vmem:[%s1 + $0x48] sm:$0xff]
  %v1030 = vld [vmem:[%s1 + $0x50] sm:$0xff]
  %v1031 = vld [vmem:[%s1 + $0x58] sm:$0xff]
  %v1032 = vld [vmem:[%s1 + $0x60] sm:$0xff]
  %v1033 = vld [vmem:[%s1 + $0x68] sm:$0xff]
  %v1034 = vld [vmem:[%s1 + $0x70] sm:$0xff]
  %v1035 = vld [vmem:[%s1 + $0x78] sm:$0xff]
  %v1036 = vld [vmem:[%s1 + $0x80] sm:$0xff]
  %v1037 = vld [vmem:[%s1 + $0x88] sm:$0xff]
  %v1038 = vld [vmem:[%s1 + $0x90] sm:$0xff]
  %v1039 = vld [vmem:[%s1 + $0x98] sm:$0xff]
  %v1040 = vld [vmem:[%s1 + $0xa0] sm:$0xff]
  %v1041 = vld [vmem:[%s1 + $0xa8] sm:$0xff]
  %v1042 = vld [vmem:[%s1 + $0xb0] sm:$0xff]
  %v1043 = vld [vmem:[%s1 + $0xb8] sm:$0xff]
  %v1044 = vld [vmem:[%s1 + $0xc0] sm:$0xff]
  %v1045 = vld [vmem:[%s1 + $0xc8] sm:$0xff]
  %v1046 = vld [vmem:[%s1 + $0xd0] sm:$0xff]
  %v1047 = vld [vmem:[%s1 + $0xd8] sm:$0xff]
  %v1048 = vld [vmem:[%s1 + $0xe0] sm:$0xff]
  %v1049 = vld [vmem:[%s1 + $0xe8] sm:$0xff]
  %v1050 = vld [vmem:[%s1 + $0xf0] sm:$0xff]
  %v1051 = vld [vmem:[%s1 + $0xf8] sm:$0xff]
  %v1084 = vunpack.c.l.b16 %v1020
  %v1085 = vunpack.c.h.b16 %v1020
  %v1086 = vunpack.c.l.b16 %v1021
  %v1087 = vunpack.c.h.b16 %v1021
  %v1088 = vunpack.c.l.b16 %v1022
  %v1089 = vunpack.c.h.b16 %v1022
  %v1090 = vunpack.c.l.b16 %v1023
  %v1091 = vunpack.c.h.b16 %v1023
  %v1092 = vunpack.c.l.b16 %v1024
  %v1093 = vunpack.c.h.b16 %v1024
  %v1094 = vunpack.c.l.b16 %v1025
  %v1095 = vunpack.c.h.b16 %v1025
  %v1096 = vunpack.c.l.b16 %v1026
  %v1097 = vunpack.c.h.b16 %v1026
  %v1098 = vunpack.c.l.b16 %v1027
  %v1099 = vunpack.c.h.b16 %v1027
  %v1100 = vunpack.c.l.b16 %v1028
  %v1101 = vunpack.c.h.b16 %v1028
  %v1102 = vunpack.c.l.b16 %v1029
  %v1103 = vunpack.c.h.b16 %v1029
  %v1104 = vunpack.c.l.b16 %v1030
  %v1105 = vunpack.c.h.b16 %v1030
  %v1106 = vunpack.c.l.b16 %v1031
  %v1107 = vunpack.c.h.b16 %v1031
  %v1108 = vunpack.c.l.b16 %v1032
  %v1109 = vunpack.c.h.b16 %v1032
  %v1110 = vunpack.c.l.b16 %v1033
  %v1111 = vunpack.c.h.b16 %v1033
  %v1112 = vunpack.c.l.b16 %v1034
  %v1113 = vunpack.c.h.b16 %v1034
  %v1114 = vunpack.c.l.b16 %v1035
  %v1115 = vunpack.c.h.b16 %v1035
  %v1116 = vunpack.c.l.b16 %v1036
  %v1117 = vunpack.c.h.b16 %v1036
  %v1118 = vunpack.c.l.b16 %v1037
  %v1119 = vunpack.c.h.b16 %v1037
  %v1120 = vunpack.c.l.b16 %v1038
  %v1121 = vunpack.c.h.b16 %v1038
  %v1122 = vunpack.c.l.b16 %v1039
  %v1123 = vunpack.c.h.b16 %v1039
  %v1124 = vunpack.c.l.b16 %v1040
  %v1125 = vunpack.c.h.b16 %v1040
  %v1126 = vunpack.c.l.b16 %v1041
  %v1127 = vunpack.c.h.b16 %v1041
  %v1128 = vunpack.c.l.b16 %v1042
  %v1129 = vunpack.c.h.b16 %v1042
  %v1130 = vunpack.c.l.b16 %v1043
  %v1131 = vunpack.c.h.b16 %v1043
  %v1132 = vunpack.c.l.b16 %v1044
  %v1133 = vunpack.c.h.b16 %v1044
  %v1134 = vunpack.c.l.b16 %v1045
  %v1135 = vunpack.c.h.b16 %v1045
  %v1136 = vunpack.c.l.b16 %v1046
  %v1137 = vunpack.c.h.b16 %v1046
  %v1138 = vunpack.c.l.b16 %v1047
  %v1139 = vunpack.c.h.b16 %v1047
  %v1140 = vunpack.c.l.b16 %v1048
  %v1141 = vunpack.c.h.b16 %v1048
  %v1142 = vunpack.c.l.b16 %v1049
  %v1143 = vunpack.c.h.b16 %v1049
  %v1144 = vunpack.c.l.b16 %v1050
  %v1145 = vunpack.c.h.b16 %v1050
  %v1146 = vunpack.c.l.b16 %v1051
  %v1147 = vunpack.c.h.b16 %v1051
  %v1148 = vpack.c.b16 %v1088, %v1084
  %v1149 = vpack.c.b16 %v1089, %v1085
  %v1150 = vpack.c.b16 %v1090, %v1086
  %v1151 = vpack.c.b16 %v1091, %v1087
  %v1152 = vpack.c.b16 %v1096, %v1092
  %v1153 = vpack.c.b16 %v1097, %v1093
  %v1154 = vpack.c.b16 %v1098, %v1094
  %v1155 = vpack.c.b16 %v1099, %v1095
  %v1156 = vpack.c.b16 %v1104, %v1100
  %v1157 = vpack.c.b16 %v1105, %v1101
  %v1158 = vpack.c.b16 %v1106, %v1102
  %v1159 = vpack.c.b16 %v1107, %v1103
  %v1160 = vpack.c.b16 %v1112, %v1108
  %v1161 = vpack.c.b16 %v1113, %v1109
  %v1162 = vpack.c.b16 %v1114, %v1110
  %v1163 = vpack.c.b16 %v1115, %v1111
  %v1164 = vpack.c.b16 %v1120, %v1116
  %v1165 = vpack.c.b16 %v1121, %v1117
  %v1166 = vpack.c.b16 %v1122, %v1118
  %v1167 = vpack.c.b16 %v1123, %v1119
  %v1168 = vpack.c.b16 %v1128, %v1124
  %v1169 = vpack.c.b16 %v1129, %v1125
  %v1170 = vpack.c.b16 %v1130, %v1126
  %v1171 = vpack.c.b16 %v1131, %v1127
  %v1172 = vpack.c.b16 %v1136, %v1132
  %v1173 = vpack.c.b16 %v1137, %v1133
  %v1174 = vpack.c.b16 %v1138, %v1134
  %v1175 = vpack.c.b16 %v1139, %v1135
  %v1176 = vpack.c.b16 %v1144, %v1140
  %v1177 = vpack.c.b16 %v1145, %v1141
  %v1178 = vpack.c.b16 %v1146, %v1142
  %v1179 = vpack.c.b16 %v1147, %v1143
  %1212 = vmatprep.subr.bf16.mxu0 %v1149
  %1213 = vmatpush1.bf16.msra.mxu0 %v1148
  %1214 = vmatprep.subr.bf16.mxu0 %v1153
  %1215 = vmatpush1.bf16.msra.mxu0 %v1152
  %1216 = vmatprep.subr.bf16.mxu0 %v1157
  %1217 = vmatpush1.bf16.msra.mxu0 %v1156
  %1218 = vmatprep.subr.bf16.mxu0 %v1161
  %1219 = vmatpush1.bf16.msra.mxu0 %v1160
  %1220 = vmatprep.subr.bf16.mxu0 %v1165
  %1221 = vmatpush1.bf16.msra.mxu0 %v1164
  %1222 = vmatprep.subr.bf16.mxu0 %v1169
  %1223 = vmatpush1.bf16.msra.mxu0 %v1168
  %1224 = vmatprep.subr.bf16.mxu0 %v1173
  %1225 = vmatpush1.bf16.msra.mxu0 %v1172
  %1226 = vmatprep.subr.bf16.mxu0 %v1177
  %1227 = vmatpush1.bf16.msra.mxu0 %v1176
  %1228 = vmatprep.subr.bf16.mxu0 0
  %1229 = vmatpush1.bf16.msra.mxu0 0
  %1230 = vmatprep.subr.bf16.mxu0 0
  %1231 = vmatpush1.bf16.msra.mxu0 0
  %1232 = vmatprep.subr.bf16.mxu0 0
  %1233 = vmatpush1.bf16.msra.mxu0 0
  %1234 = vmatprep.subr.bf16.mxu0 0
  %1235 = vmatpush1.bf16.msra.mxu0 0
  %1236 = vmatprep.subr.bf16.mxu0 0
  %1237 = vmatpush1.bf16.msra.mxu0 0
  %1238 = vmatprep.subr.bf16.mxu0 0
  %1239 = vmatpush1.bf16.msra.mxu0 0
  %1240 = vmatprep.subr.bf16.mxu0 0
  %1241 = vmatpush1.bf16.msra.mxu0 0
  %1242 = vmatprep.subr.bf16.mxu0 0
  %1243 = vmatpush1.bf16.msra.mxu0 0
  %1244 = vmatprep.mubr.bf16.mxu0 0
  %1245 = vmatmul.mubr.bf16.gmra.mrb[0].mxu0 %v1015
  %v1246 = vpop.f32.mrb[0].mxu0
  %v1247 = vadd.f32 0.0, %v1246
  %v1248 = vpop.f32.mrb[0].mxu0
  %v1249 = vadd.f32 0.0, %v1248
  %v1250 = vpop.f32.mrb[0].mxu0
  %v1251 = vpop.f32.mrb[0].mxu0
  %1252 = vdwg.mxu0
  %1253 = vmatprep.subr.bf16.mxu0 %v1151
  %1254 = vmatpush1.bf16.msra.mxu0 %v1150
  %1255 = vmatprep.subr.bf16.mxu0 %v1155
  %1256 = vmatpush1.bf16.msra.mxu0 %v1154
  %1257 = vmatprep.subr.bf16.mxu0 %v1159
  %1258 = vmatpush1.bf16.msra.mxu0 %v1158
  %1259 = vmatprep.subr.bf16.mxu0 %v1163
  %1260 = vmatpush1.bf16.msra.mxu0 %v1162
  %1261 = vmatprep.subr.bf16.mxu0 %v1167
  %1262 = vmatpush1.bf16.msra.mxu0 %v1166
  %1263 = vmatprep.subr.bf16.mxu0 %v1171
  %1264 = vmatpush1.bf16.msra.mxu0 %v1170
  %1265 = vmatprep.subr.bf16.mxu0 %v1175
  %1266 = vmatpush1.bf16.msra.mxu0 %v1174
  %1267 = vmatprep.subr.bf16.mxu0 %v1179
  %1268 = vmatpush1.bf16.msra.mxu0 %v1178
  %1269 = vmatprep.subr.bf16.mxu0 0
  %1270 = vmatpush1.bf16.msra.mxu0 0
  %1271 = vmatprep.subr.bf16.mxu0 0
  %1272 = vmatpush1.bf16.msra.mxu0 0
  %1273 = vmatprep.subr.bf16.mxu0 0
  %1274 = vmatpush1.bf16.msra.mxu0 0
  %1275 = vmatprep.subr.bf16.mxu0 0
  %1276 = vmatpush1.bf16.msra.mxu0 0
  %1277 = vmatprep.subr.bf16.mxu0 0
  %1278 = vmatpush1.bf16.msra.mxu0 0
  %1279 = vmatprep.subr.bf16.mxu0 0
  %1280 = vmatpush1.bf16.msra.mxu0 0
  %1281 = vmatprep.subr.bf16.mxu0 0
  %1282 = vmatpush1.bf16.msra.mxu0 0
  %1283 = vmatprep.subr.bf16.mxu0 0
  %1284 = vmatpush1.bf16.msra.mxu0 0
  %1285 = vmatprep.mubr.bf16.mxu0 0
  %1286 = vmatmul.mubr.bf16.gmra.mrb[0].mxu0 %v1015
  %v1287 = vpop.f32.mrb[0].mxu0
  %v1288 = vadd.f32 0.0, %v1287
  %v1289 = vpop.f32.mrb[0].mxu0
  %v1290 = vadd.f32 0.0, %v1289
  %v1291 = vpop.f32.mrb[0].mxu0
  %v1292 = vpop.f32.mrb[0].mxu0
  %1293 = vdwg.mxu0
  %v1298 = vcombine.low %v1247, %v1249
  %v1299 = vcombine.low %v1288, %v1290
  %v1301 = vunpack.c.l.s4 1983009808
  %v1302 = vunpack.c.0.s8 %v1301
  %v1303 = vlaneseq
  %v1304 = vshrl.u32 %v1303, 7
  %v1305 = vsub.s32 %v1302, %v1304
  %v1306 = vrot.slane %v1298, %v1305
  %v1308 = vunpack.c.l.s4 1983009808
  %v1309 = vunpack.c.0.s8 %v1308
  %v1310 = vlaneseq
  %v1311 = vshrl.u32 %v1310, 7
  %v1312 = vsub.s32 %v1309, %v1311
  %v1313 = vrot.slane %v1299, %v1312
  %v1314 = vcombine.low %v1306, %v1313
  %v1316 = vadd.f32 %v1019, %v1314
  %v1317 = vxor.u32 %v1316, 2147483648
  %v1318 = vmul.f32 %v1317, 1.442695
  %v1319 = vpow.pop %v1318
  %v1320 = vadd.f32 %v1319, 1.0
  %v1321 = vrcp.pop %v1320
  %v1322 = vmul.f32 1.0, %v1321
  %v1324 = vrot.slane %v1316, 2
  %v1326 = vxor.u32 %v1324, 2147483648
  %v1327 = vmul.f32 %v1326, 1.442695
  %v1328 = vpow.pop %v1327
  %v1329 = vadd.f32 %v1328, 1.0
  %v1330 = vrcp.pop %v1329
  %v1331 = vmul.f32 1.0, %v1330
  %v1332 = vrot.slane %v1316, 4
  %v1334 = vtanh.pop %v1332
  %v1335 = vrot.slane %v1316, 6
  %v1337 = vxor.u32 %v1335, 2147483648
  %v1338 = vmul.f32 %v1337, 1.442695
  %v1339 = vpow.pop %v1338
  %v1340 = vadd.f32 %v1339, 1.0
  %v1341 = vrcp.pop %v1340
  %v1342 = vmul.f32 1.0, %v1341
  %v1343 = vmul.f32 %v1331, %v1012
  %v1344 = vmul.f32 %v1322, %v1334
  %v1345 = vadd.f32 %v1343, %v1344
  %v1346 = vtanh.pop %v1345
  %v1347 = vmul.f32 %v1342, %v1346
  %v1348 = vpack.c.bf16 %v1347, %v1347
  %s1349 = scalar_lea.vmem %s2, 3
  %1350 = vst [vmem:[%s1349] sm:$0x1] %v1348
  %s1351 = scalar_lea.vmem %s0, 32
  %v1352 = vld [vmem:[%s1351] sm:$0xff]
  %v1353 = vld [vmem:[%s1] sm:$0xff]
  %v1354 = vld [vmem:[%s1 + $0x8] sm:$0xff]
  %v1355 = vld [vmem:[%s1 + $0x10] sm:$0xff]
  %v1356 = vld [vmem:[%s1 + $0x18] sm:$0xff]
  %v1357 = vld [vmem:[%s1 + $0x20] sm:$0xff]
  %v1358 = vld [vmem:[%s1 + $0x28] sm:$0xff]
  %v1359 = vld [vmem:[%s1 + $0x30] sm:$0xff]
  %v1360 = vld [vmem:[%s1 + $0x38] sm:$0xff]
  %v1361 = vld [vmem:[%s1 + $0x40] sm:$0xff]
  %v1362 = vld [vmem:[%s1 + $0x48] sm:$0xff]
  %v1363 = vld [vmem:[%s1 + $0x50] sm:$0xff]
  %v1364 = vld [vmem:[%s1 + $0x58] sm:$0xff]
  %v1365 = vld [vmem:[%s1 + $0x60] sm:$0xff]
  %v1366 = vld [vmem:[%s1 + $0x68] sm:$0xff]
  %v1367 = vld [vmem:[%s1 + $0x70] sm:$0xff]
  %v1368 = vld [vmem:[%s1 + $0x78] sm:$0xff]
  %v1369 = vld [vmem:[%s1 + $0x80] sm:$0xff]
  %v1370 = vld [vmem:[%s1 + $0x88] sm:$0xff]
  %v1371 = vld [vmem:[%s1 + $0x90] sm:$0xff]
  %v1372 = vld [vmem:[%s1 + $0x98] sm:$0xff]
  %v1373 = vld [vmem:[%s1 + $0xa0] sm:$0xff]
  %v1374 = vld [vmem:[%s1 + $0xa8] sm:$0xff]
  %v1375 = vld [vmem:[%s1 + $0xb0] sm:$0xff]
  %v1376 = vld [vmem:[%s1 + $0xb8] sm:$0xff]
  %v1377 = vld [vmem:[%s1 + $0xc0] sm:$0xff]
  %v1378 = vld [vmem:[%s1 + $0xc8] sm:$0xff]
  %v1379 = vld [vmem:[%s1 + $0xd0] sm:$0xff]
  %v1380 = vld [vmem:[%s1 + $0xd8] sm:$0xff]
  %v1381 = vld [vmem:[%s1 + $0xe0] sm:$0xff]
  %v1382 = vld [vmem:[%s1 + $0xe8] sm:$0xff]
  %v1383 = vld [vmem:[%s1 + $0xf0] sm:$0xff]
  %v1384 = vld [vmem:[%s1 + $0xf8] sm:$0xff]
  %v1417 = vunpack.c.l.b16 %v1353
  %v1418 = vunpack.c.h.b16 %v1353
  %v1419 = vunpack.c.l.b16 %v1354
  %v1420 = vunpack.c.h.b16 %v1354
  %v1421 = vunpack.c.l.b16 %v1355
  %v1422 = vunpack.c.h.b16 %v1355
  %v1423 = vunpack.c.l.b16 %v1356
  %v1424 = vunpack.c.h.b16 %v1356
  %v1425 = vunpack.c.l.b16 %v1357
  %v1426 = vunpack.c.h.b16 %v1357
  %v1427 = vunpack.c.l.b16 %v1358
  %v1428 = vunpack.c.h.b16 %v1358
  %v1429 = vunpack.c.l.b16 %v1359
  %v1430 = vunpack.c.h.b16 %v1359
  %v1431 = vunpack.c.l.b16 %v1360
  %v1432 = vunpack.c.h.b16 %v1360
  %v1433 = vunpack.c.l.b16 %v1361
  %v1434 = vunpack.c.h.b16 %v1361
  %v1435 = vunpack.c.l.b16 %v1362
  %v1436 = vunpack.c.h.b16 %v1362
  %v1437 = vunpack.c.l.b16 %v1363
  %v1438 = vunpack.c.h.b16 %v1363
  %v1439 = vunpack.c.l.b16 %v1364
  %v1440 = vunpack.c.h.b16 %v1364
  %v1441 = vunpack.c.l.b16 %v1365
  %v1442 = vunpack.c.h.b16 %v1365
  %v1443 = vunpack.c.l.b16 %v1366
  %v1444 = vunpack.c.h.b16 %v1366
  %v1445 = vunpack.c.l.b16 %v1367
  %v1446 = vunpack.c.h.b16 %v1367
  %v1447 = vunpack.c.l.b16 %v1368
  %v1448 = vunpack.c.h.b16 %v1368
  %v1449 = vunpack.c.l.b16 %v1369
  %v1450 = vunpack.c.h.b16 %v1369
  %v1451 = vunpack.c.l.b16 %v1370
  %v1452 = vunpack.c.h.b16 %v1370
  %v1453 = vunpack.c.l.b16 %v1371
  %v1454 = vunpack.c.h.b16 %v1371
  %v1455 = vunpack.c.l.b16 %v1372
  %v1456 = vunpack.c.h.b16 %v1372
  %v1457 = vunpack.c.l.b16 %v1373
  %v1458 = vunpack.c.h.b16 %v1373
  %v1459 = vunpack.c.l.b16 %v1374
  %v1460 = vunpack.c.h.b16 %v1374
  %v1461 = vunpack.c.l.b16 %v1375
  %v1462 = vunpack.c.h.b16 %v1375
  %v1463 = vunpack.c.l.b16 %v1376
  %v1464 = vunpack.c.h.b16 %v1376
  %v1465 = vunpack.c.l.b16 %v1377
  %v1466 = vunpack.c.h.b16 %v1377
  %v1467 = vunpack.c.l.b16 %v1378
  %v1468 = vunpack.c.h.b16 %v1378
  %v1469 = vunpack.c.l.b16 %v1379
  %v1470 = vunpack.c.h.b16 %v1379
  %v1471 = vunpack.c.l.b16 %v1380
  %v1472 = vunpack.c.h.b16 %v1380
  %v1473 = vunpack.c.l.b16 %v1381
  %v1474 = vunpack.c.h.b16 %v1381
  %v1475 = vunpack.c.l.b16 %v1382
  %v1476 = vunpack.c.h.b16 %v1382
  %v1477 = vunpack.c.l.b16 %v1383
  %v1478 = vunpack.c.h.b16 %v1383
  %v1479 = vunpack.c.l.b16 %v1384
  %v1480 = vunpack.c.h.b16 %v1384
  %v1481 = vpack.c.b16 %v1421, %v1417
  %v1482 = vpack.c.b16 %v1422, %v1418
  %v1483 = vpack.c.b16 %v1423, %v1419
  %v1484 = vpack.c.b16 %v1424, %v1420
  %v1485 = vpack.c.b16 %v1429, %v1425
  %v1486 = vpack.c.b16 %v1430, %v1426
  %v1487 = vpack.c.b16 %v1431, %v1427
  %v1488 = vpack.c.b16 %v1432, %v1428
  %v1489 = vpack.c.b16 %v1437, %v1433
  %v1490 = vpack.c.b16 %v1438, %v1434
  %v1491 = vpack.c.b16 %v1439, %v1435
  %v1492 = vpack.c.b16 %v1440, %v1436
  %v1493 = vpack.c.b16 %v1445, %v1441
  %v1494 = vpack.c.b16 %v1446, %v1442
  %v1495 = vpack.c.b16 %v1447, %v1443
  %v1496 = vpack.c.b16 %v1448, %v1444
  %v1497 = vpack.c.b16 %v1453, %v1449
  %v1498 = vpack.c.b16 %v1454, %v1450
  %v1499 = vpack.c.b16 %v1455, %v1451
  %v1500 = vpack.c.b16 %v1456, %v1452
  %v1501 = vpack.c.b16 %v1461, %v1457
  %v1502 = vpack.c.b16 %v1462, %v1458
  %v1503 = vpack.c.b16 %v1463, %v1459
  %v1504 = vpack.c.b16 %v1464, %v1460
  %v1505 = vpack.c.b16 %v1469, %v1465
  %v1506 = vpack.c.b16 %v1470, %v1466
  %v1507 = vpack.c.b16 %v1471, %v1467
  %v1508 = vpack.c.b16 %v1472, %v1468
  %v1509 = vpack.c.b16 %v1477, %v1473
  %v1510 = vpack.c.b16 %v1478, %v1474
  %v1511 = vpack.c.b16 %v1479, %v1475
  %v1512 = vpack.c.b16 %v1480, %v1476
  %1545 = vmatprep.subr.bf16.mxu0 %v1482
  %1546 = vmatpush1.bf16.msra.mxu0 %v1481
  %1547 = vmatprep.subr.bf16.mxu0 %v1486
  %1548 = vmatpush1.bf16.msra.mxu0 %v1485
  %1549 = vmatprep.subr.bf16.mxu0 %v1490
  %1550 = vmatpush1.bf16.msra.mxu0 %v1489
  %1551 = vmatprep.subr.bf16.mxu0 %v1494
  %1552 = vmatpush1.bf16.msra.mxu0 %v1493
  %1553 = vmatprep.subr.bf16.mxu0 %v1498
  %1554 = vmatpush1.bf16.msra.mxu0 %v1497
  %1555 = vmatprep.subr.bf16.mxu0 %v1502
  %1556 = vmatpush1.bf16.msra.mxu0 %v1501
  %1557 = vmatprep.subr.bf16.mxu0 %v1506
  %1558 = vmatpush1.bf16.msra.mxu0 %v1505
  %1559 = vmatprep.subr.bf16.mxu0 %v1510
  %1560 = vmatpush1.bf16.msra.mxu0 %v1509
  %1561 = vmatprep.subr.bf16.mxu0 0
  %1562 = vmatpush1.bf16.msra.mxu0 0
  %1563 = vmatprep.subr.bf16.mxu0 0
  %1564 = vmatpush1.bf16.msra.mxu0 0
  %1565 = vmatprep.subr.bf16.mxu0 0
  %1566 = vmatpush1.bf16.msra.mxu0 0
  %1567 = vmatprep.subr.bf16.mxu0 0
  %1568 = vmatpush1.bf16.msra.mxu0 0
  %1569 = vmatprep.subr.bf16.mxu0 0
  %1570 = vmatpush1.bf16.msra.mxu0 0
  %1571 = vmatprep.subr.bf16.mxu0 0
  %1572 = vmatpush1.bf16.msra.mxu0 0
  %1573 = vmatprep.subr.bf16.mxu0 0
  %1574 = vmatpush1.bf16.msra.mxu0 0
  %1575 = vmatprep.subr.bf16.mxu0 0
  %1576 = vmatpush1.bf16.msra.mxu0 0
  %1577 = vmatprep.mubr.bf16.mxu0 0
  %1578 = vmatmul.mubr.bf16.gmra.mrb[0].mxu0 %v1348
  %v1579 = vpop.f32.mrb[0].mxu0
  %v1580 = vadd.f32 0.0, %v1579
  %v1581 = vpop.f32.mrb[0].mxu0
  %v1582 = vadd.f32 0.0, %v1581
  %v1583 = vpop.f32.mrb[0].mxu0
  %v1584 = vpop.f32.mrb[0].mxu0
  %1585 = vdwg.mxu0
  %1586 = vmatprep.subr.bf16.mxu0 %v1484
  %1587 = vmatpush1.bf16.msra.mxu0 %v1483
  %1588 = vmatprep.subr.bf16.mxu0 %v1488
  %1589 = vmatpush1.bf16.msra.mxu0 %v1487
  %1590 = vmatprep.subr.bf16.mxu0 %v1492
  %1591 = vmatpush1.bf16.msra.mxu0 %v1491
  %1592 = vmatprep.subr.bf16.mxu0 %v1496
  %1593 = vmatpush1.bf16.msra.mxu0 %v1495
  %1594 = vmatprep.subr.bf16.mxu0 %v1500
  %1595 = vmatpush1.bf16.msra.mxu0 %v1499
  %1596 = vmatprep.subr.bf16.mxu0 %v1504
  %1597 = vmatpush1.bf16.msra.mxu0 %v1503
  %1598 = vmatprep.subr.bf16.mxu0 %v1508
  %1599 = vmatpush1.bf16.msra.mxu0 %v1507
  %1600 = vmatprep.subr.bf16.mxu0 %v1512
  %1601 = vmatpush1.bf16.msra.mxu0 %v1511
  %1602 = vmatprep.subr.bf16.mxu0 0
  %1603 = vmatpush1.bf16.msra.mxu0 0
  %1604 = vmatprep.subr.bf16.mxu0 0
  %1605 = vmatpush1.bf16.msra.mxu0 0
  %1606 = vmatprep.subr.bf16.mxu0 0
  %1607 = vmatpush1.bf16.msra.mxu0 0
  %1608 = vmatprep.subr.bf16.mxu0 0
  %1609 = vmatpush1.bf16.msra.mxu0 0
  %1610 = vmatprep.subr.bf16.mxu0 0
  %1611 = vmatpush1.bf16.msra.mxu0 0
  %1612 = vmatprep.subr.bf16.mxu0 0
  %1613 = vmatpush1.bf16.msra.mxu0 0
  %1614 = vmatprep.subr.bf16.mxu0 0
  %1615 = vmatpush1.bf16.msra.mxu0 0
  %1616 = vmatprep.subr.bf16.mxu0 0
  %1617 = vmatpush1.bf16.msra.mxu0 0
  %1618 = vmatprep.mubr.bf16.mxu0 0
  %1619 = vmatmul.mubr.bf16.gmra.mrb[0].mxu0 %v1348
  %v1620 = vpop.f32.mrb[0].mxu0
  %v1621 = vadd.f32 0.0, %v1620
  %v1622 = vpop.f32.mrb[0].mxu0
  %v1623 = vadd.f32 0.0, %v1622
  %v1624 = vpop.f32.mrb[0].mxu0
  %v1625 = vpop.f32.mrb[0].mxu0
  %1626 = vdwg.mxu0
  %v1631 = vcombine.low %v1580, %v1582
  %v1632 = vcombine.low %v1621, %v1623
  %v1634 = vunpack.c.l.s4 1983009808
  %v1635 = vunpack.c.0.s8 %v1634
  %v1636 = vlaneseq
  %v1637 = vshrl.u32 %v1636, 7
  %v1638 = vsub.s32 %v1635, %v1637
  %v1639 = vrot.slane %v1631, %v1638
  %v1641 = vunpack.c.l.s4 1983009808
  %v1642 = vunpack.c.0.s8 %v1641
  %v1643 = vlaneseq
  %v1644 = vshrl.u32 %v1643, 7
  %v1645 = vsub.s32 %v1642, %v1644
  %v1646 = vrot.slane %v1632, %v1645
  %v1647 = vcombine.low %v1639, %v1646
  %v1649 = vadd.f32 %v1352, %v1647
  %v1650 = vxor.u32 %v1649, 2147483648
  %v1651 = vmul.f32 %v1650, 1.442695
  %v1652 = vpow.pop %v1651
  %v1653 = vadd.f32 %v1652, 1.0
  %v1654 = vrcp.pop %v1653
  %v1655 = vmul.f32 1.0, %v1654
  %v1657 = vrot.slane %v1649, 2
  %v1659 = vxor.u32 %v1657, 2147483648
  %v1660 = vmul.f32 %v1659, 1.442695
  %v1661 = vpow.pop %v1660
  %v1662 = vadd.f32 %v1661, 1.0
  %v1663 = vrcp.pop %v1662
  %v1664 = vmul.f32 1.0, %v1663
  %v1665 = vrot.slane %v1649, 4
  %v1667 = vtanh.pop %v1665
  %v1668 = vrot.slane %v1649, 6
  %v1670 = vxor.u32 %v1668, 2147483648
  %v1671 = vmul.f32 %v1670, 1.442695
  %v1672 = vpow.pop %v1671
  %v1673 = vadd.f32 %v1672, 1.0
  %v1674 = vrcp.pop %v1673
  %v1675 = vmul.f32 1.0, %v1674
  %v1676 = vmul.f32 %v1664, %v1345
  %v1677 = vmul.f32 %v1655, %v1667
  %v1678 = vadd.f32 %v1676, %v1677
  %v1679 = vtanh.pop %v1678
  %v1680 = vmul.f32 %v1675, %v1679
  %v1681 = vpack.c.bf16 %v1680, %v1680
  %s1682 = scalar_lea.vmem %s2, 4
  %1683 = vst [vmem:[%s1682] sm:$0x1] %v1681
  %s1684 = scalar_lea.vmem %s0, 40
  %v1685 = vld [vmem:[%s1684] sm:$0xff]
  %v1686 = vld [vmem:[%s1] sm:$0xff]
  %v1687 = vld [vmem:[%s1 + $0x8] sm:$0xff]
  %v1688 = vld [vmem:[%s1 + $0x10] sm:$0xff]
  %v1689 = vld [vmem:[%s1 + $0x18] sm:$0xff]
  %v1690 = vld [vmem:[%s1 + $0x20] sm:$0xff]
  %v1691 = vld [vmem:[%s1 + $0x28] sm:$0xff]
  %v1692 = vld [vmem:[%s1 + $0x30] sm:$0xff]
  %v1693 = vld [vmem:[%s1 + $0x38] sm:$0xff]
  %v1694 = vld [vmem:[%s1 + $0x40] sm:$0xff]
  %v1695 = vld [vmem:[%s1 + $0x48] sm:$0xff]
  %v1696 = vld [vmem:[%s1 + $0x50] sm:$0xff]
  %v1697 = vld [vmem:[%s1 + $0x58] sm:$0xff]
  %v1698 = vld [vmem:[%s1 + $0x60] sm:$0xff]
  %v1699 = vld [vmem:[%s1 + $0x68] sm:$0xff]
  %v1700 = vld [vmem:[%s1 + $0x70] sm:$0xff]
  %v1701 = vld [vmem:[%s1 + $0x78] sm:$0xff]
  %v1702 = vld [vmem:[%s1 + $0x80] sm:$0xff]
  %v1703 = vld [vmem:[%s1 + $0x88] sm:$0xff]
  %v1704 = vld [vmem:[%s1 + $0x90] sm:$0xff]
  %v1705 = vld [vmem:[%s1 + $0x98] sm:$0xff]
  %v1706 = vld [vmem:[%s1 + $0xa0] sm:$0xff]
  %v1707 = vld [vmem:[%s1 + $0xa8] sm:$0xff]
  %v1708 = vld [vmem:[%s1 + $0xb0] sm:$0xff]
  %v1709 = vld [vmem:[%s1 + $0xb8] sm:$0xff]
  %v1710 = vld [vmem:[%s1 + $0xc0] sm:$0xff]
  %v1711 = vld [vmem:[%s1 + $0xc8] sm:$0xff]
  %v1712 = vld [vmem:[%s1 + $0xd0] sm:$0xff]
  %v1713 = vld [vmem:[%s1 + $0xd8] sm:$0xff]
  %v1714 = vld [vmem:[%s1 + $0xe0] sm:$0xff]
  %v1715 = vld [vmem:[%s1 + $0xe8] sm:$0xff]
  %v1716 = vld [vmem:[%s1 + $0xf0] sm:$0xff]
  %v1717 = vld [vmem:[%s1 + $0xf8] sm:$0xff]
  %v1750 = vunpack.c.l.b16 %v1686
  %v1751 = vunpack.c.h.b16 %v1686
  %v1752 = vunpack.c.l.b16 %v1687
  %v1753 = vunpack.c.h.b16 %v1687
  %v1754 = vunpack.c.l.b16 %v1688
  %v1755 = vunpack.c.h.b16 %v1688
  %v1756 = vunpack.c.l.b16 %v1689
  %v1757 = vunpack.c.h.b16 %v1689
  %v1758 = vunpack.c.l.b16 %v1690
  %v1759 = vunpack.c.h.b16 %v1690
  %v1760 = vunpack.c.l.b16 %v1691
  %v1761 = vunpack.c.h.b16 %v1691
  %v1762 = vunpack.c.l.b16 %v1692
  %v1763 = vunpack.c.h.b16 %v1692
  %v1764 = vunpack.c.l.b16 %v1693
  %v1765 = vunpack.c.h.b16 %v1693
  %v1766 = vunpack.c.l.b16 %v1694
  %v1767 = vunpack.c.h.b16 %v1694
  %v1768 = vunpack.c.l.b16 %v1695
  %v1769 = vunpack.c.h.b16 %v1695
  %v1770 = vunpack.c.l.b16 %v1696
  %v1771 = vunpack.c.h.b16 %v1696
  %v1772 = vunpack.c.l.b16 %v1697
  %v1773 = vunpack.c.h.b16 %v1697
  %v1774 = vunpack.c.l.b16 %v1698
  %v1775 = vunpack.c.h.b16 %v1698
  %v1776 = vunpack.c.l.b16 %v1699
  %v1777 = vunpack.c.h.b16 %v1699
  %v1778 = vunpack.c.l.b16 %v1700
  %v1779 = vunpack.c.h.b16 %v1700
  %v1780 = vunpack.c.l.b16 %v1701
  %v1781 = vunpack.c.h.b16 %v1701
  %v1782 = vunpack.c.l.b16 %v1702
  %v1783 = vunpack.c.h.b16 %v1702
  %v1784 = vunpack.c.l.b16 %v1703
  %v1785 = vunpack.c.h.b16 %v1703
  %v1786 = vunpack.c.l.b16 %v1704
  %v1787 = vunpack.c.h.b16 %v1704
  %v1788 = vunpack.c.l.b16 %v1705
  %v1789 = vunpack.c.h.b16 %v1705
  %v1790 = vunpack.c.l.b16 %v1706
  %v1791 = vunpack.c.h.b16 %v1706
  %v1792 = vunpack.c.l.b16 %v1707
  %v1793 = vunpack.c.h.b16 %v1707
  %v1794 = vunpack.c.l.b16 %v1708
  %v1795 = vunpack.c.h.b16 %v1708
  %v1796 = vunpack.c.l.b16 %v1709
  %v1797 = vunpack.c.h.b16 %v1709
  %v1798 = vunpack.c.l.b16 %v1710
  %v1799 = vunpack.c.h.b16 %v1710
  %v1800 = vunpack.c.l.b16 %v1711
  %v1801 = vunpack.c.h.b16 %v1711
  %v1802 = vunpack.c.l.b16 %v1712
  %v1803 = vunpack.c.h.b16 %v1712
  %v1804 = vunpack.c.l.b16 %v1713
  %v1805 = vunpack.c.h.b16 %v1713
  %v1806 = vunpack.c.l.b16 %v1714
  %v1807 = vunpack.c.h.b16 %v1714
  %v1808 = vunpack.c.l.b16 %v1715
  %v1809 = vunpack.c.h.b16 %v1715
  %v1810 = vunpack.c.l.b16 %v1716
  %v1811 = vunpack.c.h.b16 %v1716
  %v1812 = vunpack.c.l.b16 %v1717
  %v1813 = vunpack.c.h.b16 %v1717
  %v1814 = vpack.c.b16 %v1754, %v1750
  %v1815 = vpack.c.b16 %v1755, %v1751
  %v1816 = vpack.c.b16 %v1756, %v1752
  %v1817 = vpack.c.b16 %v1757, %v1753
  %v1818 = vpack.c.b16 %v1762, %v1758
  %v1819 = vpack.c.b16 %v1763, %v1759
  %v1820 = vpack.c.b16 %v1764, %v1760
  %v1821 = vpack.c.b16 %v1765, %v1761
  %v1822 = vpack.c.b16 %v1770, %v1766
  %v1823 = vpack.c.b16 %v1771, %v1767
  %v1824 = vpack.c.b16 %v1772, %v1768
  %v1825 = vpack.c.b16 %v1773, %v1769
  %v1826 = vpack.c.b16 %v1778, %v1774
  %v1827 = vpack.c.b16 %v1779, %v1775
  %v1828 = vpack.c.b16 %v1780, %v1776
  %v1829 = vpack.c.b16 %v1781, %v1777
  %v1830 = vpack.c.b16 %v1786, %v1782
  %v1831 = vpack.c.b16 %v1787, %v1783
  %v1832 = vpack.c.b16 %v1788, %v1784
  %v1833 = vpack.c.b16 %v1789, %v1785
  %v1834 = vpack.c.b16 %v1794, %v1790
  %v1835 = vpack.c.b16 %v1795, %v1791
  %v1836 = vpack.c.b16 %v1796, %v1792
  %v1837 = vpack.c.b16 %v1797, %v1793
  %v1838 = vpack.c.b16 %v1802, %v1798
  %v1839 = vpack.c.b16 %v1803, %v1799
  %v1840 = vpack.c.b16 %v1804, %v1800
  %v1841 = vpack.c.b16 %v1805, %v1801
  %v1842 = vpack.c.b16 %v1810, %v1806
  %v1843 = vpack.c.b16 %v1811, %v1807
  %v1844 = vpack.c.b16 %v1812, %v1808
  %v1845 = vpack.c.b16 %v1813, %v1809
  %1878 = vmatprep.subr.bf16.mxu0 %v1815
  %1879 = vmatpush1.bf16.msra.mxu0 %v1814
  %1880 = vmatprep.subr.bf16.mxu0 %v1819
  %1881 = vmatpush1.bf16.msra.mxu0 %v1818
  %1882 = vmatprep.subr.bf16.mxu0 %v1823
  %1883 = vmatpush1.bf16.msra.mxu0 %v1822
  %1884 = vmatprep.subr.bf16.mxu0 %v1827
  %1885 = vmatpush1.bf16.msra.mxu0 %v1826
  %1886 = vmatprep.subr.bf16.mxu0 %v1831
  %1887 = vmatpush1.bf16.msra.mxu0 %v1830
  %1888 = vmatprep.subr.bf16.mxu0 %v1835
  %1889 = vmatpush1.bf16.msra.mxu0 %v1834
  %1890 = vmatprep.subr.bf16.mxu0 %v1839
  %1891 = vmatpush1.bf16.msra.mxu0 %v1838
  %1892 = vmatprep.subr.bf16.mxu0 %v1843
  %1893 = vmatpush1.bf16.msra.mxu0 %v1842
  %1894 = vmatprep.subr.bf16.mxu0 0
  %1895 = vmatpush1.bf16.msra.mxu0 0
  %1896 = vmatprep.subr.bf16.mxu0 0
  %1897 = vmatpush1.bf16.msra.mxu0 0
  %1898 = vmatprep.subr.bf16.mxu0 0
  %1899 = vmatpush1.bf16.msra.mxu0 0
  %1900 = vmatprep.subr.bf16.mxu0 0
  %1901 = vmatpush1.bf16.msra.mxu0 0
  %1902 = vmatprep.subr.bf16.mxu0 0
  %1903 = vmatpush1.bf16.msra.mxu0 0
  %1904 = vmatprep.subr.bf16.mxu0 0
  %1905 = vmatpush1.bf16.msra.mxu0 0
  %1906 = vmatprep.subr.bf16.mxu0 0
  %1907 = vmatpush1.bf16.msra.mxu0 0
  %1908 = vmatprep.subr.bf16.mxu0 0
  %1909 = vmatpush1.bf16.msra.mxu0 0
  %1910 = vmatprep.mubr.bf16.mxu0 0
  %1911 = vmatmul.mubr.bf16.gmra.mrb[0].mxu0 %v1681
  %v1912 = vpop.f32.mrb[0].mxu0
  %v1913 = vadd.f32 0.0, %v1912
  %v1914 = vpop.f32.mrb[0].mxu0
  %v1915 = vadd.f32 0.0, %v1914
  %v1916 = vpop.f32.mrb[0].mxu0
  %v1917 = vpop.f32.mrb[0].mxu0
  %1918 = vdwg.mxu0
  %1919 = vmatprep.subr.bf16.mxu0 %v1817
  %1920 = vmatpush1.bf16.msra.mxu0 %v1816
  %1921 = vmatprep.subr.bf16.mxu0 %v1821
  %1922 = vmatpush1.bf16.msra.mxu0 %v1820
  %1923 = vmatprep.subr.bf16.mxu0 %v1825
  %1924 = vmatpush1.bf16.msra.mxu0 %v1824
  %1925 = vmatprep.subr.bf16.mxu0 %v1829
  %1926 = vmatpush1.bf16.msra.mxu0 %v1828
  %1927 = vmatprep.subr.bf16.mxu0 %v1833
  %1928 = vmatpush1.bf16.msra.mxu0 %v1832
  %1929 = vmatprep.subr.bf16.mxu0 %v1837
  %1930 = vmatpush1.bf16.msra.mxu0 %v1836
  %1931 = vmatprep.subr.bf16.mxu0 %v1841
  %1932 = vmatpush1.bf16.msra.mxu0 %v1840
  %1933 = vmatprep.subr.bf16.mxu0 %v1845
  %1934 = vmatpush1.bf16.msra.mxu0 %v1844
  %1935 = vmatprep.subr.bf16.mxu0 0
  %1936 = vmatpush1.bf16.msra.mxu0 0
  %1937 = vmatprep.subr.bf16.mxu0 0
  %1938 = vmatpush1.bf16.msra.mxu0 0
  %1939 = vmatprep.subr.bf16.mxu0 0
  %1940 = vmatpush1.bf16.msra.mxu0 0
  %1941 = vmatprep.subr.bf16.mxu0 0
  %1942 = vmatpush1.bf16.msra.mxu0 0
  %1943 = vmatprep.subr.bf16.mxu0 0
  %1944 = vmatpush1.bf16.msra.mxu0 0
  %1945 = vmatprep.subr.bf16.mxu0 0
  %1946 = vmatpush1.bf16.msra.mxu0 0
  %1947 = vmatprep.subr.bf16.mxu0 0
  %1948 = vmatpush1.bf16.msra.mxu0 0
  %1949 = vmatprep.subr.bf16.mxu0 0
  %1950 = vmatpush1.bf16.msra.mxu0 0
  %1951 = vmatprep.mubr.bf16.mxu0 0
  %1952 = vmatmul.mubr.bf16.gmra.mrb[0].mxu0 %v1681
  %v1953 = vpop.f32.mrb[0].mxu0
  %v1954 = vadd.f32 0.0, %v1953
  %v1955 = vpop.f32.mrb[0].mxu0
  %v1956 = vadd.f32 0.0, %v1955
  %v1957 = vpop.f32.mrb[0].mxu0
  %v1958 = vpop.f32.mrb[0].mxu0
  %1959 = vdwg.mxu0
  %v1964 = vcombine.low %v1913, %v1915
  %v1965 = vcombine.low %v1954, %v1956
  %v1967 = vunpack.c.l.s4 1983009808
  %v1968 = vunpack.c.0.s8 %v1967
  %v1969 = vlaneseq
  %v1970 = vshrl.u32 %v1969, 7
  %v1971 = vsub.s32 %v1968, %v1970
  %v1972 = vrot.slane %v1964, %v1971
  %v1974 = vunpack.c.l.s4 1983009808
  %v1975 = vunpack.c.0.s8 %v1974
  %v1976 = vlaneseq
  %v1977 = vshrl.u32 %v1976, 7
  %v1978 = vsub.s32 %v1975, %v1977
  %v1979 = vrot.slane %v1965, %v1978
  %v1980 = vcombine.low %v1972, %v1979
  %v1982 = vadd.f32 %v1685, %v1980
  %v1983 = vxor.u32 %v1982, 2147483648
  %v1984 = vmul.f32 %v1983, 1.442695
  %v1985 = vpow.pop %v1984
  %v1986 = vadd.f32 %v1985, 1.0
  %v1987 = vrcp.pop %v1986
  %v1988 = vmul.f32 1.0, %v1987
  %v1990 = vrot.slane %v1982, 2
  %v1992 = vxor.u32 %v1990, 2147483648
  %v1993 = vmul.f32 %v1992, 1.442695
  %v1994 = vpow.pop %v1993
  %v1995 = vadd.f32 %v1994, 1.0
  %v1996 = vrcp.pop %v1995
  %v1997 = vmul.f32 1.0, %v1996
  %v1998 = vrot.slane %v1982, 4
  %v2000 = vtanh.pop %v1998
  %v2001 = vrot.slane %v1982, 6
  %v2003 = vxor.u32 %v2001, 2147483648
  %v2004 = vmul.f32 %v2003, 1.442695
  %v2005 = vpow.pop %v2004
  %v2006 = vadd.f32 %v2005, 1.0
  %v2007 = vrcp.pop %v2006
  %v2008 = vmul.f32 1.0, %v2007
  %v2009 = vmul.f32 %v1997, %v1678
  %v2010 = vmul.f32 %v1988, %v2000
  %v2011 = vadd.f32 %v2009, %v2010
  %v2012 = vtanh.pop %v2011
  %v2013 = vmul.f32 %v2008, %v2012
  %v2014 = vpack.c.bf16 %v2013, %v2013
  %s2015 = scalar_lea.vmem %s2, 5
  %2016 = vst [vmem:[%s2015] sm:$0x1] %v2014
  %s2017 = scalar_lea.vmem %s0, 48
  %v2018 = vld [vmem:[%s2017] sm:$0xff]
  %v2019 = vld [vmem:[%s1] sm:$0xff]
  %v2020 = vld [vmem:[%s1 + $0x8] sm:$0xff]
  %v2021 = vld [vmem:[%s1 + $0x10] sm:$0xff]
  %v2022 = vld [vmem:[%s1 + $0x18] sm:$0xff]
  %v2023 = vld [vmem:[%s1 + $0x20] sm:$0xff]
  %v2024 = vld [vmem:[%s1 + $0x28] sm:$0xff]
  %v2025 = vld [vmem:[%s1 + $0x30] sm:$0xff]
  %v2026 = vld [vmem:[%s1 + $0x38] sm:$0xff]
  %v2027 = vld [vmem:[%s1 + $0x40] sm:$0xff]
  %v2028 = vld [vmem:[%s1 + $0x48] sm:$0xff]
  %v2029 = vld [vmem:[%s1 + $0x50] sm:$0xff]
  %v2030 = vld [vmem:[%s1 + $0x58] sm:$0xff]
  %v2031 = vld [vmem:[%s1 + $0x60] sm:$0xff]
  %v2032 = vld [vmem:[%s1 + $0x68] sm:$0xff]
  %v2033 = vld [vmem:[%s1 + $0x70] sm:$0xff]
  %v2034 = vld [vmem:[%s1 + $0x78] sm:$0xff]
  %v2035 = vld [vmem:[%s1 + $0x80] sm:$0xff]
  %v2036 = vld [vmem:[%s1 + $0x88] sm:$0xff]
  %v2037 = vld [vmem:[%s1 + $0x90] sm:$0xff]
  %v2038 = vld [vmem:[%s1 + $0x98] sm:$0xff]
  %v2039 = vld [vmem:[%s1 + $0xa0] sm:$0xff]
  %v2040 = vld [vmem:[%s1 + $0xa8] sm:$0xff]
  %v2041 = vld [vmem:[%s1 + $0xb0] sm:$0xff]
  %v2042 = vld [vmem:[%s1 + $0xb8] sm:$0xff]
  %v2043 = vld [vmem:[%s1 + $0xc0] sm:$0xff]
  %v2044 = vld [vmem:[%s1 + $0xc8] sm:$0xff]
  %v2045 = vld [vmem:[%s1 + $0xd0] sm:$0xff]
  %v2046 = vld [vmem:[%s1 + $0xd8] sm:$0xff]
  %v2047 = vld [vmem:[%s1 + $0xe0] sm:$0xff]
  %v2048 = vld [vmem:[%s1 + $0xe8] sm:$0xff]
  %v2049 = vld [vmem:[%s1 + $0xf0] sm:$0xff]
  %v2050 = vld [vmem:[%s1 + $0xf8] sm:$0xff]
  %v2083 = vunpack.c.l.b16 %v2019
  %v2084 = vunpack.c.h.b16 %v2019
  %v2085 = vunpack.c.l.b16 %v2020
  %v2086 = vunpack.c.h.b16 %v2020
  %v2087 = vunpack.c.l.b16 %v2021
  %v2088 = vunpack.c.h.b16 %v2021
  %v2089 = vunpack.c.l.b16 %v2022
  %v2090 = vunpack.c.h.b16 %v2022
  %v2091 = vunpack.c.l.b16 %v2023
  %v2092 = vunpack.c.h.b16 %v2023
  %v2093 = vunpack.c.l.b16 %v2024
  %v2094 = vunpack.c.h.b16 %v2024
  %v2095 = vunpack.c.l.b16 %v2025
  %v2096 = vunpack.c.h.b16 %v2025
  %v2097 = vunpack.c.l.b16 %v2026
  %v2098 = vunpack.c.h.b16 %v2026
  %v2099 = vunpack.c.l.b16 %v2027
  %v2100 = vunpack.c.h.b16 %v2027
  %v2101 = vunpack.c.l.b16 %v2028
  %v2102 = vunpack.c.h.b16 %v2028
  %v2103 = vunpack.c.l.b16 %v2029
  %v2104 = vunpack.c.h.b16 %v2029
  %v2105 = vunpack.c.l.b16 %v2030
  %v2106 = vunpack.c.h.b16 %v2030
  %v2107 = vunpack.c.l.b16 %v2031
  %v2108 = vunpack.c.h.b16 %v2031
  %v2109 = vunpack.c.l.b16 %v2032
  %v2110 = vunpack.c.h.b16 %v2032
  %v2111 = vunpack.c.l.b16 %v2033
  %v2112 = vunpack.c.h.b16 %v2033
  %v2113 = vunpack.c.l.b16 %v2034
  %v2114 = vunpack.c.h.b16 %v2034
  %v2115 = vunpack.c.l.b16 %v2035
  %v2116 = vunpack.c.h.b16 %v2035
  %v2117 = vunpack.c.l.b16 %v2036
  %v2118 = vunpack.c.h.b16 %v2036
  %v2119 = vunpack.c.l.b16 %v2037
  %v2120 = vunpack.c.h.b16 %v2037
  %v2121 = vunpack.c.l.b16 %v2038
  %v2122 = vunpack.c.h.b16 %v2038
  %v2123 = vunpack.c.l.b16 %v2039
  %v2124 = vunpack.c.h.b16 %v2039
  %v2125 = vunpack.c.l.b16 %v2040
  %v2126 = vunpack.c.h.b16 %v2040
  %v2127 = vunpack.c.l.b16 %v2041
  %v2128 = vunpack.c.h.b16 %v2041
  %v2129 = vunpack.c.l.b16 %v2042
  %v2130 = vunpack.c.h.b16 %v2042
  %v2131 = vunpack.c.l.b16 %v2043
  %v2132 = vunpack.c.h.b16 %v2043
  %v2133 = vunpack.c.l.b16 %v2044
  %v2134 = vunpack.c.h.b16 %v2044
  %v2135 = vunpack.c.l.b16 %v2045
  %v2136 = vunpack.c.h.b16 %v2045
  %v2137 = vunpack.c.l.b16 %v2046
  %v2138 = vunpack.c.h.b16 %v2046
  %v2139 = vunpack.c.l.b16 %v2047
  %v2140 = vunpack.c.h.b16 %v2047
  %v2141 = vunpack.c.l.b16 %v2048
  %v2142 = vunpack.c.h.b16 %v2048
  %v2143 = vunpack.c.l.b16 %v2049
  %v2144 = vunpack.c.h.b16 %v2049
  %v2145 = vunpack.c.l.b16 %v2050
  %v2146 = vunpack.c.h.b16 %v2050
  %v2147 = vpack.c.b16 %v2087, %v2083
  %v2148 = vpack.c.b16 %v2088, %v2084
  %v2149 = vpack.c.b16 %v2089, %v2085
  %v2150 = vpack.c.b16 %v2090, %v2086
  %v2151 = vpack.c.b16 %v2095, %v2091
  %v2152 = vpack.c.b16 %v2096, %v2092
  %v2153 = vpack.c.b16 %v2097, %v2093
  %v2154 = vpack.c.b16 %v2098, %v2094
  %v2155 = vpack.c.b16 %v2103, %v2099
  %v2156 = vpack.c.b16 %v2104, %v2100
  %v2157 = vpack.c.b16 %v2105, %v2101
  %v2158 = vpack.c.b16 %v2106, %v2102
  %v2159 = vpack.c.b16 %v2111, %v2107
  %v2160 = vpack.c.b16 %v2112, %v2108
  %v2161 = vpack.c.b16 %v2113, %v2109
  %v2162 = vpack.c.b16 %v2114, %v2110
  %v2163 = vpack.c.b16 %v2119, %v2115
  %v2164 = vpack.c.b16 %v2120, %v2116
  %v2165 = vpack.c.b16 %v2121, %v2117
  %v2166 = vpack.c.b16 %v2122, %v2118
  %v2167 = vpack.c.b16 %v2127, %v2123
  %v2168 = vpack.c.b16 %v2128, %v2124
  %v2169 = vpack.c.b16 %v2129, %v2125
  %v2170 = vpack.c.b16 %v2130, %v2126
  %v2171 = vpack.c.b16 %v2135, %v2131
  %v2172 = vpack.c.b16 %v2136, %v2132
  %v2173 = vpack.c.b16 %v2137, %v2133
  %v2174 = vpack.c.b16 %v2138, %v2134
  %v2175 = vpack.c.b16 %v2143, %v2139
  %v2176 = vpack.c.b16 %v2144, %v2140
  %v2177 = vpack.c.b16 %v2145, %v2141
  %v2178 = vpack.c.b16 %v2146, %v2142
  %2211 = vmatprep.subr.bf16.mxu0 %v2148
  %2212 = vmatpush1.bf16.msra.mxu0 %v2147
  %2213 = vmatprep.subr.bf16.mxu0 %v2152
  %2214 = vmatpush1.bf16.msra.mxu0 %v2151
  %2215 = vmatprep.subr.bf16.mxu0 %v2156
  %2216 = vmatpush1.bf16.msra.mxu0 %v2155
  %2217 = vmatprep.subr.bf16.mxu0 %v2160
  %2218 = vmatpush1.bf16.msra.mxu0 %v2159
  %2219 = vmatprep.subr.bf16.mxu0 %v2164
  %2220 = vmatpush1.bf16.msra.mxu0 %v2163
  %2221 = vmatprep.subr.bf16.mxu0 %v2168
  %2222 = vmatpush1.bf16.msra.mxu0 %v2167
  %2223 = vmatprep.subr.bf16.mxu0 %v2172
  %2224 = vmatpush1.bf16.msra.mxu0 %v2171
  %2225 = vmatprep.subr.bf16.mxu0 %v2176
  %2226 = vmatpush1.bf16.msra.mxu0 %v2175
  %2227 = vmatprep.subr.bf16.mxu0 0
  %2228 = vmatpush1.bf16.msra.mxu0 0
  %2229 = vmatprep.subr.bf16.mxu0 0
  %2230 = vmatpush1.bf16.msra.mxu0 0
  %2231 = vmatprep.subr.bf16.mxu0 0
  %2232 = vmatpush1.bf16.msra.mxu0 0
  %2233 = vmatprep.subr.bf16.mxu0 0
  %2234 = vmatpush1.bf16.msra.mxu0 0
  %2235 = vmatprep.subr.bf16.mxu0 0
  %2236 = vmatpush1.bf16.msra.mxu0 0
  %2237 = vmatprep.subr.bf16.mxu0 0
  %2238 = vmatpush1.bf16.msra.mxu0 0
  %2239 = vmatprep.subr.bf16.mxu0 0
  %2240 = vmatpush1.bf16.msra.mxu0 0
  %2241 = vmatprep.subr.bf16.mxu0 0
  %2242 = vmatpush1.bf16.msra.mxu0 0
  %2243 = vmatprep.mubr.bf16.mxu0 0
  %2244 = vmatmul.mubr.bf16.gmra.mrb[0].mxu0 %v2014
  %v2245 = vpop.f32.mrb[0].mxu0
  %v2246 = vadd.f32 0.0, %v2245
  %v2247 = vpop.f32.mrb[0].mxu0
  %v2248 = vadd.f32 0.0, %v2247
  %v2249 = vpop.f32.mrb[0].mxu0
  %v2250 = vpop.f32.mrb[0].mxu0
  %2251 = vdwg.mxu0
  %2252 = vmatprep.subr.bf16.mxu0 %v2150
  %2253 = vmatpush1.bf16.msra.mxu0 %v2149
  %2254 = vmatprep.subr.bf16.mxu0 %v2154
  %2255 = vmatpush1.bf16.msra.mxu0 %v2153
  %2256 = vmatprep.subr.bf16.mxu0 %v2158
  %2257 = vmatpush1.bf16.msra.mxu0 %v2157
  %2258 = vmatprep.subr.bf16.mxu0 %v2162
  %2259 = vmatpush1.bf16.msra.mxu0 %v2161
  %2260 = vmatprep.subr.bf16.mxu0 %v2166
  %2261 = vmatpush1.bf16.msra.mxu0 %v2165
  %2262 = vmatprep.subr.bf16.mxu0 %v2170
  %2263 = vmatpush1.bf16.msra.mxu0 %v2169
  %2264 = vmatprep.subr.bf16.mxu0 %v2174
  %2265 = vmatpush1.bf16.msra.mxu0 %v2173
  %2266 = vmatprep.subr.bf16.mxu0 %v2178
  %2267 = vmatpush1.bf16.msra.mxu0 %v2177
  %2268 = vmatprep.subr.bf16.mxu0 0
  %2269 = vmatpush1.bf16.msra.mxu0 0
  %2270 = vmatprep.subr.bf16.mxu0 0
  %2271 = vmatpush1.bf16.msra.mxu0 0
  %2272 = vmatprep.subr.bf16.mxu0 0
  %2273 = vmatpush1.bf16.msra.mxu0 0
  %2274 = vmatprep.subr.bf16.mxu0 0
  %2275 = vmatpush1.bf16.msra.mxu0 0
  %2276 = vmatprep.subr.bf16.mxu0 0
  %2277 = vmatpush1.bf16.msra.mxu0 0
  %2278 = vmatprep.subr.bf16.mxu0 0
  %2279 = vmatpush1.bf16.msra.mxu0 0
  %2280 = vmatprep.subr.bf16.mxu0 0
  %2281 = vmatpush1.bf16.msra.mxu0 0
  %2282 = vmatprep.subr.bf16.mxu0 0
  %2283 = vmatpush1.bf16.msra.mxu0 0
  %2284 = vmatprep.mubr.bf16.mxu0 0
  %2285 = vmatmul.mubr.bf16.gmra.mrb[0].mxu0 %v2014
  %v2286 = vpop.f32.mrb[0].mxu0
  %v2287 = vadd.f32 0.0, %v2286
  %v2288 = vpop.f32.mrb[0].mxu0
  %v2289 = vadd.f32 0.0, %v2288
  %v2290 = vpop.f32.mrb[0].mxu0
  %v2291 = vpop.f32.mrb[0].mxu0
  %2292 = vdwg.mxu0
  %v2297 = vcombine.low %v2246, %v2248
  %v2298 = vcombine.low %v2287, %v2289
  %v2300 = vunpack.c.l.s4 1983009808
  %v2301 = vunpack.c.0.s8 %v2300
  %v2302 = vlaneseq
  %v2303 = vshrl.u32 %v2302, 7
  %v2304 = vsub.s32 %v2301, %v2303
  %v2305 = vrot.slane %v2297, %v2304
  %v2307 = vunpack.c.l.s4 1983009808
  %v2308 = vunpack.c.0.s8 %v2307
  %v2309 = vlaneseq
  %v2310 = vshrl.u32 %v2309, 7
  %v2311 = vsub.s32 %v2308, %v2310
  %v2312 = vrot.slane %v2298, %v2311
  %v2313 = vcombine.low %v2305, %v2312
  %v2315 = vadd.f32 %v2018, %v2313
  %v2316 = vxor.u32 %v2315, 2147483648
  %v2317 = vmul.f32 %v2316, 1.442695
  %v2318 = vpow.pop %v2317
  %v2319 = vadd.f32 %v2318, 1.0
  %v2320 = vrcp.pop %v2319
  %v2321 = vmul.f32 1.0, %v2320
  %v2323 = vrot.slane %v2315, 2
  %v2325 = vxor.u32 %v2323, 2147483648
  %v2326 = vmul.f32 %v2325, 1.442695
  %v2327 = vpow.pop %v2326
  %v2328 = vadd.f32 %v2327, 1.0
  %v2329 = vrcp.pop %v2328
  %v2330 = vmul.f32 1.0, %v2329
  %v2331 = vrot.slane %v2315, 4
  %v2333 = vtanh.pop %v2331
  %v2334 = vrot.slane %v2315, 6
  %v2336 = vxor.u32 %v2334, 2147483648
  %v2337 = vmul.f32 %v2336, 1.442695
  %v2338 = vpow.pop %v2337
  %v2339 = vadd.f32 %v2338, 1.0
  %v2340 = vrcp.pop %v2339
  %v2341 = vmul.f32 1.0, %v2340
  %v2342 = vmul.f32 %v2330, %v2011
  %v2343 = vmul.f32 %v2321, %v2333
  %v2344 = vadd.f32 %v2342, %v2343
  %v2345 = vtanh.pop %v2344
  %v2346 = vmul.f32 %v2341, %v2345
  %v2347 = vpack.c.bf16 %v2346, %v2346
  %s2348 = scalar_lea.vmem %s2, 6
  %2349 = vst [vmem:[%s2348] sm:$0x1] %v2347
  %s2350 = scalar_lea.vmem %s0, 56
  %v2351 = vld [vmem:[%s2350] sm:$0xff]
  %v2352 = vld [vmem:[%s1] sm:$0xff]
  %v2353 = vld [vmem:[%s1 + $0x8] sm:$0xff]
  %v2354 = vld [vmem:[%s1 + $0x10] sm:$0xff]
  %v2355 = vld [vmem:[%s1 + $0x18] sm:$0xff]
  %v2356 = vld [vmem:[%s1 + $0x20] sm:$0xff]
  %v2357 = vld [vmem:[%s1 + $0x28] sm:$0xff]
  %v2358 = vld [vmem:[%s1 + $0x30] sm:$0xff]
  %v2359 = vld [vmem:[%s1 + $0x38] sm:$0xff]
  %v2360 = vld [vmem:[%s1 + $0x40] sm:$0xff]
  %v2361 = vld [vmem:[%s1 + $0x48] sm:$0xff]
  %v2362 = vld [vmem:[%s1 + $0x50] sm:$0xff]
  %v2363 = vld [vmem:[%s1 + $0x58] sm:$0xff]
  %v2364 = vld [vmem:[%s1 + $0x60] sm:$0xff]
  %v2365 = vld [vmem:[%s1 + $0x68] sm:$0xff]
  %v2366 = vld [vmem:[%s1 + $0x70] sm:$0xff]
  %v2367 = vld [vmem:[%s1 + $0x78] sm:$0xff]
  %v2368 = vld [vmem:[%s1 + $0x80] sm:$0xff]
  %v2369 = vld [vmem:[%s1 + $0x88] sm:$0xff]
  %v2370 = vld [vmem:[%s1 + $0x90] sm:$0xff]
  %v2371 = vld [vmem:[%s1 + $0x98] sm:$0xff]
  %v2372 = vld [vmem:[%s1 + $0xa0] sm:$0xff]
  %v2373 = vld [vmem:[%s1 + $0xa8] sm:$0xff]
  %v2374 = vld [vmem:[%s1 + $0xb0] sm:$0xff]
  %v2375 = vld [vmem:[%s1 + $0xb8] sm:$0xff]
  %v2376 = vld [vmem:[%s1 + $0xc0] sm:$0xff]
  %v2377 = vld [vmem:[%s1 + $0xc8] sm:$0xff]
  %v2378 = vld [vmem:[%s1 + $0xd0] sm:$0xff]
  %v2379 = vld [vmem:[%s1 + $0xd8] sm:$0xff]
  %v2380 = vld [vmem:[%s1 + $0xe0] sm:$0xff]
  %v2381 = vld [vmem:[%s1 + $0xe8] sm:$0xff]
  %v2382 = vld [vmem:[%s1 + $0xf0] sm:$0xff]
  %v2383 = vld [vmem:[%s1 + $0xf8] sm:$0xff]
  %v2416 = vunpack.c.l.b16 %v2352
  %v2417 = vunpack.c.h.b16 %v2352
  %v2418 = vunpack.c.l.b16 %v2353
  %v2419 = vunpack.c.h.b16 %v2353
  %v2420 = vunpack.c.l.b16 %v2354
  %v2421 = vunpack.c.h.b16 %v2354
  %v2422 = vunpack.c.l.b16 %v2355
  %v2423 = vunpack.c.h.b16 %v2355
  %v2424 = vunpack.c.l.b16 %v2356
  %v2425 = vunpack.c.h.b16 %v2356
  %v2426 = vunpack.c.l.b16 %v2357
  %v2427 = vunpack.c.h.b16 %v2357
  %v2428 = vunpack.c.l.b16 %v2358
  %v2429 = vunpack.c.h.b16 %v2358
  %v2430 = vunpack.c.l.b16 %v2359
  %v2431 = vunpack.c.h.b16 %v2359
  %v2432 = vunpack.c.l.b16 %v2360
  %v2433 = vunpack.c.h.b16 %v2360
  %v2434 = vunpack.c.l.b16 %v2361
  %v2435 = vunpack.c.h.b16 %v2361
  %v2436 = vunpack.c.l.b16 %v2362
  %v2437 = vunpack.c.h.b16 %v2362
  %v2438 = vunpack.c.l.b16 %v2363
  %v2439 = vunpack.c.h.b16 %v2363
  %v2440 = vunpack.c.l.b16 %v2364
  %v2441 = vunpack.c.h.b16 %v2364
  %v2442 = vunpack.c.l.b16 %v2365
  %v2443 = vunpack.c.h.b16 %v2365
  %v2444 = vunpack.c.l.b16 %v2366
  %v2445 = vunpack.c.h.b16 %v2366
  %v2446 = vunpack.c.l.b16 %v2367
  %v2447 = vunpack.c.h.b16 %v2367
  %v2448 = vunpack.c.l.b16 %v2368
  %v2449 = vunpack.c.h.b16 %v2368
  %v2450 = vunpack.c.l.b16 %v2369
  %v2451 = vunpack.c.h.b16 %v2369
  %v2452 = vunpack.c.l.b16 %v2370
  %v2453 = vunpack.c.h.b16 %v2370
  %v2454 = vunpack.c.l.b16 %v2371
  %v2455 = vunpack.c.h.b16 %v2371
  %v2456 = vunpack.c.l.b16 %v2372
  %v2457 = vunpack.c.h.b16 %v2372
  %v2458 = vunpack.c.l.b16 %v2373
  %v2459 = vunpack.c.h.b16 %v2373
  %v2460 = vunpack.c.l.b16 %v2374
  %v2461 = vunpack.c.h.b16 %v2374
  %v2462 = vunpack.c.l.b16 %v2375
  %v2463 = vunpack.c.h.b16 %v2375
  %v2464 = vunpack.c.l.b16 %v2376
  %v2465 = vunpack.c.h.b16 %v2376
  %v2466 = vunpack.c.l.b16 %v2377
  %v2467 = vunpack.c.h.b16 %v2377
  %v2468 = vunpack.c.l.b16 %v2378
  %v2469 = vunpack.c.h.b16 %v2378
  %v2470 = vunpack.c.l.b16 %v2379
  %v2471 = vunpack.c.h.b16 %v2379
  %v2472 = vunpack.c.l.b16 %v2380
  %v2473 = vunpack.c.h.b16 %v2380
  %v2474 = vunpack.c.l.b16 %v2381
  %v2475 = vunpack.c.h.b16 %v2381
  %v2476 = vunpack.c.l.b16 %v2382
  %v2477 = vunpack.c.h.b16 %v2382
  %v2478 = vunpack.c.l.b16 %v2383
  %v2479 = vunpack.c.h.b16 %v2383
  %v2480 = vpack.c.b16 %v2420, %v2416
  %v2481 = vpack.c.b16 %v2421, %v2417
  %v2482 = vpack.c.b16 %v2422, %v2418
  %v2483 = vpack.c.b16 %v2423, %v2419
  %v2484 = vpack.c.b16 %v2428, %v2424
  %v2485 = vpack.c.b16 %v2429, %v2425
  %v2486 = vpack.c.b16 %v2430, %v2426
  %v2487 = vpack.c.b16 %v2431, %v2427
  %v2488 = vpack.c.b16 %v2436, %v2432
  %v2489 = vpack.c.b16 %v2437, %v2433
  %v2490 = vpack.c.b16 %v2438, %v2434
  %v2491 = vpack.c.b16 %v2439, %v2435
  %v2492 = vpack.c.b16 %v2444, %v2440
  %v2493 = vpack.c.b16 %v2445, %v2441
  %v2494 = vpack.c.b16 %v2446, %v2442
  %v2495 = vpack.c.b16 %v2447, %v2443
  %v2496 = vpack.c.b16 %v2452, %v2448
  %v2497 = vpack.c.b16 %v2453, %v2449
  %v2498 = vpack.c.b16 %v2454, %v2450
  %v2499 = vpack.c.b16 %v2455, %v2451
  %v2500 = vpack.c.b16 %v2460, %v2456
  %v2501 = vpack.c.b16 %v2461, %v2457
  %v2502 = vpack.c.b16 %v2462, %v2458
  %v2503 = vpack.c.b16 %v2463, %v2459
  %v2504 = vpack.c.b16 %v2468, %v2464
  %v2505 = vpack.c.b16 %v2469, %v2465
  %v2506 = vpack.c.b16 %v2470, %v2466
  %v2507 = vpack.c.b16 %v2471, %v2467
  %v2508 = vpack.c.b16 %v2476, %v2472
  %v2509 = vpack.c.b16 %v2477, %v2473
  %v2510 = vpack.c.b16 %v2478, %v2474
  %v2511 = vpack.c.b16 %v2479, %v2475
  %2544 = vmatprep.subr.bf16.mxu0 %v2481
  %2545 = vmatpush1.bf16.msra.mxu0 %v2480
  %2546 = vmatprep.subr.bf16.mxu0 %v2485
  %2547 = vmatpush1.bf16.msra.mxu0 %v2484
  %2548 = vmatprep.subr.bf16.mxu0 %v2489
  %2549 = vmatpush1.bf16.msra.mxu0 %v2488
  %2550 = vmatprep.subr.bf16.mxu0 %v2493
  %2551 = vmatpush1.bf16.msra.mxu0 %v2492
  %2552 = vmatprep.subr.bf16.mxu0 %v2497
  %2553 = vmatpush1.bf16.msra.mxu0 %v2496
  %2554 = vmatprep.subr.bf16.mxu0 %v2501
  %2555 = vmatpush1.bf16.msra.mxu0 %v2500
  %2556 = vmatprep.subr.bf16.mxu0 %v2505
  %2557 = vmatpush1.bf16.msra.mxu0 %v2504
  %2558 = vmatprep.subr.bf16.mxu0 %v2509
  %2559 = vmatpush1.bf16.msra.mxu0 %v2508
  %2560 = vmatprep.subr.bf16.mxu0 0
  %2561 = vmatpush1.bf16.msra.mxu0 0
  %2562 = vmatprep.subr.bf16.mxu0 0
  %2563 = vmatpush1.bf16.msra.mxu0 0
  %2564 = vmatprep.subr.bf16.mxu0 0
  %2565 = vmatpush1.bf16.msra.mxu0 0
  %2566 = vmatprep.subr.bf16.mxu0 0
  %2567 = vmatpush1.bf16.msra.mxu0 0
  %2568 = vmatprep.subr.bf16.mxu0 0
  %2569 = vmatpush1.bf16.msra.mxu0 0
  %2570 = vmatprep.subr.bf16.mxu0 0
  %2571 = vmatpush1.bf16.msra.mxu0 0
  %2572 = vmatprep.subr.bf16.mxu0 0
  %2573 = vmatpush1.bf16.msra.mxu0 0
  %2574 = vmatprep.subr.bf16.mxu0 0
  %2575 = vmatpush1.bf16.msra.mxu0 0
  %2576 = vmatprep.mubr.bf16.mxu0 0
  %2577 = vmatmul.mubr.bf16.gmra.mrb[0].mxu0 %v2347
  %v2578 = vpop.f32.mrb[0].mxu0
  %v2579 = vadd.f32 0.0, %v2578
  %v2580 = vpop.f32.mrb[0].mxu0
  %v2581 = vadd.f32 0.0, %v2580
  %v2582 = vpop.f32.mrb[0].mxu0
  %v2583 = vpop.f32.mrb[0].mxu0
  %2584 = vdwg.mxu0
  %2585 = vmatprep.subr.bf16.mxu0 %v2483
  %2586 = vmatpush1.bf16.msra.mxu0 %v2482
  %2587 = vmatprep.subr.bf16.mxu0 %v2487
  %2588 = vmatpush1.bf16.msra.mxu0 %v2486
  %2589 = vmatprep.subr.bf16.mxu0 %v2491
  %2590 = vmatpush1.bf16.msra.mxu0 %v2490
  %2591 = vmatprep.subr.bf16.mxu0 %v2495
  %2592 = vmatpush1.bf16.msra.mxu0 %v2494
  %2593 = vmatprep.subr.bf16.mxu0 %v2499
  %2594 = vmatpush1.bf16.msra.mxu0 %v2498
  %2595 = vmatprep.subr.bf16.mxu0 %v2503
  %2596 = vmatpush1.bf16.msra.mxu0 %v2502
  %2597 = vmatprep.subr.bf16.mxu0 %v2507
  %2598 = vmatpush1.bf16.msra.mxu0 %v2506
  %2599 = vmatprep.subr.bf16.mxu0 %v2511
  %2600 = vmatpush1.bf16.msra.mxu0 %v2510
  %2601 = vmatprep.subr.bf16.mxu0 0
  %2602 = vmatpush1.bf16.msra.mxu0 0
  %2603 = vmatprep.subr.bf16.mxu0 0
  %2604 = vmatpush1.bf16.msra.mxu0 0
  %2605 = vmatprep.subr.bf16.mxu0 0
  %2606 = vmatpush1.bf16.msra.mxu0 0
  %2607 = vmatprep.subr.bf16.mxu0 0
  %2608 = vmatpush1.bf16.msra.mxu0 0
  %2609 = vmatprep.subr.bf16.mxu0 0
  %2610 = vmatpush1.bf16.msra.mxu0 0
  %2611 = vmatprep.subr.bf16.mxu0 0
  %2612 = vmatpush1.bf16.msra.mxu0 0
  %2613 = vmatprep.subr.bf16.mxu0 0
  %2614 = vmatpush1.bf16.msra.mxu0 0
  %2615 = vmatprep.subr.bf16.mxu0 0
  %2616 = vmatpush1.bf16.msra.mxu0 0
  %2617 = vmatprep.mubr.bf16.mxu0 0
  %2618 = vmatmul.mubr.bf16.gmra.mrb[0].mxu0 %v2347
  %v2619 = vpop.f32.mrb[0].mxu0
  %v2620 = vadd.f32 0.0, %v2619
  %v2621 = vpop.f32.mrb[0].mxu0
  %v2622 = vadd.f32 0.0, %v2621
  %v2623 = vpop.f32.mrb[0].mxu0
  %v2624 = vpop.f32.mrb[0].mxu0
  %2625 = vdwg.mxu0
  %v2630 = vcombine.low %v2579, %v2581
  %v2631 = vcombine.low %v2620, %v2622
  %v2633 = vunpack.c.l.s4 1983009808
  %v2634 = vunpack.c.0.s8 %v2633
  %v2635 = vlaneseq
  %v2636 = vshrl.u32 %v2635, 7
  %v2637 = vsub.s32 %v2634, %v2636
  %v2638 = vrot.slane %v2630, %v2637
  %v2640 = vunpack.c.l.s4 1983009808
  %v2641 = vunpack.c.0.s8 %v2640
  %v2642 = vlaneseq
  %v2643 = vshrl.u32 %v2642, 7
  %v2644 = vsub.s32 %v2641, %v2643
  %v2645 = vrot.slane %v2631, %v2644
  %v2646 = vcombine.low %v2638, %v2645
  %v2648 = vadd.f32 %v2351, %v2646
  %v2649 = vxor.u32 %v2648, 2147483648
  %v2650 = vmul.f32 %v2649, 1.442695
  %v2651 = vpow.pop %v2650
  %v2652 = vadd.f32 %v2651, 1.0
  %v2653 = vrcp.pop %v2652
  %v2654 = vmul.f32 1.0, %v2653
  %v2656 = vrot.slane %v2648, 2
  %v2658 = vxor.u32 %v2656, 2147483648
  %v2659 = vmul.f32 %v2658, 1.442695
  %v2660 = vpow.pop %v2659
  %v2661 = vadd.f32 %v2660, 1.0
  %v2662 = vrcp.pop %v2661
  %v2663 = vmul.f32 1.0, %v2662
  %v2664 = vrot.slane %v2648, 4
  %v2666 = vtanh.pop %v2664
  %v2667 = vrot.slane %v2648, 6
  %v2669 = vxor.u32 %v2667, 2147483648
  %v2670 = vmul.f32 %v2669, 1.442695
  %v2671 = vpow.pop %v2670
  %v2672 = vadd.f32 %v2671, 1.0
  %v2673 = vrcp.pop %v2672
  %v2674 = vmul.f32 1.0, %v2673
  %v2675 = vmul.f32 %v2663, %v2344
  %v2676 = vmul.f32 %v2654, %v2666
  %v2677 = vadd.f32 %v2675, %v2676
  %v2678 = vtanh.pop %v2677
  %v2679 = vmul.f32 %v2674, %v2678
  %v2680 = vpack.c.bf16 %v2679, %v2679
  %s2681 = scalar_lea.vmem %s2, 7
  %2682 = vst [vmem:[%s2681] sm:$0x1] %v2680
  %2683 = vst [vmem:[#allocation2] sm:$0x3] %v2679
  %2684 = vst [vmem:[#allocation3] sm:$0x3] %v2677
  // Predicated region
  $region14: #{lstm_forward.5} parent=0 // pred_check
    _
  $region15: #{lstm_forward.5} parent=0 // pred_check_branch
    %2686 = sbr.rel (0) target = $region17
  $region16: #{lstm_forward.5} parent=0 // pred_region
    _
  $region17: #{lstm_forward.5} parent=0 // pred_fallthru
    _
  // Predicated region
  $region18: #{lstm_forward.5} parent=0 // pred_check
    _
  $region19: #{lstm_forward.5} parent=0 // pred_check_branch
    %2688 = sbr.rel (0) target = $region21
  $region20: #{lstm_forward.5} parent=0 // pred_region
    _
  $region21: #{lstm_forward.5} parent=0 // pred_fallthru
    _

</llo_original>
